<compile_context>
chip_gen: v7x
topology: tpu7x:2x2x1
jax: 0.10.0
libtpu: 0.0.40
codegen_flags: <defaults>
</compile_context>

<pallas_src>
import functools
import math
import numpy as np
import jax
import jax.numpy as jnp
from jax.experimental import pallas as pl
from jax.experimental.pallas import tpu as pltpu

NUM_HEADS = 4
_HIGHEST = jax.lax.Precision.HIGHEST


def mha_kernel(x_ref, bat_ref, wslab_ref, cslab_ref, out_ref, *, C, H, B):
    """x_ref: (N,C); bat_ref: (N,1) f32 graph id; slabs: packed constants."""
    HH = H * H
    HC = H * C
    P = out_ref.shape[1]

    def mm(a, b):
        return jnp.dot(a, b, preferred_element_type=jnp.float32, precision=_HIGHEST)

    # Static views into the packed constant slabs (one DMA each, sliced in VMEM).
    w_big = wslab_ref[pl.ds(0, C), :]                    # (C, 3*HC)
    b_big = wslab_ref[pl.ds(C, 1), :]                    # (1, 3*HC)
    w_comb = cslab_ref[pl.ds(0, HC), pl.ds(0, P)]        # (HC, P)   head-sum + Wo, padded
    sel = cslab_ref[pl.ds(0, HC), pl.ds(P, HH)]          # (HC, HH)  block-sum w/ 1/sqrt(D)
    e_mp = cslab_ref[pl.ds(HC, HH), :]                   # (HH, HC+P) fused [E | Mp]
    b_pad = cslab_ref[pl.ds(HC + HH, 1), pl.ds(0, P)]    # (1, P)    bo, padded

    # One fused projection: [q_rep | k_rep | v_tile] = x @ W_big + b_big   (N, 3*HC)
    proj = mm(x_ref[...], w_big) + b_big
    q_rep = proj[:, :HC]
    k_rep = proj[:, HC:2 * HC]
    v_tile = proj[:, 2 * HC:3 * HC]

    # scores[n, i*H+j] = <q_i, k_j> / sqrt(D): lane-wide product + block-sum matmul.
    scores = mm(q_rep * k_rep, sel)                      # (N, HH)

    # Segment softmax over nodes grouped by `batch` (torch_geometric.utils.softmax),
    # entirely on VPU/XLU: per-graph masked max/sum column-reductions, scattered back
    # with selects (no MXU gather/scatter matmuls in the critical chain).
    batch_col = bat_ref[...]                             # (N, 1) f32 graph id per node
    neg = jnp.full(scores.shape, -3e38, dtype=jnp.float32)   # hoisted fill (finite sentinel:
    node_max = jnp.zeros_like(scores)                         # empty graphs contribute 0*(-3e38)=0)
    masks = []
    for b in range(B):                                   # B = num_graphs, tiny & static
        m_col = (batch_col == jnp.float32(b)).astype(jnp.float32)   # (N, 1)
        masks.append(m_col)
        seg_max_b = jnp.max(jnp.where(m_col > 0.5, scores, neg), axis=0, keepdims=True)
        node_max = node_max + m_col * seg_max_b
    exp_s = jnp.exp(scores - node_max)
    node_sum = jnp.zeros_like(scores)
    for b in range(B):
        seg_sum_b = jnp.sum(exp_s * masks[b], axis=0, keepdims=True)
        node_sum = node_sum + masks[b] * seg_sum_b
    att = exp_s / (node_sum + 1e-16)                     # (N, HH)

    # Single fused att-consumer matmul: cols [0,HC) broadcast att over the head dim,
    # cols [HC,HC+P) already hold att.mean(dim=1) placed at output cols [C, C+H).
    att_em = mm(att, e_mp)                               # (N, HC + P)
    att_rep = att_em[:, :HC]
    mean_slab = att_em[:, HC:]
    # Lane-dense padded output slab: cols [0,C) -> out, [C,C+H) -> att.mean.
    out_ref[...] = mm(att_rep * v_tile, w_comb) + mean_slab + b_pad


def prepare_params(params, num_heads=NUM_HEADS):
    """One-time host-side folding of Linear weights + head bookkeeping into 2 slabs."""
    wq, bq, wk, bk, wv, bv, wo, bo = (np.asarray(p, np.float32) for p in params)
    C = wq.shape[1]
    H = num_heads
    D = C // H
    HH, HC = H * H, H * C
    P = 128 * max(1, -(-(C + H) // 128))       # lane-dense padded output width
    scale = 1.0 / math.sqrt(D)

    Rq = np.zeros((C, HC), np.float32)          # repeat q head i across all j
    Rk = np.zeros((C, HC), np.float32)          # repeat k head j across all i
    Sel = np.zeros((HC, HH), np.float32)        # block-sum over D (scale folded in)
    EMp = np.zeros((HH, HC + P), np.float32)    # fused [E | Mp]
    G = np.zeros((HC, C), np.float32)           # sum over j back into head-i block
    for i in range(H):
        for j in range(H):
            p = i * H + j
            for d in range(D):
                Rq[i * D + d, p * D + d] = 1.0
                Rk[j * D + d, p * D + d] = 1.0
                Sel[p * D + d, p] = scale
                EMp[p, i * C + j * D + d] = 1.0
                G[i * C + j * D + d, i * D + d] = 1.0
            EMp[p, HC + C + j] = 1.0 / H        # att.mean(dim=1) into cols [C, C+H)

    wq_t, wk_t, wv_t, wo_t = wq.T, wk.T, wv.T, wo.T
    w_big = np.concatenate([wq_t @ Rq, wk_t @ Rk, np.tile(wv_t, (1, H))], axis=1)
    b_big = np.concatenate([bq @ Rq, bk @ Rk, np.tile(bv, H)])[None, :]

    # Slab 0: projection weights + bias stacked row-wise -> one DMA.
    slab_w = np.concatenate([w_big, b_big], axis=0)            # (C+1, 3*HC)

    # Slab 1: w_comb | sel on the first HC rows, [E|Mp] below, b_pad last -> one DMA.
    slab_c = np.zeros((HC + HH + 1, HC + P), np.float32)
    slab_c[:HC, :C] = G @ wo_t                                 # w_comb (cols [0,P))
    slab_c[:HC, P:P + HH] = Sel                                # sel    (cols [P,P+HH))
    slab_c[HC:HC + HH, :] = EMp                                # fused [E | Mp]
    slab_c[HC + HH, :C] = bo                                   # b_pad  (cols [0,P))

    return jnp.asarray(slab_w), jnp.asarray(slab_c), C, H, P


def multi_head_attention(x, batch, prepared, num_graphs):
    """x: (N, C) f32 node features; batch: (N,) int32 graph id per node."""
    slab_w, slab_c, C, H, P = prepared
    N = x.shape[0]
    batchf = batch.astype(jnp.float32).reshape(N, 1)
    kernel = functools.partial(mha_kernel, C=C, H=H, B=int(num_graphs))
    vmem = pl.BlockSpec(memory_space=pltpu.MemorySpace.VMEM)
    y = pl.pallas_call(
        kernel,
        in_specs=[vmem, vmem, vmem, vmem],
        out_specs=vmem,
        out_shape=jax.ShapeDtypeStruct((N, P), jnp.float32),
    )(x, batchf, slab_w, slab_c)
    return y[:, :C], y[:, C:C + H]


def reference(x, batch, params, num_graphs):
    """Pure-JAX reference mirroring the PyTorch forward (torch_geometric softmax)."""
    wq, bq, wk, bk, wv, bv, wo, bo = params
    N, C = x.shape
    H, D = NUM_HEADS, C // NUM_HEADS
    hp = _HIGHEST
    q = (jnp.dot(x, wq.T, precision=hp) + bq).reshape(N, H, D)
    k = (jnp.dot(x, wk.T, precision=hp) + bk).reshape(N, H, D)
    v = (jnp.dot(x, wv.T, precision=hp) + bv).reshape(N, H, D)
    scores = jnp.einsum('nid,njd->nij', q, k, precision=hp) / math.sqrt(D)
    seg_max = jax.ops.segment_max(scores, batch, num_segments=num_graphs)
    e = jnp.exp(scores - seg_max[batch])
    seg_sum = jax.ops.segment_sum(e, batch, num_segments=num_graphs)
    att = e / (seg_sum[batch] + 1e-16)
    out = jnp.dot(jnp.einsum('nij,njd->nid', att, v, precision=hp).reshape(N, C),
                  wo.T, precision=hp) + bo
    return out, att.mean(axis=1)


if __name__ == "__main__":
    N, C, NUM_GRAPHS = 16, 32, 2          # 16 nodes, 32 channels, 4 heads x 8 dims
    key = jax.random.PRNGKey(0)
    ks = jax.random.split(key, 10)

    x = jax.random.normal(ks[0], (N, C), jnp.float32)
    batch = jnp.array([0] * (N // 2) + [1] * (N // 2), dtype=jnp.int32)

    s = 1.0 / math.sqrt(C)                # deterministic, Linear-like init
    wq = jax.random.uniform(ks[1], (C, C), jnp.float32, -s, s)
    bq = jax.random.uniform(ks[2], (C,), jnp.float32, -s, s)
    wk = jax.random.uniform(ks[3], (C, C), jnp.float32, -s, s)
    bk = jax.random.uniform(ks[4], (C,), jnp.float32, -s, s)
    wv = jax.random.uniform(ks[5], (C, C), jnp.float32, -s, s)
    bv = jax.random.uniform(ks[6], (C,), jnp.float32, -s, s)
    wo = jax.random.uniform(ks[7], (C, C), jnp.float32, -s, s)
    bo = jax.random.uniform(ks[8], (C,), jnp.float32, -s, s)
    params = (wq, bq, wk, bk, wv, bv, wo, bo)

    prepared = prepare_params(params)     # one-time weight folding / slab packing

    out, att_mean = multi_head_attention(x, batch, prepared, NUM_GRAPHS)
    jax.block_until_ready((out, att_mean))

    ref_out, ref_att = reference(x, batch, params, NUM_GRAPHS)

    assert out.shape == (N, C) and att_mean.shape == (N, NUM_HEADS)
    assert np.allclose(np.asarray(out), np.asarray(ref_out), rtol=1e-4, atol=1e-4)
    assert np.allclose(np.asarray(att_mean), np.asarray(ref_att), rtol=1e-4, atol=1e-5)
    print("KERNEL_OK")
</pallas_src>

<mosaic_0001>
module attributes {stable_mosaic.version = 11 : i64} {
  func.func @mha_kernel(%arg0: memref<16x32xf32, #tpu.memory_space<vmem>>, %arg1: memref<16x1xf32, #tpu.memory_space<vmem>>, %arg2: memref<33x384xf32, #tpu.memory_space<vmem>>, %arg3: memref<145x256xf32, #tpu.memory_space<vmem>>, %arg4: memref<16x128xf32, #tpu.memory_space<vmem>>) attributes {dimension_semantics = [], scalar_prefetch = 0 : i64, scratch_operands = 0 : i64, tpu.core_type = #tpu.core_type<tc>} {
    %c0 = arith.constant 0 : index
    %c0_0 = arith.constant 0 : index
    %0 = vector.load %arg2[%c0, %c0_0] : memref<33x384xf32, #tpu.memory_space<vmem>>, vector<32x384xf32>
    %c32 = arith.constant 32 : index
    %c0_1 = arith.constant 0 : index
    %1 = vector.load %arg2[%c32, %c0_1] : memref<33x384xf32, #tpu.memory_space<vmem>>, vector<1x384xf32>
    %c0_2 = arith.constant 0 : index
    %c0_3 = arith.constant 0 : index
    %2 = vector.load %arg3[%c0_2, %c0_3] : memref<145x256xf32, #tpu.memory_space<vmem>>, vector<128x128xf32>
    %c0_4 = arith.constant 0 : index
    %c128 = arith.constant 128 : index
    %3 = vector.load %arg3[%c0_4, %c128] : memref<145x256xf32, #tpu.memory_space<vmem>>, vector<128x16xf32>
    %c128_5 = arith.constant 128 : index
    %c0_6 = arith.constant 0 : index
    %4 = vector.load %arg3[%c128_5, %c0_6] : memref<145x256xf32, #tpu.memory_space<vmem>>, vector<16x256xf32>
    %c144 = arith.constant 144 : index
    %c0_7 = arith.constant 0 : index
    %5 = vector.load %arg3[%c144, %c0_7] : memref<145x256xf32, #tpu.memory_space<vmem>>, vector<1x128xf32>
    %c0_8 = arith.constant 0 : index
    %c0_9 = arith.constant 0 : index
    %6 = vector.load %arg0[%c0_8, %c0_9] : memref<16x32xf32, #tpu.memory_space<vmem>>, vector<16x32xf32>
    %cst = arith.constant dense<0.000000e+00> : vector<16x384xf32>
    %7 = tpu.matmul %6, %0, %cst {dimension_numbers = #tpu.dot_dimension_numbers<[1], [0], [0], [1], [0, 0, 1, 1], [], []>, precision = #tpu.contract_precision<fp32>} : vector<16x32xf32>, vector<32x384xf32>, vector<16x384xf32> -> vector<16x384xf32>
    %8 = vector.broadcast %1 : vector<1x384xf32> to vector<16x384xf32>
    %9 = arith.addf %7, %8 : vector<16x384xf32>
    %10 = vector.extract_strided_slice %9 {offsets = [0, 0], sizes = [16, 128], strides = [1, 1]} : vector<16x384xf32> to vector<16x128xf32>
    %11 = vector.extract_strided_slice %9 {offsets = [0, 128], sizes = [16, 128], strides = [1, 1]} : vector<16x384xf32> to vector<16x128xf32>
    %12 = vector.extract_strided_slice %9 {offsets = [0, 256], sizes = [16, 128], strides = [1, 1]} : vector<16x384xf32> to vector<16x128xf32>
    %13 = arith.mulf %10, %11 : vector<16x128xf32>
    %cst_10 = arith.constant dense<0.000000e+00> : vector<16x16xf32>
    %14 = tpu.matmul %13, %3, %cst_10 {dimension_numbers = #tpu.dot_dimension_numbers<[1], [0], [0], [1], [0, 0, 1, 1], [], []>, precision = #tpu.contract_precision<fp32>} : vector<16x128xf32>, vector<128x16xf32>, vector<16x16xf32> -> vector<16x16xf32>
    %c0_11 = arith.constant 0 : index
    %c0_12 = arith.constant 0 : index
    %15 = vector.load %arg1[%c0_11, %c0_12] : memref<16x1xf32, #tpu.memory_space<vmem>>, vector<16x1xf32>
    %cst_13 = arith.constant -3.000000e+38 : f32
    %16 = vector.broadcast %cst_13 : f32 to vector<16x16xf32>
    %cst_14 = arith.constant 0.000000e+00 : f32
    %17 = vector.broadcast %cst_14 : f32 to vector<16x16xf32>
    %cst_15 = arith.constant 0.000000e+00 : f32
    %18 = vector.broadcast %cst_15 : f32 to vector<16x1xf32>
    %19 = arith.cmpf oeq, %15, %18 : vector<16x1xf32>
    %20 = arith.extui %19 : vector<16x1xi1> to vector<16x1xi32>
    %21 = arith.sitofp %20 : vector<16x1xi32> to vector<16x1xf32>
    %cst_16 = arith.constant 5.000000e-01 : f32
    %22 = vector.broadcast %cst_16 : f32 to vector<16x1xf32>
    %23 = arith.cmpf ogt, %21, %22 : vector<16x1xf32>
    %24 = vector.shape_cast %23 : vector<16x1xi1> to vector<16x1xi1>
    %25 = vector.broadcast %24 : vector<16x1xi1> to vector<16x16xi1>
    %26 = arith.select %25, %14, %16 : vector<16x16xi1>, vector<16x16xf32>
    %cst_17 = arith.constant dense<0xFF800000> : vector<16xf32>
    %27 = vector.multi_reduction <maximumf>, %26, %cst_17 [0] : vector<16x16xf32> to vector<16xf32>
    %28 = vector.shape_cast %27 : vector<16xf32> to vector<1x16xf32>
    %29 = vector.broadcast %21 : vector<16x1xf32> to vector<16x16xf32>
    %30 = vector.broadcast %28 : vector<1x16xf32> to vector<16x16xf32>
    %31 = arith.mulf %29, %30 : vector<16x16xf32>
    %32 = arith.addf %17, %31 : vector<16x16xf32>
    %cst_18 = arith.constant 1.000000e+00 : f32
    %33 = vector.broadcast %cst_18 : f32 to vector<16x1xf32>
    %34 = arith.cmpf oeq, %15, %33 : vector<16x1xf32>
    %35 = arith.extui %34 : vector<16x1xi1> to vector<16x1xi32>
    %36 = arith.sitofp %35 : vector<16x1xi32> to vector<16x1xf32>
    %cst_19 = arith.constant 5.000000e-01 : f32
    %37 = vector.broadcast %cst_19 : f32 to vector<16x1xf32>
    %38 = arith.cmpf ogt, %36, %37 : vector<16x1xf32>
    %39 = vector.shape_cast %38 : vector<16x1xi1> to vector<16x1xi1>
    %40 = vector.broadcast %39 : vector<16x1xi1> to vector<16x16xi1>
    %41 = arith.select %40, %14, %16 : vector<16x16xi1>, vector<16x16xf32>
    %cst_20 = arith.constant dense<0xFF800000> : vector<16xf32>
    %42 = vector.multi_reduction <maximumf>, %41, %cst_20 [0] : vector<16x16xf32> to vector<16xf32>
    %43 = vector.shape_cast %42 : vector<16xf32> to vector<1x16xf32>
    %44 = vector.broadcast %36 : vector<16x1xf32> to vector<16x16xf32>
    %45 = vector.broadcast %43 : vector<1x16xf32> to vector<16x16xf32>
    %46 = arith.mulf %44, %45 : vector<16x16xf32>
    %47 = arith.addf %32, %46 : vector<16x16xf32>
    %48 = arith.subf %14, %47 : vector<16x16xf32>
    %49 = math.exp %48 : vector<16x16xf32>
    %cst_21 = arith.constant 0.000000e+00 : f32
    %50 = vector.broadcast %cst_21 : f32 to vector<16x16xf32>
    %51 = vector.broadcast %21 : vector<16x1xf32> to vector<16x16xf32>
    %52 = arith.mulf %49, %51 : vector<16x16xf32>
    %cst_22 = arith.constant dense<0.000000e+00> : vector<16xf32>
    %53 = vector.multi_reduction <add>, %52, %cst_22 [0] : vector<16x16xf32> to vector<16xf32>
    %54 = vector.shape_cast %53 : vector<16xf32> to vector<1x16xf32>
    %55 = vector.broadcast %21 : vector<16x1xf32> to vector<16x16xf32>
    %56 = vector.broadcast %54 : vector<1x16xf32> to vector<16x16xf32>
    %57 = arith.mulf %55, %56 : vector<16x16xf32>
    %58 = arith.addf %50, %57 : vector<16x16xf32>
    %59 = vector.broadcast %36 : vector<16x1xf32> to vector<16x16xf32>
    %60 = arith.mulf %49, %59 : vector<16x16xf32>
    %cst_23 = arith.constant dense<0.000000e+00> : vector<16xf32>
    %61 = vector.multi_reduction <add>, %60, %cst_23 [0] : vector<16x16xf32> to vector<16xf32>
    %62 = vector.shape_cast %61 : vector<16xf32> to vector<1x16xf32>
    %63 = vector.broadcast %36 : vector<16x1xf32> to vector<16x16xf32>
    %64 = vector.broadcast %62 : vector<1x16xf32> to vector<16x16xf32>
    %65 = arith.mulf %63, %64 : vector<16x16xf32>
    %66 = arith.addf %58, %65 : vector<16x16xf32>
    %cst_24 = arith.constant 1.000000e-16 : f32
    %67 = vector.broadcast %cst_24 : f32 to vector<16x16xf32>
    %68 = arith.addf %66, %67 : vector<16x16xf32>
    %69 = arith.divf %49, %68 : vector<16x16xf32>
    %cst_25 = arith.constant dense<0.000000e+00> : vector<16x256xf32>
    %70 = tpu.matmul %69, %4, %cst_25 {dimension_numbers = #tpu.dot_dimension_numbers<[1], [0], [0], [1], [0, 0, 1, 1], [], []>, precision = #tpu.contract_precision<fp32>} : vector<16x16xf32>, vector<16x256xf32>, vector<16x256xf32> -> vector<16x256xf32>
    %71 = vector.extract_strided_slice %70 {offsets = [0, 0], sizes = [16, 128], strides = [1, 1]} : vector<16x256xf32> to vector<16x128xf32>
    %72 = vector.extract_strided_slice %70 {offsets = [0, 128], sizes = [16, 128], strides = [1, 1]} : vector<16x256xf32> to vector<16x128xf32>
    %73 = arith.mulf %71, %12 : vector<16x128xf32>
    %cst_26 = arith.constant dense<0.000000e+00> : vector<16x128xf32>
    %74 = tpu.matmul %73, %2, %cst_26 {dimension_numbers = #tpu.dot_dimension_numbers<[1], [0], [0], [1], [0, 0, 1, 1], [], []>, precision = #tpu.contract_precision<fp32>} : vector<16x128xf32>, vector<128x128xf32>, vector<16x128xf32> -> vector<16x128xf32>
    %75 = arith.addf %74, %72 : vector<16x128xf32>
    %76 = vector.broadcast %5 : vector<1x128xf32> to vector<16x128xf32>
    %77 = arith.addf %75, %76 : vector<16x128xf32>
    %c0_27 = arith.constant 0 : index
    %c0_28 = arith.constant 0 : index
    %78 = vector.load %arg4[%c0_27, %c0_28] : memref<16x128xf32, #tpu.memory_space<vmem>>, vector<16x128xf32>
    tpu.vector_store %arg4[%c0_27, %c0_28], %77 {strides = array<i32>} : memref<16x128xf32, #tpu.memory_space<vmem>>, vector<16x128xf32>,
    return
  }
}

</mosaic_0001>

<llo_original>
// kernel: tpu_custom_call.1
$region0: #{tpu_custom_call.1}
  #allocation0 [shape = 'u32[]', space=smem, size = 0x4, offset = 0x4, fixed_abs, tag = 'smem constant byte address 0x4 - core index']
  #allocation1 [shape = 'u32[144,128]{1,0:T(1,128)}', space=vmem, size = 0x12000, scoped, tag = 'internal scratch']
  %s0 = inlined_call_operand.vmem [shape: f32[16,32], index: 0, kind: input, shape index: {}]
  %s1 = inlined_call_operand.vmem [shape: f32[16,1], index: 1, kind: input, shape index: {}]
  %s2 = inlined_call_operand.hbm [shape: f32[33,384], index: 2, kind: input, shape index: {}]
  %s3 = inlined_call_operand.hbm [shape: f32[145,256], index: 3, kind: input, shape index: {}]
  %s4 = inlined_call_operand.hbm [shape: f32[16,128], index: 4, kind: output, shape index: {}]
  %s5 = sld [smem:[#allocation0]]
  $region34: #{tpu_custom_call.1} parent=0
    _
  %s7 = ssub.s32 1, %s5
  %s8 = scalar_select 0, %s7, %s5
  $region1: #{tpu_custom_call.1} parent=0
    #allocation2 [shape = 'u8[61440]{0}', space=vmem, size = 0xf000, scoped, tag = 'input window, operand 2, single buffered']
    #allocation3 [shape = 's32[1]{0}', space=sflag, size = 0x4, scoped, tag = 'scoped memory for tpu_custom_call.1']
    #allocation4 [shape = 's32[1]{0}', space=sflag, size = 0x4, scoped, tag = 'scoped memory for tpu_custom_call.1']
    #allocation5 [shape = 'u8[155648]{0}', space=vmem, size = 0x26000, scoped, tag = 'input window, operand 3, single buffered']
    #allocation6 [shape = 's32[1]{0}', space=sflag, size = 0x4, scoped, tag = 'scoped memory for tpu_custom_call.1']
    #allocation7 [shape = 'u8[8192]{0}', space=vmem, size = 0x2000, scoped, tag = 'output window, operand 0, single buffered']
    %9 = vsyncpa [#allocation3], 0
    %10 = vsyncpa [#allocation6], 0
    %11 = vsyncpa [#allocation4], 0
    // Predicated region
    $region2: #{tpu_custom_call.1} parent=1 // pred_check
      _
    $region3: #{tpu_custom_call.1} parent=1 // pred_check_branch
      %13 = sbr.rel (0) target = $region5
    $region4: #{tpu_custom_call.1} parent=1 // pred_region
      _
    $region5: #{tpu_custom_call.1} parent=1 // pred_fallthru
      _
    // Predicated region
    $region6: #{tpu_custom_call.1} parent=1 // pred_check
      _
    $region7: #{tpu_custom_call.1} parent=1 // pred_check_branch
      %15 = sbr.rel (0) target = $region9
    $region8: #{tpu_custom_call.1} parent=1 // pred_region
      _
    $region9: #{tpu_custom_call.1} parent=1 // pred_fallthru
      _
    // Predicated region
    $region10: #{tpu_custom_call.1} parent=1 // pred_check
      _
    $region11: #{tpu_custom_call.1} parent=1 // pred_check_branch
      %17 = sbr.rel (0) target = $region13
    $region12: #{tpu_custom_call.1} parent=1 // pred_region
      %s19 = ssub.s32 1920, 1920
      %20 = vsyncadd [#allocation3], %s19
      %s21 = sshll.u32 [#allocation2], 4
      %s22 = int_to_ptr.vmem [resolvable:$true] %s21
      %27 = dma.hbm_to_vmem [thread:$0]  %s2, 1920, %s22, [#allocation3], 384, 384, 24
    $region13: #{tpu_custom_call.1} parent=1 // pred_fallthru
      _
    // Predicated region
    $region14: #{tpu_custom_call.1} parent=1 // pred_check
      _
    $region15: #{tpu_custom_call.1} parent=1 // pred_check_branch
      %29 = sbr.rel (0) target = $region17
    $region16: #{tpu_custom_call.1} parent=1 // pred_region
      %s31 = ssub.s32 4864, 4864
      %32 = vsyncadd [#allocation6], %s31
      %s33 = sshll.u32 [#allocation5], 4
      %s34 = int_to_ptr.vmem [resolvable:$true] %s33
      %39 = dma.hbm_to_vmem [thread:$0]  %s3, 4864, %s34, [#allocation6], 256, 256, 16
    $region17: #{tpu_custom_call.1} parent=1 // pred_fallthru
      _
    // Predicated region
    $region18: #{tpu_custom_call.1} parent=1 // pred_check
      _
    $region19: #{tpu_custom_call.1} parent=1 // pred_check_branch
      %41 = sbr.rel (0) target = $region21
    $region20: #{tpu_custom_call.1} parent=1 // pred_region
      %42 = dma.done [#allocation3], 1920
    $region21: #{tpu_custom_call.1} parent=1 // pred_fallthru
      _
    // Predicated region
    $region22: #{tpu_custom_call.1} parent=1 // pred_check
      _
    $region23: #{tpu_custom_call.1} parent=1 // pred_check_branch
      %44 = sbr.rel (0) target = $region25
    $region24: #{tpu_custom_call.1} parent=1 // pred_region
      %45 = dma.done [#allocation6], 4864
    $region25: #{tpu_custom_call.1} parent=1 // pred_fallthru
      _
    %v46 = vld [vmem:[#allocation2] sm:$0xff]
    %v47 = vld [vmem:[#allocation2 + $0x8] sm:$0xff]
    %v48 = vld [vmem:[#allocation2 + $0x10] sm:$0xff]
    %v49 = vld [vmem:[#allocation2 + $0x18] sm:$0xff]
    %v50 = vld [vmem:[#allocation2 + $0x20] sm:$0xff]
    %v51 = vld [vmem:[#allocation2 + $0x28] sm:$0xff]
    %v52 = vld [vmem:[#allocation2 + $0x30] sm:$0xff]
    %v53 = vld [vmem:[#allocation2 + $0x38] sm:$0xff]
    %v54 = vld [vmem:[#allocation2 + $0x40] sm:$0xff]
    %v55 = vld [vmem:[#allocation2 + $0x48] sm:$0xff]
    %v56 = vld [vmem:[#allocation2 + $0x50] sm:$0xff]
    %v57 = vld [vmem:[#allocation2 + $0x58] sm:$0xff]
    %s58 = scalar_lea.vmem [#allocation2], 96
    %v59 = vld [vmem:[%s58] ss:$8 sm:$0x7]
    %v60 = vld [vmem:[#allocation5] sm:$0xff]
    %v61 = vld [vmem:[#allocation5 + $0x10] sm:$0xff]
    %v62 = vld [vmem:[#allocation5 + $0x20] sm:$0xff]
    %v63 = vld [vmem:[#allocation5 + $0x30] sm:$0xff]
    %v64 = vld [vmem:[#allocation5 + $0x40] sm:$0xff]
    %v65 = vld [vmem:[#allocation5 + $0x50] sm:$0xff]
    %v66 = vld [vmem:[#allocation5 + $0x60] sm:$0xff]
    %v67 = vld [vmem:[#allocation5 + $0x70] sm:$0xff]
    %v68 = vld [vmem:[#allocation5 + $0x80] sm:$0xff]
    %v69 = vld [vmem:[#allocation5 + $0x90] sm:$0xff]
    %v70 = vld [vmem:[#allocation5 + $0xa0] sm:$0xff]
    %v71 = vld [vmem:[#allocation5 + $0xb0] sm:$0xff]
    %v72 = vld [vmem:[#allocation5 + $0xc0] sm:$0xff]
    %v73 = vld [vmem:[#allocation5 + $0xd0] sm:$0xff]
    %v74 = vld [vmem:[#allocation5 + $0xe0] sm:$0xff]
    %v75 = vld [vmem:[#allocation5 + $0xf0] sm:$0xff]
    %v76 = vld [vmem:[#allocation5 + $0x8] sm:$0xff]
    %v77 = vld [vmem:[#allocation5 + $0x18] sm:$0xff]
    %v78 = vld [vmem:[#allocation5 + $0x28] sm:$0xff]
    %v79 = vld [vmem:[#allocation5 + $0x38] sm:$0xff]
    %v80 = vld [vmem:[#allocation5 + $0x48] sm:$0xff]
    %v81 = vld [vmem:[#allocation5 + $0x58] sm:$0xff]
    %v82 = vld [vmem:[#allocation5 + $0x68] sm:$0xff]
    %v83 = vld [vmem:[#allocation5 + $0x78] sm:$0xff]
    %v84 = vld [vmem:[#allocation5 + $0x88] sm:$0xff]
    %v85 = vld [vmem:[#allocation5 + $0x98] sm:$0xff]
    %v86 = vld [vmem:[#allocation5 + $0xa8] sm:$0xff]
    %v87 = vld [vmem:[#allocation5 + $0xb8] sm:$0xff]
    %v88 = vld [vmem:[#allocation5 + $0xc8] sm:$0xff]
    %v89 = vld [vmem:[#allocation5 + $0xd8] sm:$0xff]
    %v90 = vld [vmem:[#allocation5 + $0xe8] sm:$0xff]
    %v91 = vld [vmem:[#allocation5 + $0xf8] sm:$0xff]
    %v92 = vld [vmem:[#allocation5 + $0x100] sm:$0xff]
    %v93 = vld [vmem:[#allocation5 + $0x108] sm:$0xff]
    %v94 = vld [vmem:[#allocation5 + $0x110] sm:$0xff]
    %v95 = vld [vmem:[#allocation5 + $0x118] sm:$0xff]
    %v96 = vld [vmem:[#allocation5 + $0x120] ss:$0 sm:$0xff]
    %v97 = vld [vmem:[%s0] sm:$0xff]
    %v98 = vld [vmem:[%s0 + $0x8] sm:$0xff]
    %v100 = vlaneseq
    %v101 = vshrl.u32 %v100, 7
    %v102 = vsub.s32 0, %v101
    %v103 = vrot.slane %v59, %v102
    %v104 = vlaneseq
    %v105 = vshrl.u32 %v104, 7
    %v106 = vsub.s32 1, %v105
    %v107 = vrot.slane %v59, %v106
    %v108 = vlaneseq
    %v109 = vshrl.u32 %v108, 7
    %v110 = vsub.s32 2, %v109
    %v111 = vrot.slane %v59, %v110
    %vm115 = vcmask 261120
    %v117 = vsel %vm115, %v97, 0
    %v120 = vsel %vm115, %v98, 0
    %v122 = vand.u32 %v47, 4294901760
    %123 = vmatprep.subr.mxu0 %v122
    %v124 = vand.u32 %v46, 4294901760
    %125 = vmatpush1.msra.mxu0 %v124
    %v126 = vand.u32 %v50, 4294901760
    %127 = vmatprep.subr.mxu0 %v126
    %v128 = vand.u32 %v49, 4294901760
    %129 = vmatpush1.msra.mxu0 %v128
    %v130 = vand.u32 %v53, 4294901760
    %131 = vmatprep.subr.mxu0 %v130
    %v132 = vand.u32 %v52, 4294901760
    %133 = vmatpush1.msra.mxu0 %v132
    %v134 = vand.u32 %v56, 4294901760
    %135 = vmatprep.subr.mxu0 %v134
    %v136 = vand.u32 %v55, 4294901760
    %137 = vmatpush1.msra.mxu0 %v136
    %138 = vmatprep.subr.mxu0 0.0
    %139 = vmatpush1.msra.mxu0 0.0
    %140 = vmatprep.subr.mxu0 0.0
    %141 = vmatpush1.msra.mxu0 0.0
    %142 = vmatprep.subr.mxu0 0.0
    %143 = vmatpush1.msra.mxu0 0.0
    %144 = vmatprep.subr.mxu0 0.0
    %145 = vmatpush1.msra.mxu0 0.0
    %146 = vmatprep.subr.mxu0 0.0
    %147 = vmatpush1.msra.mxu0 0.0
    %148 = vmatprep.subr.mxu0 0.0
    %149 = vmatpush1.msra.mxu0 0.0
    %150 = vmatprep.subr.mxu0 0.0
    %151 = vmatpush1.msra.mxu0 0.0
    %152 = vmatprep.subr.mxu0 0.0
    %153 = vmatpush1.msra.mxu0 0.0
    %154 = vmatprep.subr.mxu0 0.0
    %155 = vmatpush1.msra.mxu0 0.0
    %156 = vmatprep.subr.mxu0 0.0
    %157 = vmatpush1.msra.mxu0 0.0
    %158 = vmatprep.subr.mxu0 0.0
    %159 = vmatpush1.msra.mxu0 0.0
    %160 = vmatprep.subr.mxu0 0.0
    %161 = vmatpush1.msra.mxu0 0.0
    %162 = vmatprep.subr.mxu0 0.0
    %163 = vmatpush1.msra.mxu0 0.0
    %164 = vmatprep.subr.mxu0 0.0
    %165 = vmatpush1.msra.mxu0 0.0
    %166 = vmatprep.subr.mxu0 0.0
    %167 = vmatpush1.msra.mxu0 0.0
    %168 = vmatprep.subr.mxu0 0.0
    %169 = vmatpush1.msra.mxu0 0.0
    %170 = vmatprep.subr.mxu0 0.0
    %171 = vmatpush1.msra.mxu0 0.0
    %172 = vmatprep.subr.mxu0 0.0
    %173 = vmatpush1.msra.mxu0 0.0
    %174 = vmatprep.subr.mxu0 0.0
    %175 = vmatpush1.msra.mxu0 0.0
    %176 = vmatprep.subr.mxu0 0.0
    %177 = vmatpush1.msra.mxu0 0.0
    %178 = vmatprep.subr.mxu0 0.0
    %179 = vmatpush1.msra.mxu0 0.0
    %180 = vmatprep.subr.mxu0 0.0
    %181 = vmatpush1.msra.mxu0 0.0
    %182 = vmatprep.subr.mxu0 0.0
    %183 = vmatpush1.msra.mxu0 0.0
    %184 = vmatprep.subr.mxu0 0.0
    %185 = vmatpush1.msra.mxu0 0.0
    %186 = vmatprep.subr.mxu0 0.0
    %187 = vmatpush1.msra.mxu0 0.0
    %188 = vmatprep.subr.mxu0 0.0
    %189 = vmatpush1.msra.mxu0 0.0
    %190 = vmatprep.subr.mxu0 0.0
    %191 = vmatpush1.msra.mxu0 0.0
    %192 = vmatprep.subr.mxu0 0.0
    %193 = vmatpush1.msra.mxu0 0.0
    %194 = vmatprep.mubr.f32.mxu0 0.0
    %v195 = vand.u32 %v117, 4294901760
    %v196 = vsub.f32 %v117, %v195
    %v197 = vand.u32 %v196, 4294901760
    %v198 = vsub.f32 %v196, %v197
    %v199 = vand.u32 %v198, 4294901760
    %200 = vmatmul.mubr.f32.gmra.mrb[0].mxu0 %v199
    %v201 = vpop.f32.mrb[0].mxu0
    %v202 = vadd.f32 %v103, %v201
    %v203 = vpop.f32.mrb[0].mxu0
    %v204 = vadd.f32 %v107, %v203
    %205 = vmatprep.mubr.f32.mxu0 0.0
    %v206 = vand.u32 %v120, 4294901760
    %v207 = vsub.f32 %v120, %v206
    %v208 = vand.u32 %v207, 4294901760
    %v209 = vsub.f32 %v207, %v208
    %v210 = vand.u32 %v209, 4294901760
    %211 = vmatmul.mubr.f32.gmra.mrb[0].mxu0 %v210
    %v212 = vpop.f32.mrb[0].mxu0
    %v213 = vadd.f32 %v103, %v212
    %v214 = vpop.f32.mrb[0].mxu0
    %v215 = vadd.f32 %v107, %v214
    %216 = vdwg.mxu0
    %v217 = vand.u32 %v47, 4294901760
    %v218 = vsub.f32 %v47, %v217
    %v219 = vand.u32 %v218, 4294901760
    %v220 = vsub.f32 %v218, %v219
    %v221 = vand.u32 %v220, 4294901760
    %222 = vmatprep.subr.mxu0 %v221
    %v223 = vand.u32 %v46, 4294901760
    %v224 = vsub.f32 %v46, %v223
    %v225 = vand.u32 %v224, 4294901760
    %v226 = vsub.f32 %v224, %v225
    %v227 = vand.u32 %v226, 4294901760
    %228 = vmatpush1.msra.mxu0 %v227
    %v229 = vand.u32 %v50, 4294901760
    %v230 = vsub.f32 %v50, %v229
    %v231 = vand.u32 %v230, 4294901760
    %v232 = vsub.f32 %v230, %v231
    %v233 = vand.u32 %v232, 4294901760
    %234 = vmatprep.subr.mxu0 %v233
    %v235 = vand.u32 %v49, 4294901760
    %v236 = vsub.f32 %v49, %v235
    %v237 = vand.u32 %v236, 4294901760
    %v238 = vsub.f32 %v236, %v237
    %v239 = vand.u32 %v238, 4294901760
    %240 = vmatpush1.msra.mxu0 %v239
    %v241 = vand.u32 %v53, 4294901760
    %v242 = vsub.f32 %v53, %v241
    %v243 = vand.u32 %v242, 4294901760
    %v244 = vsub.f32 %v242, %v243
    %v245 = vand.u32 %v244, 4294901760
    %246 = vmatprep.subr.mxu0 %v245
    %v247 = vand.u32 %v52, 4294901760
    %v248 = vsub.f32 %v52, %v247
    %v249 = vand.u32 %v248, 4294901760
    %v250 = vsub.f32 %v248, %v249
    %v251 = vand.u32 %v250, 4294901760
    %252 = vmatpush1.msra.mxu0 %v251
    %v253 = vand.u32 %v56, 4294901760
    %v254 = vsub.f32 %v56, %v253
    %v255 = vand.u32 %v254, 4294901760
    %v256 = vsub.f32 %v254, %v255
    %v257 = vand.u32 %v256, 4294901760
    %258 = vmatprep.subr.mxu0 %v257
    %v259 = vand.u32 %v55, 4294901760
    %v260 = vsub.f32 %v55, %v259
    %v261 = vand.u32 %v260, 4294901760
    %v262 = vsub.f32 %v260, %v261
    %v263 = vand.u32 %v262, 4294901760
    %264 = vmatpush1.msra.mxu0 %v263
    %265 = vmatprep.subr.mxu0 0.0
    %266 = vmatpush1.msra.mxu0 0.0
    %267 = vmatprep.subr.mxu0 0.0
    %268 = vmatpush1.msra.mxu0 0.0
    %269 = vmatprep.subr.mxu0 0.0
    %270 = vmatpush1.msra.mxu0 0.0
    %271 = vmatprep.subr.mxu0 0.0
    %272 = vmatpush1.msra.mxu0 0.0
    %273 = vmatprep.subr.mxu0 0.0
    %274 = vmatpush1.msra.mxu0 0.0
    %275 = vmatprep.subr.mxu0 0.0
    %276 = vmatpush1.msra.mxu0 0.0
    %277 = vmatprep.subr.mxu0 0.0
    %278 = vmatpush1.msra.mxu0 0.0
    %279 = vmatprep.subr.mxu0 0.0
    %280 = vmatpush1.msra.mxu0 0.0
    %281 = vmatprep.subr.mxu0 0.0
    %282 = vmatpush1.msra.mxu0 0.0
    %283 = vmatprep.subr.mxu0 0.0
    %284 = vmatpush1.msra.mxu0 0.0
    %285 = vmatprep.subr.mxu0 0.0
    %286 = vmatpush1.msra.mxu0 0.0
    %287 = vmatprep.subr.mxu0 0.0
    %288 = vmatpush1.msra.mxu0 0.0
    %289 = vmatprep.subr.mxu0 0.0
    %290 = vmatpush1.msra.mxu0 0.0
    %291 = vmatprep.subr.mxu0 0.0
    %292 = vmatpush1.msra.mxu0 0.0
    %293 = vmatprep.subr.mxu0 0.0
    %294 = vmatpush1.msra.mxu0 0.0
    %295 = vmatprep.subr.mxu0 0.0
    %296 = vmatpush1.msra.mxu0 0.0
    %297 = vmatprep.subr.mxu0 0.0
    %298 = vmatpush1.msra.mxu0 0.0
    %299 = vmatprep.subr.mxu0 0.0
    %300 = vmatpush1.msra.mxu0 0.0
    %301 = vmatprep.subr.mxu0 0.0
    %302 = vmatpush1.msra.mxu0 0.0
    %303 = vmatprep.subr.mxu0 0.0
    %304 = vmatpush1.msra.mxu0 0.0
    %305 = vmatprep.subr.mxu0 0.0
    %306 = vmatpush1.msra.mxu0 0.0
    %307 = vmatprep.subr.mxu0 0.0
    %308 = vmatpush1.msra.mxu0 0.0
    %309 = vmatprep.subr.mxu0 0.0
    %310 = vmatpush1.msra.mxu0 0.0
    %311 = vmatprep.subr.mxu0 0.0
    %312 = vmatpush1.msra.mxu0 0.0
    %313 = vmatprep.subr.mxu0 0.0
    %314 = vmatpush1.msra.mxu0 0.0
    %315 = vmatprep.subr.mxu0 0.0
    %316 = vmatpush1.msra.mxu0 0.0
    %317 = vmatprep.subr.mxu0 0.0
    %318 = vmatpush1.msra.mxu0 0.0
    %319 = vmatprep.subr.mxu0 0.0
    %320 = vmatpush1.msra.mxu0 0.0
    %321 = vmatprep.mubr.f32.mxu0 0.0
    %v322 = vand.u32 %v117, 4294901760
    %323 = vmatmul.mubr.f32.gmra.mrb[0].mxu0 %v322
    %v324 = vpop.f32.mrb[0].mxu0
    %v325 = vadd.f32 %v202, %v324
    %v326 = vpop.f32.mrb[0].mxu0
    %v327 = vadd.f32 %v204, %v326
    %328 = vmatprep.mubr.f32.mxu0 0.0
    %v329 = vand.u32 %v120, 4294901760
    %330 = vmatmul.mubr.f32.gmra.mrb[0].mxu0 %v329
    %v331 = vpop.f32.mrb[0].mxu0
    %v332 = vadd.f32 %v213, %v331
    %v333 = vpop.f32.mrb[0].mxu0
    %v334 = vadd.f32 %v215, %v333
    %335 = vdwg.mxu0
    %v336 = vand.u32 %v47, 4294901760
    %v337 = vsub.f32 %v47, %v336
    %338 = vmatprep.subr.mxu0 %v337
    %v339 = vand.u32 %v46, 4294901760
    %v340 = vsub.f32 %v46, %v339
    %341 = vmatpush1.msra.mxu0 %v340
    %v342 = vand.u32 %v50, 4294901760
    %v343 = vsub.f32 %v50, %v342
    %344 = vmatprep.subr.mxu0 %v343
    %v345 = vand.u32 %v49, 4294901760
    %v346 = vsub.f32 %v49, %v345
    %347 = vmatpush1.msra.mxu0 %v346
    %v348 = vand.u32 %v53, 4294901760
    %v349 = vsub.f32 %v53, %v348
    %350 = vmatprep.subr.mxu0 %v349
    %v351 = vand.u32 %v52, 4294901760
    %v352 = vsub.f32 %v52, %v351
    %353 = vmatpush1.msra.mxu0 %v352
    %v354 = vand.u32 %v56, 4294901760
    %v355 = vsub.f32 %v56, %v354
    %356 = vmatprep.subr.mxu0 %v355
    %v357 = vand.u32 %v55, 4294901760
    %v358 = vsub.f32 %v55, %v357
    %359 = vmatpush1.msra.mxu0 %v358
    %360 = vmatprep.subr.mxu0 0.0
    %361 = vmatpush1.msra.mxu0 0.0
    %362 = vmatprep.subr.mxu0 0.0
    %363 = vmatpush1.msra.mxu0 0.0
    %364 = vmatprep.subr.mxu0 0.0
    %365 = vmatpush1.msra.mxu0 0.0
    %366 = vmatprep.subr.mxu0 0.0
    %367 = vmatpush1.msra.mxu0 0.0
    %368 = vmatprep.subr.mxu0 0.0
    %369 = vmatpush1.msra.mxu0 0.0
    %370 = vmatprep.subr.mxu0 0.0
    %371 = vmatpush1.msra.mxu0 0.0
    %372 = vmatprep.subr.mxu0 0.0
    %373 = vmatpush1.msra.mxu0 0.0
    %374 = vmatprep.subr.mxu0 0.0
    %375 = vmatpush1.msra.mxu0 0.0
    %376 = vmatprep.subr.mxu0 0.0
    %377 = vmatpush1.msra.mxu0 0.0
    %378 = vmatprep.subr.mxu0 0.0
    %379 = vmatpush1.msra.mxu0 0.0
    %380 = vmatprep.subr.mxu0 0.0
    %381 = vmatpush1.msra.mxu0 0.0
    %382 = vmatprep.subr.mxu0 0.0
    %383 = vmatpush1.msra.mxu0 0.0
    %384 = vmatprep.subr.mxu0 0.0
    %385 = vmatpush1.msra.mxu0 0.0
    %386 = vmatprep.subr.mxu0 0.0
    %387 = vmatpush1.msra.mxu0 0.0
    %388 = vmatprep.subr.mxu0 0.0
    %389 = vmatpush1.msra.mxu0 0.0
    %390 = vmatprep.subr.mxu0 0.0
    %391 = vmatpush1.msra.mxu0 0.0
    %392 = vmatprep.subr.mxu0 0.0
    %393 = vmatpush1.msra.mxu0 0.0
    %394 = vmatprep.subr.mxu0 0.0
    %395 = vmatpush1.msra.mxu0 0.0
    %396 = vmatprep.subr.mxu0 0.0
    %397 = vmatpush1.msra.mxu0 0.0
    %398 = vmatprep.subr.mxu0 0.0
    %399 = vmatpush1.msra.mxu0 0.0
    %400 = vmatprep.subr.mxu0 0.0
    %401 = vmatpush1.msra.mxu0 0.0
    %402 = vmatprep.subr.mxu0 0.0
    %403 = vmatpush1.msra.mxu0 0.0
    %404 = vmatprep.subr.mxu0 0.0
    %405 = vmatpush1.msra.mxu0 0.0
    %406 = vmatprep.subr.mxu0 0.0
    %407 = vmatpush1.msra.mxu0 0.0
    %408 = vmatprep.subr.mxu0 0.0
    %409 = vmatpush1.msra.mxu0 0.0
    %410 = vmatprep.subr.mxu0 0.0
    %411 = vmatpush1.msra.mxu0 0.0
    %412 = vmatprep.subr.mxu0 0.0
    %413 = vmatpush1.msra.mxu0 0.0
    %414 = vmatprep.subr.mxu0 0.0
    %415 = vmatpush1.msra.mxu0 0.0
    %416 = vmatprep.mubr.f32.mxu0 0.0
    %v417 = vand.u32 %v117, 4294901760
    %v418 = vsub.f32 %v117, %v417
    %419 = vmatmul.mubr.f32.gmra.mrb[0].mxu0 %v418
    %v420 = vpop.f32.mrb[0].mxu0
    %v421 = vadd.f32 %v325, %v420
    %v422 = vpop.f32.mrb[0].mxu0
    %v423 = vadd.f32 %v327, %v422
    %424 = vmatprep.mubr.f32.mxu0 0.0
    %v425 = vand.u32 %v120, 4294901760
    %v426 = vsub.f32 %v120, %v425
    %427 = vmatmul.mubr.f32.gmra.mrb[0].mxu0 %v426
    %v428 = vpop.f32.mrb[0].mxu0
    %v429 = vadd.f32 %v332, %v428
    %v430 = vpop.f32.mrb[0].mxu0
    %v431 = vadd.f32 %v334, %v430
    %432 = vdwg.mxu0
    %v433 = vand.u32 %v47, 4294901760
    %434 = vmatprep.subr.mxu0 %v433
    %v435 = vand.u32 %v46, 4294901760
    %436 = vmatpush1.msra.mxu0 %v435
    %v437 = vand.u32 %v50, 4294901760
    %438 = vmatprep.subr.mxu0 %v437
    %v439 = vand.u32 %v49, 4294901760
    %440 = vmatpush1.msra.mxu0 %v439
    %v441 = vand.u32 %v53, 4294901760
    %442 = vmatprep.subr.mxu0 %v441
    %v443 = vand.u32 %v52, 4294901760
    %444 = vmatpush1.msra.mxu0 %v443
    %v445 = vand.u32 %v56, 4294901760
    %446 = vmatprep.subr.mxu0 %v445
    %v447 = vand.u32 %v55, 4294901760
    %448 = vmatpush1.msra.mxu0 %v447
    %449 = vmatprep.subr.mxu0 0.0
    %450 = vmatpush1.msra.mxu0 0.0
    %451 = vmatprep.subr.mxu0 0.0
    %452 = vmatpush1.msra.mxu0 0.0
    %453 = vmatprep.subr.mxu0 0.0
    %454 = vmatpush1.msra.mxu0 0.0
    %455 = vmatprep.subr.mxu0 0.0
    %456 = vmatpush1.msra.mxu0 0.0
    %457 = vmatprep.subr.mxu0 0.0
    %458 = vmatpush1.msra.mxu0 0.0
    %459 = vmatprep.subr.mxu0 0.0
    %460 = vmatpush1.msra.mxu0 0.0
    %461 = vmatprep.subr.mxu0 0.0
    %462 = vmatpush1.msra.mxu0 0.0
    %463 = vmatprep.subr.mxu0 0.0
    %464 = vmatpush1.msra.mxu0 0.0
    %465 = vmatprep.subr.mxu0 0.0
    %466 = vmatpush1.msra.mxu0 0.0
    %467 = vmatprep.subr.mxu0 0.0
    %468 = vmatpush1.msra.mxu0 0.0
    %469 = vmatprep.subr.mxu0 0.0
    %470 = vmatpush1.msra.mxu0 0.0
    %471 = vmatprep.subr.mxu0 0.0
    %472 = vmatpush1.msra.mxu0 0.0
    %473 = vmatprep.subr.mxu0 0.0
    %474 = vmatpush1.msra.mxu0 0.0
    %475 = vmatprep.subr.mxu0 0.0
    %476 = vmatpush1.msra.mxu0 0.0
    %477 = vmatprep.subr.mxu0 0.0
    %478 = vmatpush1.msra.mxu0 0.0
    %479 = vmatprep.subr.mxu0 0.0
    %480 = vmatpush1.msra.mxu0 0.0
    %481 = vmatprep.subr.mxu0 0.0
    %482 = vmatpush1.msra.mxu0 0.0
    %483 = vmatprep.subr.mxu0 0.0
    %484 = vmatpush1.msra.mxu0 0.0
    %485 = vmatprep.subr.mxu0 0.0
    %486 = vmatpush1.msra.mxu0 0.0
    %487 = vmatprep.subr.mxu0 0.0
    %488 = vmatpush1.msra.mxu0 0.0
    %489 = vmatprep.subr.mxu0 0.0
    %490 = vmatpush1.msra.mxu0 0.0
    %491 = vmatprep.subr.mxu0 0.0
    %492 = vmatpush1.msra.mxu0 0.0
    %493 = vmatprep.subr.mxu0 0.0
    %494 = vmatpush1.msra.mxu0 0.0
    %495 = vmatprep.subr.mxu0 0.0
    %496 = vmatpush1.msra.mxu0 0.0
    %497 = vmatprep.subr.mxu0 0.0
    %498 = vmatpush1.msra.mxu0 0.0
    %499 = vmatprep.subr.mxu0 0.0
    %500 = vmatpush1.msra.mxu0 0.0
    %501 = vmatprep.subr.mxu0 0.0
    %502 = vmatpush1.msra.mxu0 0.0
    %503 = vmatprep.subr.mxu0 0.0
    %504 = vmatpush1.msra.mxu0 0.0
    %505 = vmatprep.mubr.f32.mxu0 0.0
    %v506 = vand.u32 %v117, 4294901760
    %v507 = vsub.f32 %v117, %v506
    %v508 = vand.u32 %v507, 4294901760
    %509 = vmatmul.mubr.f32.gmra.mrb[0].mxu0 %v508
    %v510 = vpop.f32.mrb[0].mxu0
    %v511 = vadd.f32 %v421, %v510
    %v512 = vpop.f32.mrb[0].mxu0
    %v513 = vadd.f32 %v423, %v512
    %514 = vmatprep.mubr.f32.mxu0 0.0
    %v515 = vand.u32 %v120, 4294901760
    %v516 = vsub.f32 %v120, %v515
    %v517 = vand.u32 %v516, 4294901760
    %518 = vmatmul.mubr.f32.gmra.mrb[0].mxu0 %v517
    %v519 = vpop.f32.mrb[0].mxu0
    %v520 = vadd.f32 %v429, %v519
    %v521 = vpop.f32.mrb[0].mxu0
    %v522 = vadd.f32 %v431, %v521
    %523 = vdwg.mxu0
    %v524 = vand.u32 %v47, 4294901760
    %v525 = vsub.f32 %v47, %v524
    %v526 = vand.u32 %v525, 4294901760
    %527 = vmatprep.subr.mxu0 %v526
    %v528 = vand.u32 %v46, 4294901760
    %v529 = vsub.f32 %v46, %v528
    %v530 = vand.u32 %v529, 4294901760
    %531 = vmatpush1.msra.mxu0 %v530
    %v532 = vand.u32 %v50, 4294901760
    %v533 = vsub.f32 %v50, %v532
    %v534 = vand.u32 %v533, 4294901760
    %535 = vmatprep.subr.mxu0 %v534
    %v536 = vand.u32 %v49, 4294901760
    %v537 = vsub.f32 %v49, %v536
    %v538 = vand.u32 %v537, 4294901760
    %539 = vmatpush1.msra.mxu0 %v538
    %v540 = vand.u32 %v53, 4294901760
    %v541 = vsub.f32 %v53, %v540
    %v542 = vand.u32 %v541, 4294901760
    %543 = vmatprep.subr.mxu0 %v542
    %v544 = vand.u32 %v52, 4294901760
    %v545 = vsub.f32 %v52, %v544
    %v546 = vand.u32 %v545, 4294901760
    %547 = vmatpush1.msra.mxu0 %v546
    %v548 = vand.u32 %v56, 4294901760
    %v549 = vsub.f32 %v56, %v548
    %v550 = vand.u32 %v549, 4294901760
    %551 = vmatprep.subr.mxu0 %v550
    %v552 = vand.u32 %v55, 4294901760
    %v553 = vsub.f32 %v55, %v552
    %v554 = vand.u32 %v553, 4294901760
    %555 = vmatpush1.msra.mxu0 %v554
    %556 = vmatprep.subr.mxu0 0.0
    %557 = vmatpush1.msra.mxu0 0.0
    %558 = vmatprep.subr.mxu0 0.0
    %559 = vmatpush1.msra.mxu0 0.0
    %560 = vmatprep.subr.mxu0 0.0
    %561 = vmatpush1.msra.mxu0 0.0
    %562 = vmatprep.subr.mxu0 0.0
    %563 = vmatpush1.msra.mxu0 0.0
    %564 = vmatprep.subr.mxu0 0.0
    %565 = vmatpush1.msra.mxu0 0.0
    %566 = vmatprep.subr.mxu0 0.0
    %567 = vmatpush1.msra.mxu0 0.0
    %568 = vmatprep.subr.mxu0 0.0
    %569 = vmatpush1.msra.mxu0 0.0
    %570 = vmatprep.subr.mxu0 0.0
    %571 = vmatpush1.msra.mxu0 0.0
    %572 = vmatprep.subr.mxu0 0.0
    %573 = vmatpush1.msra.mxu0 0.0
    %574 = vmatprep.subr.mxu0 0.0
    %575 = vmatpush1.msra.mxu0 0.0
    %576 = vmatprep.subr.mxu0 0.0
    %577 = vmatpush1.msra.mxu0 0.0
    %578 = vmatprep.subr.mxu0 0.0
    %579 = vmatpush1.msra.mxu0 0.0
    %580 = vmatprep.subr.mxu0 0.0
    %581 = vmatpush1.msra.mxu0 0.0
    %582 = vmatprep.subr.mxu0 0.0
    %583 = vmatpush1.msra.mxu0 0.0
    %584 = vmatprep.subr.mxu0 0.0
    %585 = vmatpush1.msra.mxu0 0.0
    %586 = vmatprep.subr.mxu0 0.0
    %587 = vmatpush1.msra.mxu0 0.0
    %588 = vmatprep.subr.mxu0 0.0
    %589 = vmatpush1.msra.mxu0 0.0
    %590 = vmatprep.subr.mxu0 0.0
    %591 = vmatpush1.msra.mxu0 0.0
    %592 = vmatprep.subr.mxu0 0.0
    %593 = vmatpush1.msra.mxu0 0.0
    %594 = vmatprep.subr.mxu0 0.0
    %595 = vmatpush1.msra.mxu0 0.0
    %596 = vmatprep.subr.mxu0 0.0
    %597 = vmatpush1.msra.mxu0 0.0
    %598 = vmatprep.subr.mxu0 0.0
    %599 = vmatpush1.msra.mxu0 0.0
    %600 = vmatprep.subr.mxu0 0.0
    %601 = vmatpush1.msra.mxu0 0.0
    %602 = vmatprep.subr.mxu0 0.0
    %603 = vmatpush1.msra.mxu0 0.0
    %604 = vmatprep.subr.mxu0 0.0
    %605 = vmatpush1.msra.mxu0 0.0
    %606 = vmatprep.subr.mxu0 0.0
    %607 = vmatpush1.msra.mxu0 0.0
    %608 = vmatprep.subr.mxu0 0.0
    %609 = vmatpush1.msra.mxu0 0.0
    %610 = vmatprep.subr.mxu0 0.0
    %611 = vmatpush1.msra.mxu0 0.0
    %612 = vmatprep.mubr.f32.mxu0 0.0
    %v613 = vand.u32 %v117, 4294901760
    %614 = vmatmul.mubr.f32.gmra.mrb[0].mxu0 %v613
    %v615 = vpop.f32.mrb[0].mxu0
    %v616 = vadd.f32 %v511, %v615
    %v617 = vpop.f32.mrb[0].mxu0
    %v618 = vadd.f32 %v513, %v617
    %619 = vmatprep.mubr.f32.mxu0 0.0
    %v620 = vand.u32 %v120, 4294901760
    %621 = vmatmul.mubr.f32.gmra.mrb[0].mxu0 %v620
    %v622 = vpop.f32.mrb[0].mxu0
    %v623 = vadd.f32 %v520, %v622
    %v624 = vpop.f32.mrb[0].mxu0
    %v625 = vadd.f32 %v522, %v624
    %626 = vdwg.mxu0
    %v627 = vand.u32 %v47, 4294901760
    %628 = vmatprep.subr.mxu0 %v627
    %v629 = vand.u32 %v46, 4294901760
    %630 = vmatpush1.msra.mxu0 %v629
    %v631 = vand.u32 %v50, 4294901760
    %632 = vmatprep.subr.mxu0 %v631
    %v633 = vand.u32 %v49, 4294901760
    %634 = vmatpush1.msra.mxu0 %v633
    %v635 = vand.u32 %v53, 4294901760
    %636 = vmatprep.subr.mxu0 %v635
    %v637 = vand.u32 %v52, 4294901760
    %638 = vmatpush1.msra.mxu0 %v637
    %v639 = vand.u32 %v56, 4294901760
    %640 = vmatprep.subr.mxu0 %v639
    %v641 = vand.u32 %v55, 4294901760
    %642 = vmatpush1.msra.mxu0 %v641
    %643 = vmatprep.subr.mxu0 0.0
    %644 = vmatpush1.msra.mxu0 0.0
    %645 = vmatprep.subr.mxu0 0.0
    %646 = vmatpush1.msra.mxu0 0.0
    %647 = vmatprep.subr.mxu0 0.0
    %648 = vmatpush1.msra.mxu0 0.0
    %649 = vmatprep.subr.mxu0 0.0
    %650 = vmatpush1.msra.mxu0 0.0
    %651 = vmatprep.subr.mxu0 0.0
    %652 = vmatpush1.msra.mxu0 0.0
    %653 = vmatprep.subr.mxu0 0.0
    %654 = vmatpush1.msra.mxu0 0.0
    %655 = vmatprep.subr.mxu0 0.0
    %656 = vmatpush1.msra.mxu0 0.0
    %657 = vmatprep.subr.mxu0 0.0
    %658 = vmatpush1.msra.mxu0 0.0
    %659 = vmatprep.subr.mxu0 0.0
    %660 = vmatpush1.msra.mxu0 0.0
    %661 = vmatprep.subr.mxu0 0.0
    %662 = vmatpush1.msra.mxu0 0.0
    %663 = vmatprep.subr.mxu0 0.0
    %664 = vmatpush1.msra.mxu0 0.0
    %665 = vmatprep.subr.mxu0 0.0
    %666 = vmatpush1.msra.mxu0 0.0
    %667 = vmatprep.subr.mxu0 0.0
    %668 = vmatpush1.msra.mxu0 0.0
    %669 = vmatprep.subr.mxu0 0.0
    %670 = vmatpush1.msra.mxu0 0.0
    %671 = vmatprep.subr.mxu0 0.0
    %672 = vmatpush1.msra.mxu0 0.0
    %673 = vmatprep.subr.mxu0 0.0
    %674 = vmatpush1.msra.mxu0 0.0
    %675 = vmatprep.subr.mxu0 0.0
    %676 = vmatpush1.msra.mxu0 0.0
    %677 = vmatprep.subr.mxu0 0.0
    %678 = vmatpush1.msra.mxu0 0.0
    %679 = vmatprep.subr.mxu0 0.0
    %680 = vmatpush1.msra.mxu0 0.0
    %681 = vmatprep.subr.mxu0 0.0
    %682 = vmatpush1.msra.mxu0 0.0
    %683 = vmatprep.subr.mxu0 0.0
    %684 = vmatpush1.msra.mxu0 0.0
    %685 = vmatprep.subr.mxu0 0.0
    %686 = vmatpush1.msra.mxu0 0.0
    %687 = vmatprep.subr.mxu0 0.0
    %688 = vmatpush1.msra.mxu0 0.0
    %689 = vmatprep.subr.mxu0 0.0
    %690 = vmatpush1.msra.mxu0 0.0
    %691 = vmatprep.subr.mxu0 0.0
    %692 = vmatpush1.msra.mxu0 0.0
    %693 = vmatprep.subr.mxu0 0.0
    %694 = vmatpush1.msra.mxu0 0.0
    %695 = vmatprep.subr.mxu0 0.0
    %696 = vmatpush1.msra.mxu0 0.0
    %697 = vmatprep.subr.mxu0 0.0
    %698 = vmatpush1.msra.mxu0 0.0
    %699 = vmatprep.mubr.f32.mxu0 0.0
    %v700 = vand.u32 %v117, 4294901760
    %701 = vmatmul.mubr.f32.gmra.mrb[0].mxu0 %v700
    %v702 = vpop.f32.mrb[0].mxu0
    %v703 = vadd.f32 %v616, %v702
    %v704 = vpop.f32.mrb[0].mxu0
    %v705 = vadd.f32 %v618, %v704
    %706 = vmatprep.mubr.f32.mxu0 0.0
    %v707 = vand.u32 %v120, 4294901760
    %708 = vmatmul.mubr.f32.gmra.mrb[0].mxu0 %v707
    %v709 = vpop.f32.mrb[0].mxu0
    %v710 = vadd.f32 %v623, %v709
    %v711 = vpop.f32.mrb[0].mxu0
    %v712 = vadd.f32 %v625, %v711
    %713 = vdwg.mxu0
    %714 = vmatprep.subr.mxu0 0.0
    %v715 = vand.u32 %v48, 4294901760
    %716 = vmatpush1.msra.mxu0 %v715
    %717 = vmatprep.subr.mxu0 0.0
    %v718 = vand.u32 %v51, 4294901760
    %719 = vmatpush1.msra.mxu0 %v718
    %720 = vmatprep.subr.mxu0 0.0
    %v721 = vand.u32 %v54, 4294901760
    %722 = vmatpush1.msra.mxu0 %v721
    %723 = vmatprep.subr.mxu0 0.0
    %v724 = vand.u32 %v57, 4294901760
    %725 = vmatpush1.msra.mxu0 %v724
    %726 = vmatprep.subr.mxu0 0.0
    %727 = vmatpush1.msra.mxu0 0.0
    %728 = vmatprep.subr.mxu0 0.0
    %729 = vmatpush1.msra.mxu0 0.0
    %730 = vmatprep.subr.mxu0 0.0
    %731 = vmatpush1.msra.mxu0 0.0
    %732 = vmatprep.subr.mxu0 0.0
    %733 = vmatpush1.msra.mxu0 0.0
    %734 = vmatprep.subr.mxu0 0.0
    %735 = vmatpush1.msra.mxu0 0.0
    %736 = vmatprep.subr.mxu0 0.0
    %737 = vmatpush1.msra.mxu0 0.0
    %738 = vmatprep.subr.mxu0 0.0
    %739 = vmatpush1.msra.mxu0 0.0
    %740 = vmatprep.subr.mxu0 0.0
    %741 = vmatpush1.msra.mxu0 0.0
    %742 = vmatprep.subr.mxu0 0.0
    %743 = vmatpush1.msra.mxu0 0.0
    %744 = vmatprep.subr.mxu0 0.0
    %745 = vmatpush1.msra.mxu0 0.0
    %746 = vmatprep.subr.mxu0 0.0
    %747 = vmatpush1.msra.mxu0 0.0
    %748 = vmatprep.subr.mxu0 0.0
    %749 = vmatpush1.msra.mxu0 0.0
    %750 = vmatprep.subr.mxu0 0.0
    %751 = vmatpush1.msra.mxu0 0.0
    %752 = vmatprep.subr.mxu0 0.0
    %753 = vmatpush1.msra.mxu0 0.0
    %754 = vmatprep.subr.mxu0 0.0
    %755 = vmatpush1.msra.mxu0 0.0
    %756 = vmatprep.subr.mxu0 0.0
    %757 = vmatpush1.msra.mxu0 0.0
    %758 = vmatprep.subr.mxu0 0.0
    %759 = vmatpush1.msra.mxu0 0.0
    %760 = vmatprep.subr.mxu0 0.0
    %761 = vmatpush1.msra.mxu0 0.0
    %762 = vmatprep.subr.mxu0 0.0
    %763 = vmatpush1.msra.mxu0 0.0
    %764 = vmatprep.subr.mxu0 0.0
    %765 = vmatpush1.msra.mxu0 0.0
    %766 = vmatprep.subr.mxu0 0.0
    %767 = vmatpush1.msra.mxu0 0.0
    %768 = vmatprep.subr.mxu0 0.0
    %769 = vmatpush1.msra.mxu0 0.0
    %770 = vmatprep.subr.mxu0 0.0
    %771 = vmatpush1.msra.mxu0 0.0
    %772 = vmatprep.subr.mxu0 0.0
    %773 = vmatpush1.msra.mxu0 0.0
    %774 = vmatprep.subr.mxu0 0.0
    %775 = vmatpush1.msra.mxu0 0.0
    %776 = vmatprep.subr.mxu0 0.0
    %777 = vmatpush1.msra.mxu0 0.0
    %778 = vmatprep.subr.mxu0 0.0
    %779 = vmatpush1.msra.mxu0 0.0
    %780 = vmatprep.subr.mxu0 0.0
    %781 = vmatpush1.msra.mxu0 0.0
    %782 = vmatprep.mubr.f32.mxu0 0.0
    %v783 = vand.u32 %v117, 4294901760
    %v784 = vsub.f32 %v117, %v783
    %v785 = vand.u32 %v784, 4294901760
    %v786 = vsub.f32 %v784, %v785
    %v787 = vand.u32 %v786, 4294901760
    %788 = vmatmul.mubr.f32.gmra.mrb[0].mxu0 %v787
    %v789 = vpop.f32.mrb[0].mxu0
    %v790 = vadd.f32 %v111, %v789
    %v791 = vpop.f32.mrb[0].mxu0
    %792 = vmatprep.mubr.f32.mxu0 0.0
    %v793 = vand.u32 %v120, 4294901760
    %v794 = vsub.f32 %v120, %v793
    %v795 = vand.u32 %v794, 4294901760
    %v796 = vsub.f32 %v794, %v795
    %v797 = vand.u32 %v796, 4294901760
    %798 = vmatmul.mubr.f32.gmra.mrb[0].mxu0 %v797
    %v799 = vpop.f32.mrb[0].mxu0
    %v800 = vadd.f32 %v111, %v799
    %v801 = vpop.f32.mrb[0].mxu0
    %802 = vdwg.mxu0
    %803 = vmatprep.subr.mxu0 0.0
    %v804 = vand.u32 %v48, 4294901760
    %v805 = vsub.f32 %v48, %v804
    %v806 = vand.u32 %v805, 4294901760
    %v807 = vsub.f32 %v805, %v806
    %v808 = vand.u32 %v807, 4294901760
    %809 = vmatpush1.msra.mxu0 %v808
    %810 = vmatprep.subr.mxu0 0.0
    %v811 = vand.u32 %v51, 4294901760
    %v812 = vsub.f32 %v51, %v811
    %v813 = vand.u32 %v812, 4294901760
    %v814 = vsub.f32 %v812, %v813
    %v815 = vand.u32 %v814, 4294901760
    %816 = vmatpush1.msra.mxu0 %v815
    %817 = vmatprep.subr.mxu0 0.0
    %v818 = vand.u32 %v54, 4294901760
    %v819 = vsub.f32 %v54, %v818
    %v820 = vand.u32 %v819, 4294901760
    %v821 = vsub.f32 %v819, %v820
    %v822 = vand.u32 %v821, 4294901760
    %823 = vmatpush1.msra.mxu0 %v822
    %824 = vmatprep.subr.mxu0 0.0
    %v825 = vand.u32 %v57, 4294901760
    %v826 = vsub.f32 %v57, %v825
    %v827 = vand.u32 %v826, 4294901760
    %v828 = vsub.f32 %v826, %v827
    %v829 = vand.u32 %v828, 4294901760
    %830 = vmatpush1.msra.mxu0 %v829
    %831 = vmatprep.subr.mxu0 0.0
    %832 = vmatpush1.msra.mxu0 0.0
    %833 = vmatprep.subr.mxu0 0.0
    %834 = vmatpush1.msra.mxu0 0.0
    %835 = vmatprep.subr.mxu0 0.0
    %836 = vmatpush1.msra.mxu0 0.0
    %837 = vmatprep.subr.mxu0 0.0
    %838 = vmatpush1.msra.mxu0 0.0
    %839 = vmatprep.subr.mxu0 0.0
    %840 = vmatpush1.msra.mxu0 0.0
    %841 = vmatprep.subr.mxu0 0.0
    %842 = vmatpush1.msra.mxu0 0.0
    %843 = vmatprep.subr.mxu0 0.0
    %844 = vmatpush1.msra.mxu0 0.0
    %845 = vmatprep.subr.mxu0 0.0
    %846 = vmatpush1.msra.mxu0 0.0
    %847 = vmatprep.subr.mxu0 0.0
    %848 = vmatpush1.msra.mxu0 0.0
    %849 = vmatprep.subr.mxu0 0.0
    %850 = vmatpush1.msra.mxu0 0.0
    %851 = vmatprep.subr.mxu0 0.0
    %852 = vmatpush1.msra.mxu0 0.0
    %853 = vmatprep.subr.mxu0 0.0
    %854 = vmatpush1.msra.mxu0 0.0
    %855 = vmatprep.subr.mxu0 0.0
    %856 = vmatpush1.msra.mxu0 0.0
    %857 = vmatprep.subr.mxu0 0.0
    %858 = vmatpush1.msra.mxu0 0.0
    %859 = vmatprep.subr.mxu0 0.0
    %860 = vmatpush1.msra.mxu0 0.0
    %861 = vmatprep.subr.mxu0 0.0
    %862 = vmatpush1.msra.mxu0 0.0
    %863 = vmatprep.subr.mxu0 0.0
    %864 = vmatpush1.msra.mxu0 0.0
    %865 = vmatprep.subr.mxu0 0.0
    %866 = vmatpush1.msra.mxu0 0.0
    %867 = vmatprep.subr.mxu0 0.0
    %868 = vmatpush1.msra.mxu0 0.0
    %869 = vmatprep.subr.mxu0 0.0
    %870 = vmatpush1.msra.mxu0 0.0
    %871 = vmatprep.subr.mxu0 0.0
    %872 = vmatpush1.msra.mxu0 0.0
    %873 = vmatprep.subr.mxu0 0.0
    %874 = vmatpush1.msra.mxu0 0.0
    %875 = vmatprep.subr.mxu0 0.0
    %876 = vmatpush1.msra.mxu0 0.0
    %877 = vmatprep.subr.mxu0 0.0
    %878 = vmatpush1.msra.mxu0 0.0
    %879 = vmatprep.subr.mxu0 0.0
    %880 = vmatpush1.msra.mxu0 0.0
    %881 = vmatprep.subr.mxu0 0.0
    %882 = vmatpush1.msra.mxu0 0.0
    %883 = vmatprep.subr.mxu0 0.0
    %884 = vmatpush1.msra.mxu0 0.0
    %885 = vmatprep.subr.mxu0 0.0
    %886 = vmatpush1.msra.mxu0 0.0
    %887 = vmatprep.mubr.f32.mxu0 0.0
    %v888 = vand.u32 %v117, 4294901760
    %889 = vmatmul.mubr.f32.gmra.mrb[0].mxu0 %v888
    %v890 = vpop.f32.mrb[0].mxu0
    %v891 = vadd.f32 %v790, %v890
    %v892 = vpop.f32.mrb[0].mxu0
    %893 = vmatprep.mubr.f32.mxu0 0.0
    %v894 = vand.u32 %v120, 4294901760
    %895 = vmatmul.mubr.f32.gmra.mrb[0].mxu0 %v894
    %v896 = vpop.f32.mrb[0].mxu0
    %v897 = vadd.f32 %v800, %v896
    %v898 = vpop.f32.mrb[0].mxu0
    %899 = vdwg.mxu0
    %900 = vmatprep.subr.mxu0 0.0
    %v901 = vand.u32 %v48, 4294901760
    %v902 = vsub.f32 %v48, %v901
    %903 = vmatpush1.msra.mxu0 %v902
    %904 = vmatprep.subr.mxu0 0.0
    %v905 = vand.u32 %v51, 4294901760
    %v906 = vsub.f32 %v51, %v905
    %907 = vmatpush1.msra.mxu0 %v906
    %908 = vmatprep.subr.mxu0 0.0
    %v909 = vand.u32 %v54, 4294901760
    %v910 = vsub.f32 %v54, %v909
    %911 = vmatpush1.msra.mxu0 %v910
    %912 = vmatprep.subr.mxu0 0.0
    %v913 = vand.u32 %v57, 4294901760
    %v914 = vsub.f32 %v57, %v913
    %915 = vmatpush1.msra.mxu0 %v914
    %916 = vmatprep.subr.mxu0 0.0
    %917 = vmatpush1.msra.mxu0 0.0
    %918 = vmatprep.subr.mxu0 0.0
    %919 = vmatpush1.msra.mxu0 0.0
    %920 = vmatprep.subr.mxu0 0.0
    %921 = vmatpush1.msra.mxu0 0.0
    %922 = vmatprep.subr.mxu0 0.0
    %923 = vmatpush1.msra.mxu0 0.0
    %924 = vmatprep.subr.mxu0 0.0
    %925 = vmatpush1.msra.mxu0 0.0
    %926 = vmatprep.subr.mxu0 0.0
    %927 = vmatpush1.msra.mxu0 0.0
    %928 = vmatprep.subr.mxu0 0.0
    %929 = vmatpush1.msra.mxu0 0.0
    %930 = vmatprep.subr.mxu0 0.0
    %931 = vmatpush1.msra.mxu0 0.0
    %932 = vmatprep.subr.mxu0 0.0
    %933 = vmatpush1.msra.mxu0 0.0
    %934 = vmatprep.subr.mxu0 0.0
    %935 = vmatpush1.msra.mxu0 0.0
    %936 = vmatprep.subr.mxu0 0.0
    %937 = vmatpush1.msra.mxu0 0.0
    %938 = vmatprep.subr.mxu0 0.0
    %939 = vmatpush1.msra.mxu0 0.0
    %940 = vmatprep.subr.mxu0 0.0
    %941 = vmatpush1.msra.mxu0 0.0
    %942 = vmatprep.subr.mxu0 0.0
    %943 = vmatpush1.msra.mxu0 0.0
    %944 = vmatprep.subr.mxu0 0.0
    %945 = vmatpush1.msra.mxu0 0.0
    %946 = vmatprep.subr.mxu0 0.0
    %947 = vmatpush1.msra.mxu0 0.0
    %948 = vmatprep.subr.mxu0 0.0
    %949 = vmatpush1.msra.mxu0 0.0
    %950 = vmatprep.subr.mxu0 0.0
    %951 = vmatpush1.msra.mxu0 0.0
    %952 = vmatprep.subr.mxu0 0.0
    %953 = vmatpush1.msra.mxu0 0.0
    %954 = vmatprep.subr.mxu0 0.0
    %955 = vmatpush1.msra.mxu0 0.0
    %956 = vmatprep.subr.mxu0 0.0
    %957 = vmatpush1.msra.mxu0 0.0
    %958 = vmatprep.subr.mxu0 0.0
    %959 = vmatpush1.msra.mxu0 0.0
    %960 = vmatprep.subr.mxu0 0.0
    %961 = vmatpush1.msra.mxu0 0.0
    %962 = vmatprep.subr.mxu0 0.0
    %963 = vmatpush1.msra.mxu0 0.0
    %964 = vmatprep.subr.mxu0 0.0
    %965 = vmatpush1.msra.mxu0 0.0
    %966 = vmatprep.subr.mxu0 0.0
    %967 = vmatpush1.msra.mxu0 0.0
    %968 = vmatprep.subr.mxu0 0.0
    %969 = vmatpush1.msra.mxu0 0.0
    %970 = vmatprep.subr.mxu0 0.0
    %971 = vmatpush1.msra.mxu0 0.0
    %972 = vmatprep.mubr.f32.mxu0 0.0
    %v973 = vand.u32 %v117, 4294901760
    %v974 = vsub.f32 %v117, %v973
    %975 = vmatmul.mubr.f32.gmra.mrb[0].mxu0 %v974
    %v976 = vpop.f32.mrb[0].mxu0
    %v977 = vadd.f32 %v891, %v976
    %v978 = vpop.f32.mrb[0].mxu0
    %979 = vmatprep.mubr.f32.mxu0 0.0
    %v980 = vand.u32 %v120, 4294901760
    %v981 = vsub.f32 %v120, %v980
    %982 = vmatmul.mubr.f32.gmra.mrb[0].mxu0 %v981
    %v983 = vpop.f32.mrb[0].mxu0
    %v984 = vadd.f32 %v897, %v983
    %v985 = vpop.f32.mrb[0].mxu0
    %986 = vdwg.mxu0
    %987 = vmatprep.subr.mxu0 0.0
    %v988 = vand.u32 %v48, 4294901760
    %989 = vmatpush1.msra.mxu0 %v988
    %990 = vmatprep.subr.mxu0 0.0
    %v991 = vand.u32 %v51, 4294901760
    %992 = vmatpush1.msra.mxu0 %v991
    %993 = vmatprep.subr.mxu0 0.0
    %v994 = vand.u32 %v54, 4294901760
    %995 = vmatpush1.msra.mxu0 %v994
    %996 = vmatprep.subr.mxu0 0.0
    %v997 = vand.u32 %v57, 4294901760
    %998 = vmatpush1.msra.mxu0 %v997
    %999 = vmatprep.subr.mxu0 0.0
    %1000 = vmatpush1.msra.mxu0 0.0
    %1001 = vmatprep.subr.mxu0 0.0
    %1002 = vmatpush1.msra.mxu0 0.0
    %1003 = vmatprep.subr.mxu0 0.0
    %1004 = vmatpush1.msra.mxu0 0.0
    %1005 = vmatprep.subr.mxu0 0.0
    %1006 = vmatpush1.msra.mxu0 0.0
    %1007 = vmatprep.subr.mxu0 0.0
    %1008 = vmatpush1.msra.mxu0 0.0
    %1009 = vmatprep.subr.mxu0 0.0
    %1010 = vmatpush1.msra.mxu0 0.0
    %1011 = vmatprep.subr.mxu0 0.0
    %1012 = vmatpush1.msra.mxu0 0.0
    %1013 = vmatprep.subr.mxu0 0.0
    %1014 = vmatpush1.msra.mxu0 0.0
    %1015 = vmatprep.subr.mxu0 0.0
    %1016 = vmatpush1.msra.mxu0 0.0
    %1017 = vmatprep.subr.mxu0 0.0
    %1018 = vmatpush1.msra.mxu0 0.0
    %1019 = vmatprep.subr.mxu0 0.0
    %1020 = vmatpush1.msra.mxu0 0.0
    %1021 = vmatprep.subr.mxu0 0.0
    %1022 = vmatpush1.msra.mxu0 0.0
    %1023 = vmatprep.subr.mxu0 0.0
    %1024 = vmatpush1.msra.mxu0 0.0
    %1025 = vmatprep.subr.mxu0 0.0
    %1026 = vmatpush1.msra.mxu0 0.0
    %1027 = vmatprep.subr.mxu0 0.0
    %1028 = vmatpush1.msra.mxu0 0.0
    %1029 = vmatprep.subr.mxu0 0.0
    %1030 = vmatpush1.msra.mxu0 0.0
    %1031 = vmatprep.subr.mxu0 0.0
    %1032 = vmatpush1.msra.mxu0 0.0
    %1033 = vmatprep.subr.mxu0 0.0
    %1034 = vmatpush1.msra.mxu0 0.0
    %1035 = vmatprep.subr.mxu0 0.0
    %1036 = vmatpush1.msra.mxu0 0.0
    %1037 = vmatprep.subr.mxu0 0.0
    %1038 = vmatpush1.msra.mxu0 0.0
    %1039 = vmatprep.subr.mxu0 0.0
    %1040 = vmatpush1.msra.mxu0 0.0
    %1041 = vmatprep.subr.mxu0 0.0
    %1042 = vmatpush1.msra.mxu0 0.0
    %1043 = vmatprep.subr.mxu0 0.0
    %1044 = vmatpush1.msra.mxu0 0.0
    %1045 = vmatprep.subr.mxu0 0.0
    %1046 = vmatpush1.msra.mxu0 0.0
    %1047 = vmatprep.subr.mxu0 0.0
    %1048 = vmatpush1.msra.mxu0 0.0
    %1049 = vmatprep.subr.mxu0 0.0
    %1050 = vmatpush1.msra.mxu0 0.0
    %1051 = vmatprep.subr.mxu0 0.0
    %1052 = vmatpush1.msra.mxu0 0.0
    %1053 = vmatprep.subr.mxu0 0.0
    %1054 = vmatpush1.msra.mxu0 0.0
    %1055 = vmatprep.mubr.f32.mxu0 0.0
    %v1056 = vand.u32 %v117, 4294901760
    %v1057 = vsub.f32 %v117, %v1056
    %v1058 = vand.u32 %v1057, 4294901760
    %1059 = vmatmul.mubr.f32.gmra.mrb[0].mxu0 %v1058
    %v1060 = vpop.f32.mrb[0].mxu0
    %v1061 = vadd.f32 %v977, %v1060
    %v1062 = vpop.f32.mrb[0].mxu0
    %1063 = vmatprep.mubr.f32.mxu0 0.0
    %v1064 = vand.u32 %v120, 4294901760
    %v1065 = vsub.f32 %v120, %v1064
    %v1066 = vand.u32 %v1065, 4294901760
    %1067 = vmatmul.mubr.f32.gmra.mrb[0].mxu0 %v1066
    %v1068 = vpop.f32.mrb[0].mxu0
    %v1069 = vadd.f32 %v984, %v1068
    %v1070 = vpop.f32.mrb[0].mxu0
    %1071 = vdwg.mxu0
    %1072 = vmatprep.subr.mxu0 0.0
    %v1073 = vand.u32 %v48, 4294901760
    %v1074 = vsub.f32 %v48, %v1073
    %v1075 = vand.u32 %v1074, 4294901760
    %1076 = vmatpush1.msra.mxu0 %v1075
    %1077 = vmatprep.subr.mxu0 0.0
    %v1078 = vand.u32 %v51, 4294901760
    %v1079 = vsub.f32 %v51, %v1078
    %v1080 = vand.u32 %v1079, 4294901760
    %1081 = vmatpush1.msra.mxu0 %v1080
    %1082 = vmatprep.subr.mxu0 0.0
    %v1083 = vand.u32 %v54, 4294901760
    %v1084 = vsub.f32 %v54, %v1083
    %v1085 = vand.u32 %v1084, 4294901760
    %1086 = vmatpush1.msra.mxu0 %v1085
    %1087 = vmatprep.subr.mxu0 0.0
    %v1088 = vand.u32 %v57, 4294901760
    %v1089 = vsub.f32 %v57, %v1088
    %v1090 = vand.u32 %v1089, 4294901760
    %1091 = vmatpush1.msra.mxu0 %v1090
    %1092 = vmatprep.subr.mxu0 0.0
    %1093 = vmatpush1.msra.mxu0 0.0
    %1094 = vmatprep.subr.mxu0 0.0
    %1095 = vmatpush1.msra.mxu0 0.0
    %1096 = vmatprep.subr.mxu0 0.0
    %1097 = vmatpush1.msra.mxu0 0.0
    %1098 = vmatprep.subr.mxu0 0.0
    %1099 = vmatpush1.msra.mxu0 0.0
    %1100 = vmatprep.subr.mxu0 0.0
    %1101 = vmatpush1.msra.mxu0 0.0
    %1102 = vmatprep.subr.mxu0 0.0
    %1103 = vmatpush1.msra.mxu0 0.0
    %1104 = vmatprep.subr.mxu0 0.0
    %1105 = vmatpush1.msra.mxu0 0.0
    %1106 = vmatprep.subr.mxu0 0.0
    %1107 = vmatpush1.msra.mxu0 0.0
    %1108 = vmatprep.subr.mxu0 0.0
    %1109 = vmatpush1.msra.mxu0 0.0
    %1110 = vmatprep.subr.mxu0 0.0
    %1111 = vmatpush1.msra.mxu0 0.0
    %1112 = vmatprep.subr.mxu0 0.0
    %1113 = vmatpush1.msra.mxu0 0.0
    %1114 = vmatprep.subr.mxu0 0.0
    %1115 = vmatpush1.msra.mxu0 0.0
    %1116 = vmatprep.subr.mxu0 0.0
    %1117 = vmatpush1.msra.mxu0 0.0
    %1118 = vmatprep.subr.mxu0 0.0
    %1119 = vmatpush1.msra.mxu0 0.0
    %1120 = vmatprep.subr.mxu0 0.0
    %1121 = vmatpush1.msra.mxu0 0.0
    %1122 = vmatprep.subr.mxu0 0.0
    %1123 = vmatpush1.msra.mxu0 0.0
    %1124 = vmatprep.subr.mxu0 0.0
    %1125 = vmatpush1.msra.mxu0 0.0
    %1126 = vmatprep.subr.mxu0 0.0
    %1127 = vmatpush1.msra.mxu0 0.0
    %1128 = vmatprep.subr.mxu0 0.0
    %1129 = vmatpush1.msra.mxu0 0.0
    %1130 = vmatprep.subr.mxu0 0.0
    %1131 = vmatpush1.msra.mxu0 0.0
    %1132 = vmatprep.subr.mxu0 0.0
    %1133 = vmatpush1.msra.mxu0 0.0
    %1134 = vmatprep.subr.mxu0 0.0
    %1135 = vmatpush1.msra.mxu0 0.0
    %1136 = vmatprep.subr.mxu0 0.0
    %1137 = vmatpush1.msra.mxu0 0.0
    %1138 = vmatprep.subr.mxu0 0.0
    %1139 = vmatpush1.msra.mxu0 0.0
    %1140 = vmatprep.subr.mxu0 0.0
    %1141 = vmatpush1.msra.mxu0 0.0
    %1142 = vmatprep.subr.mxu0 0.0
    %1143 = vmatpush1.msra.mxu0 0.0
    %1144 = vmatprep.subr.mxu0 0.0
    %1145 = vmatpush1.msra.mxu0 0.0
    %1146 = vmatprep.subr.mxu0 0.0
    %1147 = vmatpush1.msra.mxu0 0.0
    %1148 = vmatprep.mubr.f32.mxu0 0.0
    %v1149 = vand.u32 %v117, 4294901760
    %1150 = vmatmul.mubr.f32.gmra.mrb[0].mxu0 %v1149
    %v1151 = vpop.f32.mrb[0].mxu0
    %v1152 = vadd.f32 %v1061, %v1151
    %v1153 = vpop.f32.mrb[0].mxu0
    %1154 = vmatprep.mubr.f32.mxu0 0.0
    %v1155 = vand.u32 %v120, 4294901760
    %1156 = vmatmul.mubr.f32.gmra.mrb[0].mxu0 %v1155
    %v1157 = vpop.f32.mrb[0].mxu0
    %v1158 = vadd.f32 %v1069, %v1157
    %v1159 = vpop.f32.mrb[0].mxu0
    %1160 = vdwg.mxu0
    %1161 = vmatprep.subr.mxu0 0.0
    %v1162 = vand.u32 %v48, 4294901760
    %1163 = vmatpush1.msra.mxu0 %v1162
    %1164 = vmatprep.subr.mxu0 0.0
    %v1165 = vand.u32 %v51, 4294901760
    %1166 = vmatpush1.msra.mxu0 %v1165
    %1167 = vmatprep.subr.mxu0 0.0
    %v1168 = vand.u32 %v54, 4294901760
    %1169 = vmatpush1.msra.mxu0 %v1168
    %1170 = vmatprep.subr.mxu0 0.0
    %v1171 = vand.u32 %v57, 4294901760
    %1172 = vmatpush1.msra.mxu0 %v1171
    %1173 = vmatprep.subr.mxu0 0.0
    %1174 = vmatpush1.msra.mxu0 0.0
    %1175 = vmatprep.subr.mxu0 0.0
    %1176 = vmatpush1.msra.mxu0 0.0
    %1177 = vmatprep.subr.mxu0 0.0
    %1178 = vmatpush1.msra.mxu0 0.0
    %1179 = vmatprep.subr.mxu0 0.0
    %1180 = vmatpush1.msra.mxu0 0.0
    %1181 = vmatprep.subr.mxu0 0.0
    %1182 = vmatpush1.msra.mxu0 0.0
    %1183 = vmatprep.subr.mxu0 0.0
    %1184 = vmatpush1.msra.mxu0 0.0
    %1185 = vmatprep.subr.mxu0 0.0
    %1186 = vmatpush1.msra.mxu0 0.0
    %1187 = vmatprep.subr.mxu0 0.0
    %1188 = vmatpush1.msra.mxu0 0.0
    %1189 = vmatprep.subr.mxu0 0.0
    %1190 = vmatpush1.msra.mxu0 0.0
    %1191 = vmatprep.subr.mxu0 0.0
    %1192 = vmatpush1.msra.mxu0 0.0
    %1193 = vmatprep.subr.mxu0 0.0
    %1194 = vmatpush1.msra.mxu0 0.0
    %1195 = vmatprep.subr.mxu0 0.0
    %1196 = vmatpush1.msra.mxu0 0.0
    %1197 = vmatprep.subr.mxu0 0.0
    %1198 = vmatpush1.msra.mxu0 0.0
    %1199 = vmatprep.subr.mxu0 0.0
    %1200 = vmatpush1.msra.mxu0 0.0
    %1201 = vmatprep.subr.mxu0 0.0
    %1202 = vmatpush1.msra.mxu0 0.0
    %1203 = vmatprep.subr.mxu0 0.0
    %1204 = vmatpush1.msra.mxu0 0.0
    %1205 = vmatprep.subr.mxu0 0.0
    %1206 = vmatpush1.msra.mxu0 0.0
    %1207 = vmatprep.subr.mxu0 0.0
    %1208 = vmatpush1.msra.mxu0 0.0
    %1209 = vmatprep.subr.mxu0 0.0
    %1210 = vmatpush1.msra.mxu0 0.0
    %1211 = vmatprep.subr.mxu0 0.0
    %1212 = vmatpush1.msra.mxu0 0.0
    %1213 = vmatprep.subr.mxu0 0.0
    %1214 = vmatpush1.msra.mxu0 0.0
    %1215 = vmatprep.subr.mxu0 0.0
    %1216 = vmatpush1.msra.mxu0 0.0
    %1217 = vmatprep.subr.mxu0 0.0
    %1218 = vmatpush1.msra.mxu0 0.0
    %1219 = vmatprep.subr.mxu0 0.0
    %1220 = vmatpush1.msra.mxu0 0.0
    %1221 = vmatprep.subr.mxu0 0.0
    %1222 = vmatpush1.msra.mxu0 0.0
    %1223 = vmatprep.subr.mxu0 0.0
    %1224 = vmatpush1.msra.mxu0 0.0
    %1225 = vmatprep.subr.mxu0 0.0
    %1226 = vmatpush1.msra.mxu0 0.0
    %1227 = vmatprep.subr.mxu0 0.0
    %1228 = vmatpush1.msra.mxu0 0.0
    %1229 = vmatprep.mubr.f32.mxu0 0.0
    %v1230 = vand.u32 %v117, 4294901760
    %1231 = vmatmul.mubr.f32.gmra.mrb[0].mxu0 %v1230
    %v1232 = vpop.f32.mrb[0].mxu0
    %v1233 = vadd.f32 %v1152, %v1232
    %v1234 = vpop.f32.mrb[0].mxu0
    %1235 = vmatprep.mubr.f32.mxu0 0.0
    %v1236 = vand.u32 %v120, 4294901760
    %1237 = vmatmul.mubr.f32.gmra.mrb[0].mxu0 %v1236
    %v1238 = vpop.f32.mrb[0].mxu0
    %v1239 = vadd.f32 %v1158, %v1238
    %v1240 = vpop.f32.mrb[0].mxu0
    %1241 = vdwg.mxu0
    %v1242 = vmul.f32 %v703, %v705
    %v1243 = vmul.f32 %v710, %v712
    %1244 = vmatprep.subr.mxu0 0.0
    %v1245 = vand.u32 %v76, 4294901760
    %1246 = vmatpush1.msra.mxu0 %v1245
    %1247 = vmatprep.subr.mxu0 0.0
    %v1248 = vand.u32 %v77, 4294901760
    %1249 = vmatpush1.msra.mxu0 %v1248
    %1250 = vmatprep.subr.mxu0 0.0
    %v1251 = vand.u32 %v78, 4294901760
    %1252 = vmatpush1.msra.mxu0 %v1251
    %1253 = vmatprep.subr.mxu0 0.0
    %v1254 = vand.u32 %v79, 4294901760
    %1255 = vmatpush1.msra.mxu0 %v1254
    %1256 = vmatprep.subr.mxu0 0.0
    %v1257 = vand.u32 %v80, 4294901760
    %1258 = vmatpush1.msra.mxu0 %v1257
    %1259 = vmatprep.subr.mxu0 0.0
    %v1260 = vand.u32 %v81, 4294901760
    %1261 = vmatpush1.msra.mxu0 %v1260
    %1262 = vmatprep.subr.mxu0 0.0
    %v1263 = vand.u32 %v82, 4294901760
    %1264 = vmatpush1.msra.mxu0 %v1263
    %1265 = vmatprep.subr.mxu0 0.0
    %v1266 = vand.u32 %v83, 4294901760
    %1267 = vmatpush1.msra.mxu0 %v1266
    %1268 = vmatprep.subr.mxu0 0.0
    %v1269 = vand.u32 %v84, 4294901760
    %1270 = vmatpush1.msra.mxu0 %v1269
    %1271 = vmatprep.subr.mxu0 0.0
    %v1272 = vand.u32 %v85, 4294901760
    %1273 = vmatpush1.msra.mxu0 %v1272
    %1274 = vmatprep.subr.mxu0 0.0
    %v1275 = vand.u32 %v86, 4294901760
    %1276 = vmatpush1.msra.mxu0 %v1275
    %1277 = vmatprep.subr.mxu0 0.0
    %v1278 = vand.u32 %v87, 4294901760
    %1279 = vmatpush1.msra.mxu0 %v1278
    %1280 = vmatprep.subr.mxu0 0.0
    %v1281 = vand.u32 %v88, 4294901760
    %1282 = vmatpush1.msra.mxu0 %v1281
    %1283 = vmatprep.subr.mxu0 0.0
    %v1284 = vand.u32 %v89, 4294901760
    %1285 = vmatpush1.msra.mxu0 %v1284
    %1286 = vmatprep.subr.mxu0 0.0
    %v1287 = vand.u32 %v90, 4294901760
    %1288 = vmatpush1.msra.mxu0 %v1287
    %1289 = vmatprep.subr.mxu0 0.0
    %v1290 = vand.u32 %v91, 4294901760
    %1291 = vmatpush1.msra.mxu0 %v1290
    %1292 = vmatprep.subr.mxu0 0.0
    %1293 = vmatpush1.msra.mxu0 0.0
    %1294 = vmatprep.subr.mxu0 0.0
    %1295 = vmatpush1.msra.mxu0 0.0
    %1296 = vmatprep.subr.mxu0 0.0
    %1297 = vmatpush1.msra.mxu0 0.0
    %1298 = vmatprep.subr.mxu0 0.0
    %1299 = vmatpush1.msra.mxu0 0.0
    %1300 = vmatprep.subr.mxu0 0.0
    %1301 = vmatpush1.msra.mxu0 0.0
    %1302 = vmatprep.subr.mxu0 0.0
    %1303 = vmatpush1.msra.mxu0 0.0
    %1304 = vmatprep.subr.mxu0 0.0
    %1305 = vmatpush1.msra.mxu0 0.0
    %1306 = vmatprep.subr.mxu0 0.0
    %1307 = vmatpush1.msra.mxu0 0.0
    %1308 = vmatprep.subr.mxu0 0.0
    %1309 = vmatpush1.msra.mxu0 0.0
    %1310 = vmatprep.subr.mxu0 0.0
    %1311 = vmatpush1.msra.mxu0 0.0
    %1312 = vmatprep.subr.mxu0 0.0
    %1313 = vmatpush1.msra.mxu0 0.0
    %1314 = vmatprep.subr.mxu0 0.0
    %1315 = vmatpush1.msra.mxu0 0.0
    %1316 = vmatprep.subr.mxu0 0.0
    %1317 = vmatpush1.msra.mxu0 0.0
    %1318 = vmatprep.subr.mxu0 0.0
    %1319 = vmatpush1.msra.mxu0 0.0
    %1320 = vmatprep.subr.mxu0 0.0
    %1321 = vmatpush1.msra.mxu0 0.0
    %1322 = vmatprep.subr.mxu0 0.0
    %1323 = vmatpush1.msra.mxu0 0.0
    %1324 = vmatprep.mubr.f32.mxu0 0.0
    %v1325 = vand.u32 %v1242, 4294901760
    %v1326 = vsub.f32 %v1242, %v1325
    %v1327 = vand.u32 %v1326, 4294901760
    %v1328 = vsub.f32 %v1326, %v1327
    %v1329 = vand.u32 %v1328, 4294901760
    %1330 = vmatmul.mubr.f32.gmra.mrb[0].mxu0 %v1329
    %v1331 = vpop.f32.mrb[0].mxu0
    %v1332 = vadd.f32 0.0, %v1331
    %v1333 = vpop.f32.mrb[0].mxu0
    %1334 = vmatprep.mubr.f32.mxu0 0.0
    %v1335 = vand.u32 %v1243, 4294901760
    %v1336 = vsub.f32 %v1243, %v1335
    %v1337 = vand.u32 %v1336, 4294901760
    %v1338 = vsub.f32 %v1336, %v1337
    %v1339 = vand.u32 %v1338, 4294901760
    %1340 = vmatmul.mubr.f32.gmra.mrb[0].mxu0 %v1339
    %v1341 = vpop.f32.mrb[0].mxu0
    %v1342 = vadd.f32 0.0, %v1341
    %v1343 = vpop.f32.mrb[0].mxu0
    %1344 = vdwg.mxu0
    %1345 = vmatprep.subr.mxu0 0.0
    %v1346 = vand.u32 %v76, 4294901760
    %v1347 = vsub.f32 %v76, %v1346
    %v1348 = vand.u32 %v1347, 4294901760
    %v1349 = vsub.f32 %v1347, %v1348
    %v1350 = vand.u32 %v1349, 4294901760
    %1351 = vmatpush1.msra.mxu0 %v1350
    %1352 = vmatprep.subr.mxu0 0.0
    %v1353 = vand.u32 %v77, 4294901760
    %v1354 = vsub.f32 %v77, %v1353
    %v1355 = vand.u32 %v1354, 4294901760
    %v1356 = vsub.f32 %v1354, %v1355
    %v1357 = vand.u32 %v1356, 4294901760
    %1358 = vmatpush1.msra.mxu0 %v1357
    %1359 = vmatprep.subr.mxu0 0.0
    %v1360 = vand.u32 %v78, 4294901760
    %v1361 = vsub.f32 %v78, %v1360
    %v1362 = vand.u32 %v1361, 4294901760
    %v1363 = vsub.f32 %v1361, %v1362
    %v1364 = vand.u32 %v1363, 4294901760
    %1365 = vmatpush1.msra.mxu0 %v1364
    %1366 = vmatprep.subr.mxu0 0.0
    %v1367 = vand.u32 %v79, 4294901760
    %v1368 = vsub.f32 %v79, %v1367
    %v1369 = vand.u32 %v1368, 4294901760
    %v1370 = vsub.f32 %v1368, %v1369
    %v1371 = vand.u32 %v1370, 4294901760
    %1372 = vmatpush1.msra.mxu0 %v1371
    %1373 = vmatprep.subr.mxu0 0.0
    %v1374 = vand.u32 %v80, 4294901760
    %v1375 = vsub.f32 %v80, %v1374
    %v1376 = vand.u32 %v1375, 4294901760
    %v1377 = vsub.f32 %v1375, %v1376
    %v1378 = vand.u32 %v1377, 4294901760
    %1379 = vmatpush1.msra.mxu0 %v1378
    %1380 = vmatprep.subr.mxu0 0.0
    %v1381 = vand.u32 %v81, 4294901760
    %v1382 = vsub.f32 %v81, %v1381
    %v1383 = vand.u32 %v1382, 4294901760
    %v1384 = vsub.f32 %v1382, %v1383
    %v1385 = vand.u32 %v1384, 4294901760
    %1386 = vmatpush1.msra.mxu0 %v1385
    %1387 = vmatprep.subr.mxu0 0.0
    %v1388 = vand.u32 %v82, 4294901760
    %v1389 = vsub.f32 %v82, %v1388
    %v1390 = vand.u32 %v1389, 4294901760
    %v1391 = vsub.f32 %v1389, %v1390
    %v1392 = vand.u32 %v1391, 4294901760
    %1393 = vmatpush1.msra.mxu0 %v1392
    %1394 = vmatprep.subr.mxu0 0.0
    %v1395 = vand.u32 %v83, 4294901760
    %v1396 = vsub.f32 %v83, %v1395
    %v1397 = vand.u32 %v1396, 4294901760
    %v1398 = vsub.f32 %v1396, %v1397
    %v1399 = vand.u32 %v1398, 4294901760
    %1400 = vmatpush1.msra.mxu0 %v1399
    %1401 = vmatprep.subr.mxu0 0.0
    %v1402 = vand.u32 %v84, 4294901760
    %v1403 = vsub.f32 %v84, %v1402
    %v1404 = vand.u32 %v1403, 4294901760
    %v1405 = vsub.f32 %v1403, %v1404
    %v1406 = vand.u32 %v1405, 4294901760
    %1407 = vmatpush1.msra.mxu0 %v1406
    %1408 = vmatprep.subr.mxu0 0.0
    %v1409 = vand.u32 %v85, 4294901760
    %v1410 = vsub.f32 %v85, %v1409
    %v1411 = vand.u32 %v1410, 4294901760
    %v1412 = vsub.f32 %v1410, %v1411
    %v1413 = vand.u32 %v1412, 4294901760
    %1414 = vmatpush1.msra.mxu0 %v1413
    %1415 = vmatprep.subr.mxu0 0.0
    %v1416 = vand.u32 %v86, 4294901760
    %v1417 = vsub.f32 %v86, %v1416
    %v1418 = vand.u32 %v1417, 4294901760
    %v1419 = vsub.f32 %v1417, %v1418
    %v1420 = vand.u32 %v1419, 4294901760
    %1421 = vmatpush1.msra.mxu0 %v1420
    %1422 = vmatprep.subr.mxu0 0.0
    %v1423 = vand.u32 %v87, 4294901760
    %v1424 = vsub.f32 %v87, %v1423
    %v1425 = vand.u32 %v1424, 4294901760
    %v1426 = vsub.f32 %v1424, %v1425
    %v1427 = vand.u32 %v1426, 4294901760
    %1428 = vmatpush1.msra.mxu0 %v1427
    %1429 = vmatprep.subr.mxu0 0.0
    %v1430 = vand.u32 %v88, 4294901760
    %v1431 = vsub.f32 %v88, %v1430
    %v1432 = vand.u32 %v1431, 4294901760
    %v1433 = vsub.f32 %v1431, %v1432
    %v1434 = vand.u32 %v1433, 4294901760
    %1435 = vmatpush1.msra.mxu0 %v1434
    %1436 = vmatprep.subr.mxu0 0.0
    %v1437 = vand.u32 %v89, 4294901760
    %v1438 = vsub.f32 %v89, %v1437
    %v1439 = vand.u32 %v1438, 4294901760
    %v1440 = vsub.f32 %v1438, %v1439
    %v1441 = vand.u32 %v1440, 4294901760
    %1442 = vmatpush1.msra.mxu0 %v1441
    %1443 = vmatprep.subr.mxu0 0.0
    %v1444 = vand.u32 %v90, 4294901760
    %v1445 = vsub.f32 %v90, %v1444
    %v1446 = vand.u32 %v1445, 4294901760
    %v1447 = vsub.f32 %v1445, %v1446
    %v1448 = vand.u32 %v1447, 4294901760
    %1449 = vmatpush1.msra.mxu0 %v1448
    %1450 = vmatprep.subr.mxu0 0.0
    %v1451 = vand.u32 %v91, 4294901760
    %v1452 = vsub.f32 %v91, %v1451
    %v1453 = vand.u32 %v1452, 4294901760
    %v1454 = vsub.f32 %v1452, %v1453
    %v1455 = vand.u32 %v1454, 4294901760
    %1456 = vmatpush1.msra.mxu0 %v1455
    %1457 = vmatprep.subr.mxu0 0.0
    %1458 = vmatpush1.msra.mxu0 0.0
    %1459 = vmatprep.subr.mxu0 0.0
    %1460 = vmatpush1.msra.mxu0 0.0
    %1461 = vmatprep.subr.mxu0 0.0
    %1462 = vmatpush1.msra.mxu0 0.0
    %1463 = vmatprep.subr.mxu0 0.0
    %1464 = vmatpush1.msra.mxu0 0.0
    %1465 = vmatprep.subr.mxu0 0.0
    %1466 = vmatpush1.msra.mxu0 0.0
    %1467 = vmatprep.subr.mxu0 0.0
    %1468 = vmatpush1.msra.mxu0 0.0
    %1469 = vmatprep.subr.mxu0 0.0
    %1470 = vmatpush1.msra.mxu0 0.0
    %1471 = vmatprep.subr.mxu0 0.0
    %1472 = vmatpush1.msra.mxu0 0.0
    %1473 = vmatprep.subr.mxu0 0.0
    %1474 = vmatpush1.msra.mxu0 0.0
    %1475 = vmatprep.subr.mxu0 0.0
    %1476 = vmatpush1.msra.mxu0 0.0
    %1477 = vmatprep.subr.mxu0 0.0
    %1478 = vmatpush1.msra.mxu0 0.0
    %1479 = vmatprep.subr.mxu0 0.0
    %1480 = vmatpush1.msra.mxu0 0.0
    %1481 = vmatprep.subr.mxu0 0.0
    %1482 = vmatpush1.msra.mxu0 0.0
    %1483 = vmatprep.subr.mxu0 0.0
    %1484 = vmatpush1.msra.mxu0 0.0
    %1485 = vmatprep.subr.mxu0 0.0
    %1486 = vmatpush1.msra.mxu0 0.0
    %1487 = vmatprep.subr.mxu0 0.0
    %1488 = vmatpush1.msra.mxu0 0.0
    %1489 = vmatprep.mubr.f32.mxu0 0.0
    %v1490 = vand.u32 %v1242, 4294901760
    %1491 = vmatmul.mubr.f32.gmra.mrb[0].mxu0 %v1490
    %v1492 = vpop.f32.mrb[0].mxu0
    %v1493 = vadd.f32 %v1332, %v1492
    %v1494 = vpop.f32.mrb[0].mxu0
    %1495 = vmatprep.mubr.f32.mxu0 0.0
    %v1496 = vand.u32 %v1243, 4294901760
    %1497 = vmatmul.mubr.f32.gmra.mrb[0].mxu0 %v1496
    %v1498 = vpop.f32.mrb[0].mxu0
    %v1499 = vadd.f32 %v1342, %v1498
    %v1500 = vpop.f32.mrb[0].mxu0
    %1501 = vdwg.mxu0
    %1502 = vmatprep.subr.mxu0 0.0
    %v1503 = vand.u32 %v76, 4294901760
    %v1504 = vsub.f32 %v76, %v1503
    %1505 = vmatpush1.msra.mxu0 %v1504
    %1506 = vmatprep.subr.mxu0 0.0
    %v1507 = vand.u32 %v77, 4294901760
    %v1508 = vsub.f32 %v77, %v1507
    %1509 = vmatpush1.msra.mxu0 %v1508
    %1510 = vmatprep.subr.mxu0 0.0
    %v1511 = vand.u32 %v78, 4294901760
    %v1512 = vsub.f32 %v78, %v1511
    %1513 = vmatpush1.msra.mxu0 %v1512
    %1514 = vmatprep.subr.mxu0 0.0
    %v1515 = vand.u32 %v79, 4294901760
    %v1516 = vsub.f32 %v79, %v1515
    %1517 = vmatpush1.msra.mxu0 %v1516
    %1518 = vmatprep.subr.mxu0 0.0
    %v1519 = vand.u32 %v80, 4294901760
    %v1520 = vsub.f32 %v80, %v1519
    %1521 = vmatpush1.msra.mxu0 %v1520
    %1522 = vmatprep.subr.mxu0 0.0
    %v1523 = vand.u32 %v81, 4294901760
    %v1524 = vsub.f32 %v81, %v1523
    %1525 = vmatpush1.msra.mxu0 %v1524
    %1526 = vmatprep.subr.mxu0 0.0
    %v1527 = vand.u32 %v82, 4294901760
    %v1528 = vsub.f32 %v82, %v1527
    %1529 = vmatpush1.msra.mxu0 %v1528
    %1530 = vmatprep.subr.mxu0 0.0
    %v1531 = vand.u32 %v83, 4294901760
    %v1532 = vsub.f32 %v83, %v1531
    %1533 = vmatpush1.msra.mxu0 %v1532
    %1534 = vmatprep.subr.mxu0 0.0
    %v1535 = vand.u32 %v84, 4294901760
    %v1536 = vsub.f32 %v84, %v1535
    %1537 = vmatpush1.msra.mxu0 %v1536
    %1538 = vmatprep.subr.mxu0 0.0
    %v1539 = vand.u32 %v85, 4294901760
    %v1540 = vsub.f32 %v85, %v1539
    %1541 = vmatpush1.msra.mxu0 %v1540
    %1542 = vmatprep.subr.mxu0 0.0
    %v1543 = vand.u32 %v86, 4294901760
    %v1544 = vsub.f32 %v86, %v1543
    %1545 = vmatpush1.msra.mxu0 %v1544
    %1546 = vmatprep.subr.mxu0 0.0
    %v1547 = vand.u32 %v87, 4294901760
    %v1548 = vsub.f32 %v87, %v1547
    %1549 = vmatpush1.msra.mxu0 %v1548
    %1550 = vmatprep.subr.mxu0 0.0
    %v1551 = vand.u32 %v88, 4294901760
    %v1552 = vsub.f32 %v88, %v1551
    %1553 = vmatpush1.msra.mxu0 %v1552
    %1554 = vmatprep.subr.mxu0 0.0
    %v1555 = vand.u32 %v89, 4294901760
    %v1556 = vsub.f32 %v89, %v1555
    %1557 = vmatpush1.msra.mxu0 %v1556
    %1558 = vmatprep.subr.mxu0 0.0
    %v1559 = vand.u32 %v90, 4294901760
    %v1560 = vsub.f32 %v90, %v1559
    %1561 = vmatpush1.msra.mxu0 %v1560
    %1562 = vmatprep.subr.mxu0 0.0
    %v1563 = vand.u32 %v91, 4294901760
    %v1564 = vsub.f32 %v91, %v1563
    %1565 = vmatpush1.msra.mxu0 %v1564
    %1566 = vmatprep.subr.mxu0 0.0
    %1567 = vmatpush1.msra.mxu0 0.0
    %1568 = vmatprep.subr.mxu0 0.0
    %1569 = vmatpush1.msra.mxu0 0.0
    %1570 = vmatprep.subr.mxu0 0.0
    %1571 = vmatpush1.msra.mxu0 0.0
    %1572 = vmatprep.subr.mxu0 0.0
    %1573 = vmatpush1.msra.mxu0 0.0
    %1574 = vmatprep.subr.mxu0 0.0
    %1575 = vmatpush1.msra.mxu0 0.0
    %1576 = vmatprep.subr.mxu0 0.0
    %1577 = vmatpush1.msra.mxu0 0.0
    %1578 = vmatprep.subr.mxu0 0.0
    %1579 = vmatpush1.msra.mxu0 0.0
    %1580 = vmatprep.subr.mxu0 0.0
    %1581 = vmatpush1.msra.mxu0 0.0
    %1582 = vmatprep.subr.mxu0 0.0
    %1583 = vmatpush1.msra.mxu0 0.0
    %1584 = vmatprep.subr.mxu0 0.0
    %1585 = vmatpush1.msra.mxu0 0.0
    %1586 = vmatprep.subr.mxu0 0.0
    %1587 = vmatpush1.msra.mxu0 0.0
    %1588 = vmatprep.subr.mxu0 0.0
    %1589 = vmatpush1.msra.mxu0 0.0
    %1590 = vmatprep.subr.mxu0 0.0
    %1591 = vmatpush1.msra.mxu0 0.0
    %1592 = vmatprep.subr.mxu0 0.0
    %1593 = vmatpush1.msra.mxu0 0.0
    %1594 = vmatprep.subr.mxu0 0.0
    %1595 = vmatpush1.msra.mxu0 0.0
    %1596 = vmatprep.subr.mxu0 0.0
    %1597 = vmatpush1.msra.mxu0 0.0
    %1598 = vmatprep.mubr.f32.mxu0 0.0
    %v1599 = vand.u32 %v1242, 4294901760
    %v1600 = vsub.f32 %v1242, %v1599
    %1601 = vmatmul.mubr.f32.gmra.mrb[0].mxu0 %v1600
    %v1602 = vpop.f32.mrb[0].mxu0
    %v1603 = vadd.f32 %v1493, %v1602
    %v1604 = vpop.f32.mrb[0].mxu0
    %1605 = vmatprep.mubr.f32.mxu0 0.0
    %v1606 = vand.u32 %v1243, 4294901760
    %v1607 = vsub.f32 %v1243, %v1606
    %1608 = vmatmul.mubr.f32.gmra.mrb[0].mxu0 %v1607
    %v1609 = vpop.f32.mrb[0].mxu0
    %v1610 = vadd.f32 %v1499, %v1609
    %v1611 = vpop.f32.mrb[0].mxu0
    %1612 = vdwg.mxu0
    %1613 = vmatprep.subr.mxu0 0.0
    %v1614 = vand.u32 %v76, 4294901760
    %1615 = vmatpush1.msra.mxu0 %v1614
    %1616 = vmatprep.subr.mxu0 0.0
    %v1617 = vand.u32 %v77, 4294901760
    %1618 = vmatpush1.msra.mxu0 %v1617
    %1619 = vmatprep.subr.mxu0 0.0
    %v1620 = vand.u32 %v78, 4294901760
    %1621 = vmatpush1.msra.mxu0 %v1620
    %1622 = vmatprep.subr.mxu0 0.0
    %v1623 = vand.u32 %v79, 4294901760
    %1624 = vmatpush1.msra.mxu0 %v1623
    %1625 = vmatprep.subr.mxu0 0.0
    %v1626 = vand.u32 %v80, 4294901760
    %1627 = vmatpush1.msra.mxu0 %v1626
    %1628 = vmatprep.subr.mxu0 0.0
    %v1629 = vand.u32 %v81, 4294901760
    %1630 = vmatpush1.msra.mxu0 %v1629
    %1631 = vmatprep.subr.mxu0 0.0
    %v1632 = vand.u32 %v82, 4294901760
    %1633 = vmatpush1.msra.mxu0 %v1632
    %1634 = vmatprep.subr.mxu0 0.0
    %v1635 = vand.u32 %v83, 4294901760
    %1636 = vmatpush1.msra.mxu0 %v1635
    %1637 = vmatprep.subr.mxu0 0.0
    %v1638 = vand.u32 %v84, 4294901760
    %1639 = vmatpush1.msra.mxu0 %v1638
    %1640 = vmatprep.subr.mxu0 0.0
    %v1641 = vand.u32 %v85, 4294901760
    %1642 = vmatpush1.msra.mxu0 %v1641
    %1643 = vmatprep.subr.mxu0 0.0
    %v1644 = vand.u32 %v86, 4294901760
    %1645 = vmatpush1.msra.mxu0 %v1644
    %1646 = vmatprep.subr.mxu0 0.0
    %v1647 = vand.u32 %v87, 4294901760
    %1648 = vmatpush1.msra.mxu0 %v1647
    %1649 = vmatprep.subr.mxu0 0.0
    %v1650 = vand.u32 %v88, 4294901760
    %1651 = vmatpush1.msra.mxu0 %v1650
    %1652 = vmatprep.subr.mxu0 0.0
    %v1653 = vand.u32 %v89, 4294901760
    %1654 = vmatpush1.msra.mxu0 %v1653
    %1655 = vmatprep.subr.mxu0 0.0
    %v1656 = vand.u32 %v90, 4294901760
    %1657 = vmatpush1.msra.mxu0 %v1656
    %1658 = vmatprep.subr.mxu0 0.0
    %v1659 = vand.u32 %v91, 4294901760
    %1660 = vmatpush1.msra.mxu0 %v1659
    %1661 = vmatprep.subr.mxu0 0.0
    %1662 = vmatpush1.msra.mxu0 0.0
    %1663 = vmatprep.subr.mxu0 0.0
    %1664 = vmatpush1.msra.mxu0 0.0
    %1665 = vmatprep.subr.mxu0 0.0
    %1666 = vmatpush1.msra.mxu0 0.0
    %1667 = vmatprep.subr.mxu0 0.0
    %1668 = vmatpush1.msra.mxu0 0.0
    %1669 = vmatprep.subr.mxu0 0.0
    %1670 = vmatpush1.msra.mxu0 0.0
    %1671 = vmatprep.subr.mxu0 0.0
    %1672 = vmatpush1.msra.mxu0 0.0
    %1673 = vmatprep.subr.mxu0 0.0
    %1674 = vmatpush1.msra.mxu0 0.0
    %1675 = vmatprep.subr.mxu0 0.0
    %1676 = vmatpush1.msra.mxu0 0.0
    %1677 = vmatprep.subr.mxu0 0.0
    %1678 = vmatpush1.msra.mxu0 0.0
    %1679 = vmatprep.subr.mxu0 0.0
    %1680 = vmatpush1.msra.mxu0 0.0
    %1681 = vmatprep.subr.mxu0 0.0
    %1682 = vmatpush1.msra.mxu0 0.0
    %1683 = vmatprep.subr.mxu0 0.0
    %1684 = vmatpush1.msra.mxu0 0.0
    %1685 = vmatprep.subr.mxu0 0.0
    %1686 = vmatpush1.msra.mxu0 0.0
    %1687 = vmatprep.subr.mxu0 0.0
    %1688 = vmatpush1.msra.mxu0 0.0
    %1689 = vmatprep.subr.mxu0 0.0
    %1690 = vmatpush1.msra.mxu0 0.0
    %1691 = vmatprep.subr.mxu0 0.0
    %1692 = vmatpush1.msra.mxu0 0.0
    %1693 = vmatprep.mubr.f32.mxu0 0.0
    %v1694 = vand.u32 %v1242, 4294901760
    %v1695 = vsub.f32 %v1242, %v1694
    %v1696 = vand.u32 %v1695, 4294901760
    %1697 = vmatmul.mubr.f32.gmra.mrb[0].mxu0 %v1696
    %v1698 = vpop.f32.mrb[0].mxu0
    %v1699 = vadd.f32 %v1603, %v1698
    %v1700 = vpop.f32.mrb[0].mxu0
    %1701 = vmatprep.mubr.f32.mxu0 0.0
    %v1702 = vand.u32 %v1243, 4294901760
    %v1703 = vsub.f32 %v1243, %v1702
    %v1704 = vand.u32 %v1703, 4294901760
    %1705 = vmatmul.mubr.f32.gmra.mrb[0].mxu0 %v1704
    %v1706 = vpop.f32.mrb[0].mxu0
    %v1707 = vadd.f32 %v1610, %v1706
    %v1708 = vpop.f32.mrb[0].mxu0
    %1709 = vdwg.mxu0
    %1710 = vmatprep.subr.mxu0 0.0
    %v1711 = vand.u32 %v76, 4294901760
    %v1712 = vsub.f32 %v76, %v1711
    %v1713 = vand.u32 %v1712, 4294901760
    %1714 = vmatpush1.msra.mxu0 %v1713
    %1715 = vmatprep.subr.mxu0 0.0
    %v1716 = vand.u32 %v77, 4294901760
    %v1717 = vsub.f32 %v77, %v1716
    %v1718 = vand.u32 %v1717, 4294901760
    %1719 = vmatpush1.msra.mxu0 %v1718
    %1720 = vmatprep.subr.mxu0 0.0
    %v1721 = vand.u32 %v78, 4294901760
    %v1722 = vsub.f32 %v78, %v1721
    %v1723 = vand.u32 %v1722, 4294901760
    %1724 = vmatpush1.msra.mxu0 %v1723
    %1725 = vmatprep.subr.mxu0 0.0
    %v1726 = vand.u32 %v79, 4294901760
    %v1727 = vsub.f32 %v79, %v1726
    %v1728 = vand.u32 %v1727, 4294901760
    %1729 = vmatpush1.msra.mxu0 %v1728
    %1730 = vmatprep.subr.mxu0 0.0
    %v1731 = vand.u32 %v80, 4294901760
    %v1732 = vsub.f32 %v80, %v1731
    %v1733 = vand.u32 %v1732, 4294901760
    %1734 = vmatpush1.msra.mxu0 %v1733
    %1735 = vmatprep.subr.mxu0 0.0
    %v1736 = vand.u32 %v81, 4294901760
    %v1737 = vsub.f32 %v81, %v1736
    %v1738 = vand.u32 %v1737, 4294901760
    %1739 = vmatpush1.msra.mxu0 %v1738
    %1740 = vmatprep.subr.mxu0 0.0
    %v1741 = vand.u32 %v82, 4294901760
    %v1742 = vsub.f32 %v82, %v1741
    %v1743 = vand.u32 %v1742, 4294901760
    %1744 = vmatpush1.msra.mxu0 %v1743
    %1745 = vmatprep.subr.mxu0 0.0
    %v1746 = vand.u32 %v83, 4294901760
    %v1747 = vsub.f32 %v83, %v1746
    %v1748 = vand.u32 %v1747, 4294901760
    %1749 = vmatpush1.msra.mxu0 %v1748
    %1750 = vmatprep.subr.mxu0 0.0
    %v1751 = vand.u32 %v84, 4294901760
    %v1752 = vsub.f32 %v84, %v1751
    %v1753 = vand.u32 %v1752, 4294901760
    %1754 = vmatpush1.msra.mxu0 %v1753
    %1755 = vmatprep.subr.mxu0 0.0
    %v1756 = vand.u32 %v85, 4294901760
    %v1757 = vsub.f32 %v85, %v1756
    %v1758 = vand.u32 %v1757, 4294901760
    %1759 = vmatpush1.msra.mxu0 %v1758
    %1760 = vmatprep.subr.mxu0 0.0
    %v1761 = vand.u32 %v86, 4294901760
    %v1762 = vsub.f32 %v86, %v1761
    %v1763 = vand.u32 %v1762, 4294901760
    %1764 = vmatpush1.msra.mxu0 %v1763
    %1765 = vmatprep.subr.mxu0 0.0
    %v1766 = vand.u32 %v87, 4294901760
    %v1767 = vsub.f32 %v87, %v1766
    %v1768 = vand.u32 %v1767, 4294901760
    %1769 = vmatpush1.msra.mxu0 %v1768
    %1770 = vmatprep.subr.mxu0 0.0
    %v1771 = vand.u32 %v88, 4294901760
    %v1772 = vsub.f32 %v88, %v1771
    %v1773 = vand.u32 %v1772, 4294901760
    %1774 = vmatpush1.msra.mxu0 %v1773
    %1775 = vmatprep.subr.mxu0 0.0
    %v1776 = vand.u32 %v89, 4294901760
    %v1777 = vsub.f32 %v89, %v1776
    %v1778 = vand.u32 %v1777, 4294901760
    %1779 = vmatpush1.msra.mxu0 %v1778
    %1780 = vmatprep.subr.mxu0 0.0
    %v1781 = vand.u32 %v90, 4294901760
    %v1782 = vsub.f32 %v90, %v1781
    %v1783 = vand.u32 %v1782, 4294901760
    %1784 = vmatpush1.msra.mxu0 %v1783
    %1785 = vmatprep.subr.mxu0 0.0
    %v1786 = vand.u32 %v91, 4294901760
    %v1787 = vsub.f32 %v91, %v1786
    %v1788 = vand.u32 %v1787, 4294901760
    %1789 = vmatpush1.msra.mxu0 %v1788
    %1790 = vmatprep.subr.mxu0 0.0
    %1791 = vmatpush1.msra.mxu0 0.0
    %1792 = vmatprep.subr.mxu0 0.0
    %1793 = vmatpush1.msra.mxu0 0.0
    %1794 = vmatprep.subr.mxu0 0.0
    %1795 = vmatpush1.msra.mxu0 0.0
    %1796 = vmatprep.subr.mxu0 0.0
    %1797 = vmatpush1.msra.mxu0 0.0
    %1798 = vmatprep.subr.mxu0 0.0
    %1799 = vmatpush1.msra.mxu0 0.0
    %1800 = vmatprep.subr.mxu0 0.0
    %1801 = vmatpush1.msra.mxu0 0.0
    %1802 = vmatprep.subr.mxu0 0.0
    %1803 = vmatpush1.msra.mxu0 0.0
    %1804 = vmatprep.subr.mxu0 0.0
    %1805 = vmatpush1.msra.mxu0 0.0
    %1806 = vmatprep.subr.mxu0 0.0
    %1807 = vmatpush1.msra.mxu0 0.0
    %1808 = vmatprep.subr.mxu0 0.0
    %1809 = vmatpush1.msra.mxu0 0.0
    %1810 = vmatprep.subr.mxu0 0.0
    %1811 = vmatpush1.msra.mxu0 0.0
    %1812 = vmatprep.subr.mxu0 0.0
    %1813 = vmatpush1.msra.mxu0 0.0
    %1814 = vmatprep.subr.mxu0 0.0
    %1815 = vmatpush1.msra.mxu0 0.0
    %1816 = vmatprep.subr.mxu0 0.0
    %1817 = vmatpush1.msra.mxu0 0.0
    %1818 = vmatprep.subr.mxu0 0.0
    %1819 = vmatpush1.msra.mxu0 0.0
    %1820 = vmatprep.subr.mxu0 0.0
    %1821 = vmatpush1.msra.mxu0 0.0
    %1822 = vmatprep.mubr.f32.mxu0 0.0
    %v1823 = vand.u32 %v1242, 4294901760
    %1824 = vmatmul.mubr.f32.gmra.mrb[0].mxu0 %v1823
    %v1825 = vpop.f32.mrb[0].mxu0
    %v1826 = vadd.f32 %v1699, %v1825
    %v1827 = vpop.f32.mrb[0].mxu0
    %1828 = vmatprep.mubr.f32.mxu0 0.0
    %v1829 = vand.u32 %v1243, 4294901760
    %1830 = vmatmul.mubr.f32.gmra.mrb[0].mxu0 %v1829
    %v1831 = vpop.f32.mrb[0].mxu0
    %v1832 = vadd.f32 %v1707, %v1831
    %v1833 = vpop.f32.mrb[0].mxu0
    %1834 = vdwg.mxu0
    %1835 = vmatprep.subr.mxu0 0.0
    %v1836 = vand.u32 %v76, 4294901760
    %1837 = vmatpush1.msra.mxu0 %v1836
    %1838 = vmatprep.subr.mxu0 0.0
    %v1839 = vand.u32 %v77, 4294901760
    %1840 = vmatpush1.msra.mxu0 %v1839
    %1841 = vmatprep.subr.mxu0 0.0
    %v1842 = vand.u32 %v78, 4294901760
    %1843 = vmatpush1.msra.mxu0 %v1842
    %1844 = vmatprep.subr.mxu0 0.0
    %v1845 = vand.u32 %v79, 4294901760
    %1846 = vmatpush1.msra.mxu0 %v1845
    %1847 = vmatprep.subr.mxu0 0.0
    %v1848 = vand.u32 %v80, 4294901760
    %1849 = vmatpush1.msra.mxu0 %v1848
    %1850 = vmatprep.subr.mxu0 0.0
    %v1851 = vand.u32 %v81, 4294901760
    %1852 = vmatpush1.msra.mxu0 %v1851
    %1853 = vmatprep.subr.mxu0 0.0
    %v1854 = vand.u32 %v82, 4294901760
    %1855 = vmatpush1.msra.mxu0 %v1854
    %1856 = vmatprep.subr.mxu0 0.0
    %v1857 = vand.u32 %v83, 4294901760
    %1858 = vmatpush1.msra.mxu0 %v1857
    %1859 = vmatprep.subr.mxu0 0.0
    %v1860 = vand.u32 %v84, 4294901760
    %1861 = vmatpush1.msra.mxu0 %v1860
    %1862 = vmatprep.subr.mxu0 0.0
    %v1863 = vand.u32 %v85, 4294901760
    %1864 = vmatpush1.msra.mxu0 %v1863
    %1865 = vmatprep.subr.mxu0 0.0
    %v1866 = vand.u32 %v86, 4294901760
    %1867 = vmatpush1.msra.mxu0 %v1866
    %1868 = vmatprep.subr.mxu0 0.0
    %v1869 = vand.u32 %v87, 4294901760
    %1870 = vmatpush1.msra.mxu0 %v1869
    %1871 = vmatprep.subr.mxu0 0.0
    %v1872 = vand.u32 %v88, 4294901760
    %1873 = vmatpush1.msra.mxu0 %v1872
    %1874 = vmatprep.subr.mxu0 0.0
    %v1875 = vand.u32 %v89, 4294901760
    %1876 = vmatpush1.msra.mxu0 %v1875
    %1877 = vmatprep.subr.mxu0 0.0
    %v1878 = vand.u32 %v90, 4294901760
    %1879 = vmatpush1.msra.mxu0 %v1878
    %1880 = vmatprep.subr.mxu0 0.0
    %v1881 = vand.u32 %v91, 4294901760
    %1882 = vmatpush1.msra.mxu0 %v1881
    %1883 = vmatprep.subr.mxu0 0.0
    %1884 = vmatpush1.msra.mxu0 0.0
    %1885 = vmatprep.subr.mxu0 0.0
    %1886 = vmatpush1.msra.mxu0 0.0
    %1887 = vmatprep.subr.mxu0 0.0
    %1888 = vmatpush1.msra.mxu0 0.0
    %1889 = vmatprep.subr.mxu0 0.0
    %1890 = vmatpush1.msra.mxu0 0.0
    %1891 = vmatprep.subr.mxu0 0.0
    %1892 = vmatpush1.msra.mxu0 0.0
    %1893 = vmatprep.subr.mxu0 0.0
    %1894 = vmatpush1.msra.mxu0 0.0
    %1895 = vmatprep.subr.mxu0 0.0
    %1896 = vmatpush1.msra.mxu0 0.0
    %1897 = vmatprep.subr.mxu0 0.0
    %1898 = vmatpush1.msra.mxu0 0.0
    %1899 = vmatprep.subr.mxu0 0.0
    %1900 = vmatpush1.msra.mxu0 0.0
    %1901 = vmatprep.subr.mxu0 0.0
    %1902 = vmatpush1.msra.mxu0 0.0
    %1903 = vmatprep.subr.mxu0 0.0
    %1904 = vmatpush1.msra.mxu0 0.0
    %1905 = vmatprep.subr.mxu0 0.0
    %1906 = vmatpush1.msra.mxu0 0.0
    %1907 = vmatprep.subr.mxu0 0.0
    %1908 = vmatpush1.msra.mxu0 0.0
    %1909 = vmatprep.subr.mxu0 0.0
    %1910 = vmatpush1.msra.mxu0 0.0
    %1911 = vmatprep.subr.mxu0 0.0
    %1912 = vmatpush1.msra.mxu0 0.0
    %1913 = vmatprep.subr.mxu0 0.0
    %1914 = vmatpush1.msra.mxu0 0.0
    %1915 = vmatprep.mubr.f32.mxu0 0.0
    %v1916 = vand.u32 %v1242, 4294901760
    %1917 = vmatmul.mubr.f32.gmra.mrb[0].mxu0 %v1916
    %v1918 = vpop.f32.mrb[0].mxu0
    %v1919 = vadd.f32 %v1826, %v1918
    %v1920 = vpop.f32.mrb[0].mxu0
    %1921 = vmatprep.mubr.f32.mxu0 0.0
    %v1922 = vand.u32 %v1243, 4294901760
    %1923 = vmatmul.mubr.f32.gmra.mrb[0].mxu0 %v1922
    %v1924 = vpop.f32.mrb[0].mxu0
    %v1925 = vadd.f32 %v1832, %v1924
    %v1926 = vpop.f32.mrb[0].mxu0
    %1927 = vdwg.mxu0
    %v1928 = vld [vmem:[%s1] sm:$0xff]
    %v1929 = vld [vmem:[%s1 + $0x8] sm:$0xff]
    %vm1930 = vcmp.eq.f32.partialorder %v1928, 0.0
    %vm1931 = vcmp.eq.f32.partialorder %v1929, 0.0
    %v1932 = vsel %vm1930, 1, 0
    %v1933 = vsel %vm1931, 1, 0
    %v1934 = vcvt.s32.f32 %v1932
    %v1935 = vcvt.s32.f32 %v1933
    %vm1936 = vcmp.gt.f32.partialorder %v1934, 0.5
    %vm1937 = vcmp.gt.f32.partialorder %v1935, 0.5
    %v1938 = vsel %vm1936, 1, 0
    %v1939 = vsel %vm1937, 1, 0
    %1940 = vset.pattern.permute.xlu0 0
    %1941 = vperm.xlu0 %1940, %v1938
    %v1942 = vpop.permute.xlu0 %1941
    %1943 = vset.pattern.permute.xlu0 0
    %1944 = vperm.xlu0 %1943, %v1939
    %v1945 = vpop.permute.xlu0 %1944
    %vm1946 = vcmp.eq.s32.totalorder %v1942, 1
    %vm1947 = vcmp.eq.s32.totalorder %v1945, 1
    %v1948 = vsel %vm1946, %v1919, -3e+38
    %v1949 = vsel %vm1947, %v1925, -3e+38
    %vm1950 = vcmask 130048
    %v1951 = vsel %vm1950, %v1948, -inf
    %v1952 = vsel %vm1950, %v1949, -inf
    %v1953 = vmax.f32 %v1951, %v1952
    %v1954 = vrot.slane %v1953, 4
    %v1955 = vmax.f32 %v1953, %v1954
    %v1956 = vrot.slane %v1955, 2
    %v1957 = vmax.f32 %v1955, %v1956
    %v1958 = vrot.slane %v1957, 1
    %v1959 = vmax.f32 %v1957, %v1958
    %1961 = vset.pattern.permute.xlu0 0
    %1962 = vperm.xlu0 %1961, %v1934
    %v1963 = vpop.permute.xlu0 %1962
    %1966 = vset.pattern.permute.xlu0 0
    %1967 = vperm.xlu0 %1966, %v1935
    %v1968 = vpop.permute.xlu0 %1967
    %v1970 = vmul.f32 %v1963, %v1959
    %v1971 = vmul.f32 %v1968, %v1959
    %v1972 = vadd.f32 %v1970, 0.0
    %v1973 = vadd.f32 %v1971, 0.0
    %vm1974 = vcmp.eq.f32.partialorder %v1928, 1.0
    %vm1975 = vcmp.eq.f32.partialorder %v1929, 1.0
    %v1976 = vsel %vm1974, 1, 0
    %v1977 = vsel %vm1975, 1, 0
    %v1978 = vcvt.s32.f32 %v1976
    %v1979 = vcvt.s32.f32 %v1977
    %vm1980 = vcmp.gt.f32.partialorder %v1978, 0.5
    %vm1981 = vcmp.gt.f32.partialorder %v1979, 0.5
    %v1982 = vsel %vm1980, 1, 0
    %v1983 = vsel %vm1981, 1, 0
    %1984 = vset.pattern.permute.xlu0 0
    %1985 = vperm.xlu0 %1984, %v1982
    %v1986 = vpop.permute.xlu0 %1985
    %1987 = vset.pattern.permute.xlu0 0
    %1988 = vperm.xlu0 %1987, %v1983
    %v1989 = vpop.permute.xlu0 %1988
    %vm1990 = vcmp.eq.s32.totalorder %v1986, 1
    %vm1991 = vcmp.eq.s32.totalorder %v1989, 1
    %v1992 = vsel %vm1990, %v1919, -3e+38
    %v1993 = vsel %vm1991, %v1925, -3e+38
    %v1994 = vsel %vm1950, %v1992, -inf
    %v1995 = vsel %vm1950, %v1993, -inf
    %v1996 = vmax.f32 %v1994, %v1995
    %v1997 = vrot.slane %v1996, 4
    %v1998 = vmax.f32 %v1996, %v1997
    %v1999 = vrot.slane %v1998, 2
    %v2000 = vmax.f32 %v1998, %v1999
    %v2001 = vrot.slane %v2000, 1
    %v2002 = vmax.f32 %v2000, %v2001
    %2004 = vset.pattern.permute.xlu0 0
    %2005 = vperm.xlu0 %2004, %v1978
    %v2006 = vpop.permute.xlu0 %2005
    %2009 = vset.pattern.permute.xlu0 0
    %2010 = vperm.xlu0 %2009, %v1979
    %v2011 = vpop.permute.xlu0 %2010
    %v2013 = vmul.f32 %v2006, %v2002
    %v2014 = vmul.f32 %v2011, %v2002
    %v2015 = vadd.f32 %v1972, %v2013
    %v2016 = vadd.f32 %v1973, %v2014
    %v2017 = vsub.f32 %v1919, %v2015
    %v2018 = vsub.f32 %v1925, %v2016
    %v2019 = vmul.f32 %v2017, 1.442695
    %v2020 = vpow.pop %v2019
    %v2021 = vmul.f32 %v2018, 1.442695
    %v2022 = vpow.pop %v2021
    %v2023 = vmul.f32 %v2020, %v1963
    %v2024 = vmul.f32 %v2022, %v1968
    %v2025 = vsel %vm1950, %v2023, 0.0
    %v2026 = vsel %vm1950, %v2024, 0.0
    %v2027 = vadd.f32 %v2025, %v2026
    %v2028 = vrot.slane %v2027, 4
    %v2029 = vadd.f32 %v2027, %v2028
    %v2030 = vrot.slane %v2029, 2
    %v2031 = vadd.f32 %v2029, %v2030
    %v2032 = vrot.slane %v2031, 1
    %v2033 = vadd.f32 %v2031, %v2032
    %v2034 = vmul.f32 %v1963, %v2033
    %v2035 = vmul.f32 %v1968, %v2033
    %v2036 = vadd.f32 %v2034, 0.0
    %v2037 = vadd.f32 %v2035, 0.0
    %v2038 = vmul.f32 %v2020, %v2006
    %v2039 = vmul.f32 %v2022, %v2011
    %v2040 = vsel %vm1950, %v2038, 0.0
    %v2041 = vsel %vm1950, %v2039, 0.0
    %v2042 = vadd.f32 %v2040, %v2041
    %v2043 = vrot.slane %v2042, 4
    %v2044 = vadd.f32 %v2042, %v2043
    %v2045 = vrot.slane %v2044, 2
    %v2046 = vadd.f32 %v2044, %v2045
    %v2047 = vrot.slane %v2046, 1
    %v2048 = vadd.f32 %v2046, %v2047
    %v2049 = vmul.f32 %v2006, %v2048
    %v2050 = vmul.f32 %v2011, %v2048
    %v2051 = vadd.f32 %v2036, %v2049
    %v2052 = vadd.f32 %v2037, %v2050
    %v2053 = vadd.f32 %v2051, 1e-16
    %v2054 = vadd.f32 %v2052, 1e-16
    %v2055 = vrcp.pop %v2053
    %v2056 = vmul.f32 %v2020, %v2055
    %v2057 = vrcp.pop %v2054
    %v2058 = vmul.f32 %v2022, %v2057
    %v2060 = vsel %vm1950, %v2056, 0
    %v2063 = vsel %vm1950, %v2058, 0
    %v2065 = vand.u32 %v93, 4294901760
    %2066 = vmatprep.subr.mxu0 %v2065
    %v2067 = vand.u32 %v92, 4294901760
    %2068 = vmatpush1.msra.mxu0 %v2067
    %v2069 = vand.u32 %v95, 4294901760
    %2070 = vmatprep.subr.mxu0 %v2069
    %v2071 = vand.u32 %v94, 4294901760
    %2072 = vmatpush1.msra.mxu0 %v2071
    %2073 = vmatprep.subr.mxu0 0.0
    %2074 = vmatpush1.msra.mxu0 0.0
    %2075 = vmatprep.subr.mxu0 0.0
    %2076 = vmatpush1.msra.mxu0 0.0
    %2077 = vmatprep.subr.mxu0 0.0
    %2078 = vmatpush1.msra.mxu0 0.0
    %2079 = vmatprep.subr.mxu0 0.0
    %2080 = vmatpush1.msra.mxu0 0.0
    %2081 = vmatprep.subr.mxu0 0.0
    %2082 = vmatpush1.msra.mxu0 0.0
    %2083 = vmatprep.subr.mxu0 0.0
    %2084 = vmatpush1.msra.mxu0 0.0
    %2085 = vmatprep.subr.mxu0 0.0
    %2086 = vmatpush1.msra.mxu0 0.0
    %2087 = vmatprep.subr.mxu0 0.0
    %2088 = vmatpush1.msra.mxu0 0.0
    %2089 = vmatprep.subr.mxu0 0.0
    %2090 = vmatpush1.msra.mxu0 0.0
    %2091 = vmatprep.subr.mxu0 0.0
    %2092 = vmatpush1.msra.mxu0 0.0
    %2093 = vmatprep.subr.mxu0 0.0
    %2094 = vmatpush1.msra.mxu0 0.0
    %2095 = vmatprep.subr.mxu0 0.0
    %2096 = vmatpush1.msra.mxu0 0.0
    %2097 = vmatprep.subr.mxu0 0.0
    %2098 = vmatpush1.msra.mxu0 0.0
    %2099 = vmatprep.subr.mxu0 0.0
    %2100 = vmatpush1.msra.mxu0 0.0
    %2101 = vmatprep.subr.mxu0 0.0
    %2102 = vmatpush1.msra.mxu0 0.0
    %2103 = vmatprep.subr.mxu0 0.0
    %2104 = vmatpush1.msra.mxu0 0.0
    %2105 = vmatprep.subr.mxu0 0.0
    %2106 = vmatpush1.msra.mxu0 0.0
    %2107 = vmatprep.subr.mxu0 0.0
    %2108 = vmatpush1.msra.mxu0 0.0
    %2109 = vmatprep.subr.mxu0 0.0
    %2110 = vmatpush1.msra.mxu0 0.0
    %2111 = vmatprep.subr.mxu0 0.0
    %2112 = vmatpush1.msra.mxu0 0.0
    %2113 = vmatprep.subr.mxu0 0.0
    %2114 = vmatpush1.msra.mxu0 0.0
    %2115 = vmatprep.subr.mxu0 0.0
    %2116 = vmatpush1.msra.mxu0 0.0
    %2117 = vmatprep.subr.mxu0 0.0
    %2118 = vmatpush1.msra.mxu0 0.0
    %2119 = vmatprep.subr.mxu0 0.0
    %2120 = vmatpush1.msra.mxu0 0.0
    %2121 = vmatprep.subr.mxu0 0.0
    %2122 = vmatpush1.msra.mxu0 0.0
    %2123 = vmatprep.subr.mxu0 0.0
    %2124 = vmatpush1.msra.mxu0 0.0
    %2125 = vmatprep.subr.mxu0 0.0
    %2126 = vmatpush1.msra.mxu0 0.0
    %2127 = vmatprep.subr.mxu0 0.0
    %2128 = vmatpush1.msra.mxu0 0.0
    %2129 = vmatprep.subr.mxu0 0.0
    %2130 = vmatpush1.msra.mxu0 0.0
    %2131 = vmatprep.subr.mxu0 0.0
    %2132 = vmatpush1.msra.mxu0 0.0
    %2133 = vmatprep.mubr.f32.mxu0 0.0
    %v2134 = vand.u32 %v2060, 4294901760
    %v2135 = vsub.f32 %v2060, %v2134
    %v2136 = vand.u32 %v2135, 4294901760
    %v2137 = vsub.f32 %v2135, %v2136
    %v2138 = vand.u32 %v2137, 4294901760
    %2139 = vmatmul.mubr.f32.gmra.mrb[0].mxu0 %v2138
    %v2140 = vpop.f32.mrb[0].mxu0
    %v2141 = vadd.f32 0.0, %v2140
    %v2142 = vpop.f32.mrb[0].mxu0
    %v2143 = vadd.f32 0.0, %v2142
    %2144 = vmatprep.mubr.f32.mxu0 0.0
    %v2145 = vand.u32 %v2063, 4294901760
    %v2146 = vsub.f32 %v2063, %v2145
    %v2147 = vand.u32 %v2146, 4294901760
    %v2148 = vsub.f32 %v2146, %v2147
    %v2149 = vand.u32 %v2148, 4294901760
    %2150 = vmatmul.mubr.f32.gmra.mrb[0].mxu0 %v2149
    %v2151 = vpop.f32.mrb[0].mxu0
    %v2152 = vadd.f32 0.0, %v2151
    %v2153 = vpop.f32.mrb[0].mxu0
    %v2154 = vadd.f32 0.0, %v2153
    %2155 = vdwg.mxu0
    %v2156 = vand.u32 %v93, 4294901760
    %v2157 = vsub.f32 %v93, %v2156
    %v2158 = vand.u32 %v2157, 4294901760
    %v2159 = vsub.f32 %v2157, %v2158
    %v2160 = vand.u32 %v2159, 4294901760
    %2161 = vmatprep.subr.mxu0 %v2160
    %v2162 = vand.u32 %v92, 4294901760
    %v2163 = vsub.f32 %v92, %v2162
    %v2164 = vand.u32 %v2163, 4294901760
    %v2165 = vsub.f32 %v2163, %v2164
    %v2166 = vand.u32 %v2165, 4294901760
    %2167 = vmatpush1.msra.mxu0 %v2166
    %v2168 = vand.u32 %v95, 4294901760
    %v2169 = vsub.f32 %v95, %v2168
    %v2170 = vand.u32 %v2169, 4294901760
    %v2171 = vsub.f32 %v2169, %v2170
    %v2172 = vand.u32 %v2171, 4294901760
    %2173 = vmatprep.subr.mxu0 %v2172
    %v2174 = vand.u32 %v94, 4294901760
    %v2175 = vsub.f32 %v94, %v2174
    %v2176 = vand.u32 %v2175, 4294901760
    %v2177 = vsub.f32 %v2175, %v2176
    %v2178 = vand.u32 %v2177, 4294901760
    %2179 = vmatpush1.msra.mxu0 %v2178
    %2180 = vmatprep.subr.mxu0 0.0
    %2181 = vmatpush1.msra.mxu0 0.0
    %2182 = vmatprep.subr.mxu0 0.0
    %2183 = vmatpush1.msra.mxu0 0.0
    %2184 = vmatprep.subr.mxu0 0.0
    %2185 = vmatpush1.msra.mxu0 0.0
    %2186 = vmatprep.subr.mxu0 0.0
    %2187 = vmatpush1.msra.mxu0 0.0
    %2188 = vmatprep.subr.mxu0 0.0
    %2189 = vmatpush1.msra.mxu0 0.0
    %2190 = vmatprep.subr.mxu0 0.0
    %2191 = vmatpush1.msra.mxu0 0.0
    %2192 = vmatprep.subr.mxu0 0.0
    %2193 = vmatpush1.msra.mxu0 0.0
    %2194 = vmatprep.subr.mxu0 0.0
    %2195 = vmatpush1.msra.mxu0 0.0
    %2196 = vmatprep.subr.mxu0 0.0
    %2197 = vmatpush1.msra.mxu0 0.0
    %2198 = vmatprep.subr.mxu0 0.0
    %2199 = vmatpush1.msra.mxu0 0.0
    %2200 = vmatprep.subr.mxu0 0.0
    %2201 = vmatpush1.msra.mxu0 0.0
    %2202 = vmatprep.subr.mxu0 0.0
    %2203 = vmatpush1.msra.mxu0 0.0
    %2204 = vmatprep.subr.mxu0 0.0
    %2205 = vmatpush1.msra.mxu0 0.0
    %2206 = vmatprep.subr.mxu0 0.0
    %2207 = vmatpush1.msra.mxu0 0.0
    %2208 = vmatprep.subr.mxu0 0.0
    %2209 = vmatpush1.msra.mxu0 0.0
    %2210 = vmatprep.subr.mxu0 0.0
    %2211 = vmatpush1.msra.mxu0 0.0
    %2212 = vmatprep.subr.mxu0 0.0
    %2213 = vmatpush1.msra.mxu0 0.0
    %2214 = vmatprep.subr.mxu0 0.0
    %2215 = vmatpush1.msra.mxu0 0.0
    %2216 = vmatprep.subr.mxu0 0.0
    %2217 = vmatpush1.msra.mxu0 0.0
    %2218 = vmatprep.subr.mxu0 0.0
    %2219 = vmatpush1.msra.mxu0 0.0
    %2220 = vmatprep.subr.mxu0 0.0
    %2221 = vmatpush1.msra.mxu0 0.0
    %2222 = vmatprep.subr.mxu0 0.0
    %2223 = vmatpush1.msra.mxu0 0.0
    %2224 = vmatprep.subr.mxu0 0.0
    %2225 = vmatpush1.msra.mxu0 0.0
    %2226 = vmatprep.subr.mxu0 0.0
    %2227 = vmatpush1.msra.mxu0 0.0
    %2228 = vmatprep.subr.mxu0 0.0
    %2229 = vmatpush1.msra.mxu0 0.0
    %2230 = vmatprep.subr.mxu0 0.0
    %2231 = vmatpush1.msra.mxu0 0.0
    %2232 = vmatprep.subr.mxu0 0.0
    %2233 = vmatpush1.msra.mxu0 0.0
    %2234 = vmatprep.subr.mxu0 0.0
    %2235 = vmatpush1.msra.mxu0 0.0
    %2236 = vmatprep.subr.mxu0 0.0
    %2237 = vmatpush1.msra.mxu0 0.0
    %2238 = vmatprep.subr.mxu0 0.0
    %2239 = vmatpush1.msra.mxu0 0.0
    %2240 = vmatprep.mubr.f32.mxu0 0.0
    %v2241 = vand.u32 %v2060, 4294901760
    %2242 = vmatmul.mubr.f32.gmra.mrb[0].mxu0 %v2241
    %v2243 = vpop.f32.mrb[0].mxu0
    %v2244 = vadd.f32 %v2141, %v2243
    %v2245 = vpop.f32.mrb[0].mxu0
    %v2246 = vadd.f32 %v2143, %v2245
    %2247 = vmatprep.mubr.f32.mxu0 0.0
    %v2248 = vand.u32 %v2063, 4294901760
    %2249 = vmatmul.mubr.f32.gmra.mrb[0].mxu0 %v2248
    %v2250 = vpop.f32.mrb[0].mxu0
    %v2251 = vadd.f32 %v2152, %v2250
    %v2252 = vpop.f32.mrb[0].mxu0
    %v2253 = vadd.f32 %v2154, %v2252
    %2254 = vdwg.mxu0
    %v2255 = vand.u32 %v93, 4294901760
    %v2256 = vsub.f32 %v93, %v2255
    %2257 = vmatprep.subr.mxu0 %v2256
    %v2258 = vand.u32 %v92, 4294901760
    %v2259 = vsub.f32 %v92, %v2258
    %2260 = vmatpush1.msra.mxu0 %v2259
    %v2261 = vand.u32 %v95, 4294901760
    %v2262 = vsub.f32 %v95, %v2261
    %2263 = vmatprep.subr.mxu0 %v2262
    %v2264 = vand.u32 %v94, 4294901760
    %v2265 = vsub.f32 %v94, %v2264
    %2266 = vmatpush1.msra.mxu0 %v2265
    %2267 = vmatprep.subr.mxu0 0.0
    %2268 = vmatpush1.msra.mxu0 0.0
    %2269 = vmatprep.subr.mxu0 0.0
    %2270 = vmatpush1.msra.mxu0 0.0
    %2271 = vmatprep.subr.mxu0 0.0
    %2272 = vmatpush1.msra.mxu0 0.0
    %2273 = vmatprep.subr.mxu0 0.0
    %2274 = vmatpush1.msra.mxu0 0.0
    %2275 = vmatprep.subr.mxu0 0.0
    %2276 = vmatpush1.msra.mxu0 0.0
    %2277 = vmatprep.subr.mxu0 0.0
    %2278 = vmatpush1.msra.mxu0 0.0
    %2279 = vmatprep.subr.mxu0 0.0
    %2280 = vmatpush1.msra.mxu0 0.0
    %2281 = vmatprep.subr.mxu0 0.0
    %2282 = vmatpush1.msra.mxu0 0.0
    %2283 = vmatprep.subr.mxu0 0.0
    %2284 = vmatpush1.msra.mxu0 0.0
    %2285 = vmatprep.subr.mxu0 0.0
    %2286 = vmatpush1.msra.mxu0 0.0
    %2287 = vmatprep.subr.mxu0 0.0
    %2288 = vmatpush1.msra.mxu0 0.0
    %2289 = vmatprep.subr.mxu0 0.0
    %2290 = vmatpush1.msra.mxu0 0.0
    %2291 = vmatprep.subr.mxu0 0.0
    %2292 = vmatpush1.msra.mxu0 0.0
    %2293 = vmatprep.subr.mxu0 0.0
    %2294 = vmatpush1.msra.mxu0 0.0
    %2295 = vmatprep.subr.mxu0 0.0
    %2296 = vmatpush1.msra.mxu0 0.0
    %2297 = vmatprep.subr.mxu0 0.0
    %2298 = vmatpush1.msra.mxu0 0.0
    %2299 = vmatprep.subr.mxu0 0.0
    %2300 = vmatpush1.msra.mxu0 0.0
    %2301 = vmatprep.subr.mxu0 0.0
    %2302 = vmatpush1.msra.mxu0 0.0
    %2303 = vmatprep.subr.mxu0 0.0
    %2304 = vmatpush1.msra.mxu0 0.0
    %2305 = vmatprep.subr.mxu0 0.0
    %2306 = vmatpush1.msra.mxu0 0.0
    %2307 = vmatprep.subr.mxu0 0.0
    %2308 = vmatpush1.msra.mxu0 0.0
    %2309 = vmatprep.subr.mxu0 0.0
    %2310 = vmatpush1.msra.mxu0 0.0
    %2311 = vmatprep.subr.mxu0 0.0
    %2312 = vmatpush1.msra.mxu0 0.0
    %2313 = vmatprep.subr.mxu0 0.0
    %2314 = vmatpush1.msra.mxu0 0.0
    %2315 = vmatprep.subr.mxu0 0.0
    %2316 = vmatpush1.msra.mxu0 0.0
    %2317 = vmatprep.subr.mxu0 0.0
    %2318 = vmatpush1.msra.mxu0 0.0
    %2319 = vmatprep.subr.mxu0 0.0
    %2320 = vmatpush1.msra.mxu0 0.0
    %2321 = vmatprep.subr.mxu0 0.0
    %2322 = vmatpush1.msra.mxu0 0.0
    %2323 = vmatprep.subr.mxu0 0.0
    %2324 = vmatpush1.msra.mxu0 0.0
    %2325 = vmatprep.subr.mxu0 0.0
    %2326 = vmatpush1.msra.mxu0 0.0
    %2327 = vmatprep.mubr.f32.mxu0 0.0
    %v2328 = vand.u32 %v2060, 4294901760
    %v2329 = vsub.f32 %v2060, %v2328
    %2330 = vmatmul.mubr.f32.gmra.mrb[0].mxu0 %v2329
    %v2331 = vpop.f32.mrb[0].mxu0
    %v2332 = vadd.f32 %v2244, %v2331
    %v2333 = vpop.f32.mrb[0].mxu0
    %v2334 = vadd.f32 %v2246, %v2333
    %2335 = vmatprep.mubr.f32.mxu0 0.0
    %v2336 = vand.u32 %v2063, 4294901760
    %v2337 = vsub.f32 %v2063, %v2336
    %2338 = vmatmul.mubr.f32.gmra.mrb[0].mxu0 %v2337
    %v2339 = vpop.f32.mrb[0].mxu0
    %v2340 = vadd.f32 %v2251, %v2339
    %v2341 = vpop.f32.mrb[0].mxu0
    %v2342 = vadd.f32 %v2253, %v2341
    %2343 = vdwg.mxu0
    %v2344 = vand.u32 %v93, 4294901760
    %2345 = vmatprep.subr.mxu0 %v2344
    %v2346 = vand.u32 %v92, 4294901760
    %2347 = vmatpush1.msra.mxu0 %v2346
    %v2348 = vand.u32 %v95, 4294901760
    %2349 = vmatprep.subr.mxu0 %v2348
    %v2350 = vand.u32 %v94, 4294901760
    %2351 = vmatpush1.msra.mxu0 %v2350
    %2352 = vmatprep.subr.mxu0 0.0
    %2353 = vmatpush1.msra.mxu0 0.0
    %2354 = vmatprep.subr.mxu0 0.0
    %2355 = vmatpush1.msra.mxu0 0.0
    %2356 = vmatprep.subr.mxu0 0.0
    %2357 = vmatpush1.msra.mxu0 0.0
    %2358 = vmatprep.subr.mxu0 0.0
    %2359 = vmatpush1.msra.mxu0 0.0
    %2360 = vmatprep.subr.mxu0 0.0
    %2361 = vmatpush1.msra.mxu0 0.0
    %2362 = vmatprep.subr.mxu0 0.0
    %2363 = vmatpush1.msra.mxu0 0.0
    %2364 = vmatprep.subr.mxu0 0.0
    %2365 = vmatpush1.msra.mxu0 0.0
    %2366 = vmatprep.subr.mxu0 0.0
    %2367 = vmatpush1.msra.mxu0 0.0
    %2368 = vmatprep.subr.mxu0 0.0
    %2369 = vmatpush1.msra.mxu0 0.0
    %2370 = vmatprep.subr.mxu0 0.0
    %2371 = vmatpush1.msra.mxu0 0.0
    %2372 = vmatprep.subr.mxu0 0.0
    %2373 = vmatpush1.msra.mxu0 0.0
    %2374 = vmatprep.subr.mxu0 0.0
    %2375 = vmatpush1.msra.mxu0 0.0
    %2376 = vmatprep.subr.mxu0 0.0
    %2377 = vmatpush1.msra.mxu0 0.0
    %2378 = vmatprep.subr.mxu0 0.0
    %2379 = vmatpush1.msra.mxu0 0.0
    %2380 = vmatprep.subr.mxu0 0.0
    %2381 = vmatpush1.msra.mxu0 0.0
    %2382 = vmatprep.subr.mxu0 0.0
    %2383 = vmatpush1.msra.mxu0 0.0
    %2384 = vmatprep.subr.mxu0 0.0
    %2385 = vmatpush1.msra.mxu0 0.0
    %2386 = vmatprep.subr.mxu0 0.0
    %2387 = vmatpush1.msra.mxu0 0.0
    %2388 = vmatprep.subr.mxu0 0.0
    %2389 = vmatpush1.msra.mxu0 0.0
    %2390 = vmatprep.subr.mxu0 0.0
    %2391 = vmatpush1.msra.mxu0 0.0
    %2392 = vmatprep.subr.mxu0 0.0
    %2393 = vmatpush1.msra.mxu0 0.0
    %2394 = vmatprep.subr.mxu0 0.0
    %2395 = vmatpush1.msra.mxu0 0.0
    %2396 = vmatprep.subr.mxu0 0.0
    %2397 = vmatpush1.msra.mxu0 0.0
    %2398 = vmatprep.subr.mxu0 0.0
    %2399 = vmatpush1.msra.mxu0 0.0
    %2400 = vmatprep.subr.mxu0 0.0
    %2401 = vmatpush1.msra.mxu0 0.0
    %2402 = vmatprep.subr.mxu0 0.0
    %2403 = vmatpush1.msra.mxu0 0.0
    %2404 = vmatprep.subr.mxu0 0.0
    %2405 = vmatpush1.msra.mxu0 0.0
    %2406 = vmatprep.subr.mxu0 0.0
    %2407 = vmatpush1.msra.mxu0 0.0
    %2408 = vmatprep.subr.mxu0 0.0
    %2409 = vmatpush1.msra.mxu0 0.0
    %2410 = vmatprep.subr.mxu0 0.0
    %2411 = vmatpush1.msra.mxu0 0.0
    %2412 = vmatprep.mubr.f32.mxu0 0.0
    %v2413 = vand.u32 %v2060, 4294901760
    %v2414 = vsub.f32 %v2060, %v2413
    %v2415 = vand.u32 %v2414, 4294901760
    %2416 = vmatmul.mubr.f32.gmra.mrb[0].mxu0 %v2415
    %v2417 = vpop.f32.mrb[0].mxu0
    %v2418 = vadd.f32 %v2332, %v2417
    %v2419 = vpop.f32.mrb[0].mxu0
    %v2420 = vadd.f32 %v2334, %v2419
    %2421 = vmatprep.mubr.f32.mxu0 0.0
    %v2422 = vand.u32 %v2063, 4294901760
    %v2423 = vsub.f32 %v2063, %v2422
    %v2424 = vand.u32 %v2423, 4294901760
    %2425 = vmatmul.mubr.f32.gmra.mrb[0].mxu0 %v2424
    %v2426 = vpop.f32.mrb[0].mxu0
    %v2427 = vadd.f32 %v2340, %v2426
    %v2428 = vpop.f32.mrb[0].mxu0
    %v2429 = vadd.f32 %v2342, %v2428
    %2430 = vdwg.mxu0
    %v2431 = vand.u32 %v93, 4294901760
    %v2432 = vsub.f32 %v93, %v2431
    %v2433 = vand.u32 %v2432, 4294901760
    %2434 = vmatprep.subr.mxu0 %v2433
    %v2435 = vand.u32 %v92, 4294901760
    %v2436 = vsub.f32 %v92, %v2435
    %v2437 = vand.u32 %v2436, 4294901760
    %2438 = vmatpush1.msra.mxu0 %v2437
    %v2439 = vand.u32 %v95, 4294901760
    %v2440 = vsub.f32 %v95, %v2439
    %v2441 = vand.u32 %v2440, 4294901760
    %2442 = vmatprep.subr.mxu0 %v2441
    %v2443 = vand.u32 %v94, 4294901760
    %v2444 = vsub.f32 %v94, %v2443
    %v2445 = vand.u32 %v2444, 4294901760
    %2446 = vmatpush1.msra.mxu0 %v2445
    %2447 = vmatprep.subr.mxu0 0.0
    %2448 = vmatpush1.msra.mxu0 0.0
    %2449 = vmatprep.subr.mxu0 0.0
    %2450 = vmatpush1.msra.mxu0 0.0
    %2451 = vmatprep.subr.mxu0 0.0
    %2452 = vmatpush1.msra.mxu0 0.0
    %2453 = vmatprep.subr.mxu0 0.0
    %2454 = vmatpush1.msra.mxu0 0.0
    %2455 = vmatprep.subr.mxu0 0.0
    %2456 = vmatpush1.msra.mxu0 0.0
    %2457 = vmatprep.subr.mxu0 0.0
    %2458 = vmatpush1.msra.mxu0 0.0
    %2459 = vmatprep.subr.mxu0 0.0
    %2460 = vmatpush1.msra.mxu0 0.0
    %2461 = vmatprep.subr.mxu0 0.0
    %2462 = vmatpush1.msra.mxu0 0.0
    %2463 = vmatprep.subr.mxu0 0.0
    %2464 = vmatpush1.msra.mxu0 0.0
    %2465 = vmatprep.subr.mxu0 0.0
    %2466 = vmatpush1.msra.mxu0 0.0
    %2467 = vmatprep.subr.mxu0 0.0
    %2468 = vmatpush1.msra.mxu0 0.0
    %2469 = vmatprep.subr.mxu0 0.0
    %2470 = vmatpush1.msra.mxu0 0.0
    %2471 = vmatprep.subr.mxu0 0.0
    %2472 = vmatpush1.msra.mxu0 0.0
    %2473 = vmatprep.subr.mxu0 0.0
    %2474 = vmatpush1.msra.mxu0 0.0
    %2475 = vmatprep.subr.mxu0 0.0
    %2476 = vmatpush1.msra.mxu0 0.0
    %2477 = vmatprep.subr.mxu0 0.0
    %2478 = vmatpush1.msra.mxu0 0.0
    %2479 = vmatprep.subr.mxu0 0.0
    %2480 = vmatpush1.msra.mxu0 0.0
    %2481 = vmatprep.subr.mxu0 0.0
    %2482 = vmatpush1.msra.mxu0 0.0
    %2483 = vmatprep.subr.mxu0 0.0
    %2484 = vmatpush1.msra.mxu0 0.0
    %2485 = vmatprep.subr.mxu0 0.0
    %2486 = vmatpush1.msra.mxu0 0.0
    %2487 = vmatprep.subr.mxu0 0.0
    %2488 = vmatpush1.msra.mxu0 0.0
    %2489 = vmatprep.subr.mxu0 0.0
    %2490 = vmatpush1.msra.mxu0 0.0
    %2491 = vmatprep.subr.mxu0 0.0
    %2492 = vmatpush1.msra.mxu0 0.0
    %2493 = vmatprep.subr.mxu0 0.0
    %2494 = vmatpush1.msra.mxu0 0.0
    %2495 = vmatprep.subr.mxu0 0.0
    %2496 = vmatpush1.msra.mxu0 0.0
    %2497 = vmatprep.subr.mxu0 0.0
    %2498 = vmatpush1.msra.mxu0 0.0
    %2499 = vmatprep.subr.mxu0 0.0
    %2500 = vmatpush1.msra.mxu0 0.0
    %2501 = vmatprep.subr.mxu0 0.0
    %2502 = vmatpush1.msra.mxu0 0.0
    %2503 = vmatprep.subr.mxu0 0.0
    %2504 = vmatpush1.msra.mxu0 0.0
    %2505 = vmatprep.subr.mxu0 0.0
    %2506 = vmatpush1.msra.mxu0 0.0
    %2507 = vmatprep.mubr.f32.mxu0 0.0
    %v2508 = vand.u32 %v2060, 4294901760
    %2509 = vmatmul.mubr.f32.gmra.mrb[0].mxu0 %v2508
    %v2510 = vpop.f32.mrb[0].mxu0
    %v2511 = vadd.f32 %v2418, %v2510
    %v2512 = vpop.f32.mrb[0].mxu0
    %v2513 = vadd.f32 %v2420, %v2512
    %2514 = vmatprep.mubr.f32.mxu0 0.0
    %v2515 = vand.u32 %v2063, 4294901760
    %2516 = vmatmul.mubr.f32.gmra.mrb[0].mxu0 %v2515
    %v2517 = vpop.f32.mrb[0].mxu0
    %v2518 = vadd.f32 %v2427, %v2517
    %v2519 = vpop.f32.mrb[0].mxu0
    %v2520 = vadd.f32 %v2429, %v2519
    %2521 = vdwg.mxu0
    %v2522 = vand.u32 %v93, 4294901760
    %2523 = vmatprep.subr.mxu0 %v2522
    %v2524 = vand.u32 %v92, 4294901760
    %2525 = vmatpush1.msra.mxu0 %v2524
    %v2526 = vand.u32 %v95, 4294901760
    %2527 = vmatprep.subr.mxu0 %v2526
    %v2528 = vand.u32 %v94, 4294901760
    %2529 = vmatpush1.msra.mxu0 %v2528
    %2530 = vmatprep.subr.mxu0 0.0
    %2531 = vmatpush1.msra.mxu0 0.0
    %2532 = vmatprep.subr.mxu0 0.0
    %2533 = vmatpush1.msra.mxu0 0.0
    %2534 = vmatprep.subr.mxu0 0.0
    %2535 = vmatpush1.msra.mxu0 0.0
    %2536 = vmatprep.subr.mxu0 0.0
    %2537 = vmatpush1.msra.mxu0 0.0
    %2538 = vmatprep.subr.mxu0 0.0
    %2539 = vmatpush1.msra.mxu0 0.0
    %2540 = vmatprep.subr.mxu0 0.0
    %2541 = vmatpush1.msra.mxu0 0.0
    %2542 = vmatprep.subr.mxu0 0.0
    %2543 = vmatpush1.msra.mxu0 0.0
    %2544 = vmatprep.subr.mxu0 0.0
    %2545 = vmatpush1.msra.mxu0 0.0
    %2546 = vmatprep.subr.mxu0 0.0
    %2547 = vmatpush1.msra.mxu0 0.0
    %2548 = vmatprep.subr.mxu0 0.0
    %2549 = vmatpush1.msra.mxu0 0.0
    %2550 = vmatprep.subr.mxu0 0.0
    %2551 = vmatpush1.msra.mxu0 0.0
    %2552 = vmatprep.subr.mxu0 0.0
    %2553 = vmatpush1.msra.mxu0 0.0
    %2554 = vmatprep.subr.mxu0 0.0
    %2555 = vmatpush1.msra.mxu0 0.0
    %2556 = vmatprep.subr.mxu0 0.0
    %2557 = vmatpush1.msra.mxu0 0.0
    %2558 = vmatprep.subr.mxu0 0.0
    %2559 = vmatpush1.msra.mxu0 0.0
    %2560 = vmatprep.subr.mxu0 0.0
    %2561 = vmatpush1.msra.mxu0 0.0
    %2562 = vmatprep.subr.mxu0 0.0
    %2563 = vmatpush1.msra.mxu0 0.0
    %2564 = vmatprep.subr.mxu0 0.0
    %2565 = vmatpush1.msra.mxu0 0.0
    %2566 = vmatprep.subr.mxu0 0.0
    %2567 = vmatpush1.msra.mxu0 0.0
    %2568 = vmatprep.subr.mxu0 0.0
    %2569 = vmatpush1.msra.mxu0 0.0
    %2570 = vmatprep.subr.mxu0 0.0
    %2571 = vmatpush1.msra.mxu0 0.0
    %2572 = vmatprep.subr.mxu0 0.0
    %2573 = vmatpush1.msra.mxu0 0.0
    %2574 = vmatprep.subr.mxu0 0.0
    %2575 = vmatpush1.msra.mxu0 0.0
    %2576 = vmatprep.subr.mxu0 0.0
    %2577 = vmatpush1.msra.mxu0 0.0
    %2578 = vmatprep.subr.mxu0 0.0
    %2579 = vmatpush1.msra.mxu0 0.0
    %2580 = vmatprep.subr.mxu0 0.0
    %2581 = vmatpush1.msra.mxu0 0.0
    %2582 = vmatprep.subr.mxu0 0.0
    %2583 = vmatpush1.msra.mxu0 0.0
    %2584 = vmatprep.subr.mxu0 0.0
    %2585 = vmatpush1.msra.mxu0 0.0
    %2586 = vmatprep.subr.mxu0 0.0
    %2587 = vmatpush1.msra.mxu0 0.0
    %2588 = vmatprep.subr.mxu0 0.0
    %2589 = vmatpush1.msra.mxu0 0.0
    %2590 = vmatprep.mubr.f32.mxu0 0.0
    %v2591 = vand.u32 %v2060, 4294901760
    %2592 = vmatmul.mubr.f32.gmra.mrb[0].mxu0 %v2591
    %v2593 = vpop.f32.mrb[0].mxu0
    %v2594 = vadd.f32 %v2511, %v2593
    %v2595 = vpop.f32.mrb[0].mxu0
    %v2596 = vadd.f32 %v2513, %v2595
    %2597 = vmatprep.mubr.f32.mxu0 0.0
    %v2598 = vand.u32 %v2063, 4294901760
    %2599 = vmatmul.mubr.f32.gmra.mrb[0].mxu0 %v2598
    %v2600 = vpop.f32.mrb[0].mxu0
    %v2601 = vadd.f32 %v2518, %v2600
    %v2602 = vpop.f32.mrb[0].mxu0
    %v2603 = vadd.f32 %v2520, %v2602
    %2604 = vdwg.mxu0
    %v2605 = vmul.f32 %v2594, %v1233
    %v2606 = vmul.f32 %v2601, %v1239
    %2607 = vmatprep.subr.mxu0 0.0
    %v2608 = vand.u32 %v60, 4294901760
    %2609 = vmatpush1.msra.mxu0 %v2608
    %2610 = vmatprep.subr.mxu0 0.0
    %v2611 = vand.u32 %v61, 4294901760
    %2612 = vmatpush1.msra.mxu0 %v2611
    %2613 = vmatprep.subr.mxu0 0.0
    %v2614 = vand.u32 %v62, 4294901760
    %2615 = vmatpush1.msra.mxu0 %v2614
    %2616 = vmatprep.subr.mxu0 0.0
    %v2617 = vand.u32 %v63, 4294901760
    %2618 = vmatpush1.msra.mxu0 %v2617
    %2619 = vmatprep.subr.mxu0 0.0
    %v2620 = vand.u32 %v64, 4294901760
    %2621 = vmatpush1.msra.mxu0 %v2620
    %2622 = vmatprep.subr.mxu0 0.0
    %v2623 = vand.u32 %v65, 4294901760
    %2624 = vmatpush1.msra.mxu0 %v2623
    %2625 = vmatprep.subr.mxu0 0.0
    %v2626 = vand.u32 %v66, 4294901760
    %2627 = vmatpush1.msra.mxu0 %v2626
    %2628 = vmatprep.subr.mxu0 0.0
    %v2629 = vand.u32 %v67, 4294901760
    %2630 = vmatpush1.msra.mxu0 %v2629
    %2631 = vmatprep.subr.mxu0 0.0
    %v2632 = vand.u32 %v68, 4294901760
    %2633 = vmatpush1.msra.mxu0 %v2632
    %2634 = vmatprep.subr.mxu0 0.0
    %v2635 = vand.u32 %v69, 4294901760
    %2636 = vmatpush1.msra.mxu0 %v2635
    %2637 = vmatprep.subr.mxu0 0.0
    %v2638 = vand.u32 %v70, 4294901760
    %2639 = vmatpush1.msra.mxu0 %v2638
    %2640 = vmatprep.subr.mxu0 0.0
    %v2641 = vand.u32 %v71, 4294901760
    %2642 = vmatpush1.msra.mxu0 %v2641
    %2643 = vmatprep.subr.mxu0 0.0
    %v2644 = vand.u32 %v72, 4294901760
    %2645 = vmatpush1.msra.mxu0 %v2644
    %2646 = vmatprep.subr.mxu0 0.0
    %v2647 = vand.u32 %v73, 4294901760
    %2648 = vmatpush1.msra.mxu0 %v2647
    %2649 = vmatprep.subr.mxu0 0.0
    %v2650 = vand.u32 %v74, 4294901760
    %2651 = vmatpush1.msra.mxu0 %v2650
    %2652 = vmatprep.subr.mxu0 0.0
    %v2653 = vand.u32 %v75, 4294901760
    %2654 = vmatpush1.msra.mxu0 %v2653
    %2655 = vmatprep.subr.mxu0 0.0
    %2656 = vmatpush1.msra.mxu0 0.0
    %2657 = vmatprep.subr.mxu0 0.0
    %2658 = vmatpush1.msra.mxu0 0.0
    %2659 = vmatprep.subr.mxu0 0.0
    %2660 = vmatpush1.msra.mxu0 0.0
    %2661 = vmatprep.subr.mxu0 0.0
    %2662 = vmatpush1.msra.mxu0 0.0
    %2663 = vmatprep.subr.mxu0 0.0
    %2664 = vmatpush1.msra.mxu0 0.0
    %2665 = vmatprep.subr.mxu0 0.0
    %2666 = vmatpush1.msra.mxu0 0.0
    %2667 = vmatprep.subr.mxu0 0.0
    %2668 = vmatpush1.msra.mxu0 0.0
    %2669 = vmatprep.subr.mxu0 0.0
    %2670 = vmatpush1.msra.mxu0 0.0
    %2671 = vmatprep.subr.mxu0 0.0
    %2672 = vmatpush1.msra.mxu0 0.0
    %2673 = vmatprep.subr.mxu0 0.0
    %2674 = vmatpush1.msra.mxu0 0.0
    %2675 = vmatprep.subr.mxu0 0.0
    %2676 = vmatpush1.msra.mxu0 0.0
    %2677 = vmatprep.subr.mxu0 0.0
    %2678 = vmatpush1.msra.mxu0 0.0
    %2679 = vmatprep.subr.mxu0 0.0
    %2680 = vmatpush1.msra.mxu0 0.0
    %2681 = vmatprep.subr.mxu0 0.0
    %2682 = vmatpush1.msra.mxu0 0.0
    %2683 = vmatprep.subr.mxu0 0.0
    %2684 = vmatpush1.msra.mxu0 0.0
    %2685 = vmatprep.subr.mxu0 0.0
    %2686 = vmatpush1.msra.mxu0 0.0
    %2687 = vmatprep.mubr.f32.mxu0 0.0
    %v2688 = vand.u32 %v2605, 4294901760
    %v2689 = vsub.f32 %v2605, %v2688
    %v2690 = vand.u32 %v2689, 4294901760
    %v2691 = vsub.f32 %v2689, %v2690
    %v2692 = vand.u32 %v2691, 4294901760
    %2693 = vmatmul.mubr.f32.gmra.mrb[0].mxu0 %v2692
    %v2694 = vpop.f32.mrb[0].mxu0
    %v2695 = vadd.f32 %v2596, %v2694
    %v2696 = vpop.f32.mrb[0].mxu0
    %2697 = vmatprep.mubr.f32.mxu0 0.0
    %v2698 = vand.u32 %v2606, 4294901760
    %v2699 = vsub.f32 %v2606, %v2698
    %v2700 = vand.u32 %v2699, 4294901760
    %v2701 = vsub.f32 %v2699, %v2700
    %v2702 = vand.u32 %v2701, 4294901760
    %2703 = vmatmul.mubr.f32.gmra.mrb[0].mxu0 %v2702
    %v2704 = vpop.f32.mrb[0].mxu0
    %v2705 = vadd.f32 %v2603, %v2704
    %v2706 = vpop.f32.mrb[0].mxu0
    %2707 = vdwg.mxu0
    %2708 = vmatprep.subr.mxu0 0.0
    %v2709 = vand.u32 %v60, 4294901760
    %v2710 = vsub.f32 %v60, %v2709
    %v2711 = vand.u32 %v2710, 4294901760
    %v2712 = vsub.f32 %v2710, %v2711
    %v2713 = vand.u32 %v2712, 4294901760
    %2714 = vmatpush1.msra.mxu0 %v2713
    %2715 = vmatprep.subr.mxu0 0.0
    %v2716 = vand.u32 %v61, 4294901760
    %v2717 = vsub.f32 %v61, %v2716
    %v2718 = vand.u32 %v2717, 4294901760
    %v2719 = vsub.f32 %v2717, %v2718
    %v2720 = vand.u32 %v2719, 4294901760
    %2721 = vmatpush1.msra.mxu0 %v2720
    %2722 = vmatprep.subr.mxu0 0.0
    %v2723 = vand.u32 %v62, 4294901760
    %v2724 = vsub.f32 %v62, %v2723
    %v2725 = vand.u32 %v2724, 4294901760
    %v2726 = vsub.f32 %v2724, %v2725
    %v2727 = vand.u32 %v2726, 4294901760
    %2728 = vmatpush1.msra.mxu0 %v2727
    %2729 = vmatprep.subr.mxu0 0.0
    %v2730 = vand.u32 %v63, 4294901760
    %v2731 = vsub.f32 %v63, %v2730
    %v2732 = vand.u32 %v2731, 4294901760
    %v2733 = vsub.f32 %v2731, %v2732
    %v2734 = vand.u32 %v2733, 4294901760
    %2735 = vmatpush1.msra.mxu0 %v2734
    %2736 = vmatprep.subr.mxu0 0.0
    %v2737 = vand.u32 %v64, 4294901760
    %v2738 = vsub.f32 %v64, %v2737
    %v2739 = vand.u32 %v2738, 4294901760
    %v2740 = vsub.f32 %v2738, %v2739
    %v2741 = vand.u32 %v2740, 4294901760
    %2742 = vmatpush1.msra.mxu0 %v2741
    %2743 = vmatprep.subr.mxu0 0.0
    %v2744 = vand.u32 %v65, 4294901760
    %v2745 = vsub.f32 %v65, %v2744
    %v2746 = vand.u32 %v2745, 4294901760
    %v2747 = vsub.f32 %v2745, %v2746
    %v2748 = vand.u32 %v2747, 4294901760
    %2749 = vmatpush1.msra.mxu0 %v2748
    %2750 = vmatprep.subr.mxu0 0.0
    %v2751 = vand.u32 %v66, 4294901760
    %v2752 = vsub.f32 %v66, %v2751
    %v2753 = vand.u32 %v2752, 4294901760
    %v2754 = vsub.f32 %v2752, %v2753
    %v2755 = vand.u32 %v2754, 4294901760
    %2756 = vmatpush1.msra.mxu0 %v2755
    %2757 = vmatprep.subr.mxu0 0.0
    %v2758 = vand.u32 %v67, 4294901760
    %v2759 = vsub.f32 %v67, %v2758
    %v2760 = vand.u32 %v2759, 4294901760
    %v2761 = vsub.f32 %v2759, %v2760
    %v2762 = vand.u32 %v2761, 4294901760
    %2763 = vmatpush1.msra.mxu0 %v2762
    %2764 = vmatprep.subr.mxu0 0.0
    %v2765 = vand.u32 %v68, 4294901760
    %v2766 = vsub.f32 %v68, %v2765
    %v2767 = vand.u32 %v2766, 4294901760
    %v2768 = vsub.f32 %v2766, %v2767
    %v2769 = vand.u32 %v2768, 4294901760
    %2770 = vmatpush1.msra.mxu0 %v2769
    %2771 = vmatprep.subr.mxu0 0.0
    %v2772 = vand.u32 %v69, 4294901760
    %v2773 = vsub.f32 %v69, %v2772
    %v2774 = vand.u32 %v2773, 4294901760
    %v2775 = vsub.f32 %v2773, %v2774
    %v2776 = vand.u32 %v2775, 4294901760
    %2777 = vmatpush1.msra.mxu0 %v2776
    %2778 = vmatprep.subr.mxu0 0.0
    %v2779 = vand.u32 %v70, 4294901760
    %v2780 = vsub.f32 %v70, %v2779
    %v2781 = vand.u32 %v2780, 4294901760
    %v2782 = vsub.f32 %v2780, %v2781
    %v2783 = vand.u32 %v2782, 4294901760
    %2784 = vmatpush1.msra.mxu0 %v2783
    %2785 = vmatprep.subr.mxu0 0.0
    %v2786 = vand.u32 %v71, 4294901760
    %v2787 = vsub.f32 %v71, %v2786
    %v2788 = vand.u32 %v2787, 4294901760
    %v2789 = vsub.f32 %v2787, %v2788
    %v2790 = vand.u32 %v2789, 4294901760
    %2791 = vmatpush1.msra.mxu0 %v2790
    %2792 = vmatprep.subr.mxu0 0.0
    %v2793 = vand.u32 %v72, 4294901760
    %v2794 = vsub.f32 %v72, %v2793
    %v2795 = vand.u32 %v2794, 4294901760
    %v2796 = vsub.f32 %v2794, %v2795
    %v2797 = vand.u32 %v2796, 4294901760
    %2798 = vmatpush1.msra.mxu0 %v2797
    %2799 = vmatprep.subr.mxu0 0.0
    %v2800 = vand.u32 %v73, 4294901760
    %v2801 = vsub.f32 %v73, %v2800
    %v2802 = vand.u32 %v2801, 4294901760
    %v2803 = vsub.f32 %v2801, %v2802
    %v2804 = vand.u32 %v2803, 4294901760
    %2805 = vmatpush1.msra.mxu0 %v2804
    %2806 = vmatprep.subr.mxu0 0.0
    %v2807 = vand.u32 %v74, 4294901760
    %v2808 = vsub.f32 %v74, %v2807
    %v2809 = vand.u32 %v2808, 4294901760
    %v2810 = vsub.f32 %v2808, %v2809
    %v2811 = vand.u32 %v2810, 4294901760
    %2812 = vmatpush1.msra.mxu0 %v2811
    %2813 = vmatprep.subr.mxu0 0.0
    %v2814 = vand.u32 %v75, 4294901760
    %v2815 = vsub.f32 %v75, %v2814
    %v2816 = vand.u32 %v2815, 4294901760
    %v2817 = vsub.f32 %v2815, %v2816
    %v2818 = vand.u32 %v2817, 4294901760
    %2819 = vmatpush1.msra.mxu0 %v2818
    %2820 = vmatprep.subr.mxu0 0.0
    %2821 = vmatpush1.msra.mxu0 0.0
    %2822 = vmatprep.subr.mxu0 0.0
    %2823 = vmatpush1.msra.mxu0 0.0
    %2824 = vmatprep.subr.mxu0 0.0
    %2825 = vmatpush1.msra.mxu0 0.0
    %2826 = vmatprep.subr.mxu0 0.0
    %2827 = vmatpush1.msra.mxu0 0.0
    %2828 = vmatprep.subr.mxu0 0.0
    %2829 = vmatpush1.msra.mxu0 0.0
    %2830 = vmatprep.subr.mxu0 0.0
    %2831 = vmatpush1.msra.mxu0 0.0
    %2832 = vmatprep.subr.mxu0 0.0
    %2833 = vmatpush1.msra.mxu0 0.0
    %2834 = vmatprep.subr.mxu0 0.0
    %2835 = vmatpush1.msra.mxu0 0.0
    %2836 = vmatprep.subr.mxu0 0.0
    %2837 = vmatpush1.msra.mxu0 0.0
    %2838 = vmatprep.subr.mxu0 0.0
    %2839 = vmatpush1.msra.mxu0 0.0
    %2840 = vmatprep.subr.mxu0 0.0
    %2841 = vmatpush1.msra.mxu0 0.0
    %2842 = vmatprep.subr.mxu0 0.0
    %2843 = vmatpush1.msra.mxu0 0.0
    %2844 = vmatprep.subr.mxu0 0.0
    %2845 = vmatpush1.msra.mxu0 0.0
    %2846 = vmatprep.subr.mxu0 0.0
    %2847 = vmatpush1.msra.mxu0 0.0
    %2848 = vmatprep.subr.mxu0 0.0
    %2849 = vmatpush1.msra.mxu0 0.0
    %2850 = vmatprep.subr.mxu0 0.0
    %2851 = vmatpush1.msra.mxu0 0.0
    %2852 = vmatprep.mubr.f32.mxu0 0.0
    %v2853 = vand.u32 %v2605, 4294901760
    %2854 = vmatmul.mubr.f32.gmra.mrb[0].mxu0 %v2853
    %v2855 = vpop.f32.mrb[0].mxu0
    %v2856 = vadd.f32 %v2695, %v2855
    %v2857 = vpop.f32.mrb[0].mxu0
    %2858 = vmatprep.mubr.f32.mxu0 0.0
    %v2859 = vand.u32 %v2606, 4294901760
    %2860 = vmatmul.mubr.f32.gmra.mrb[0].mxu0 %v2859
    %v2861 = vpop.f32.mrb[0].mxu0
    %v2862 = vadd.f32 %v2705, %v2861
    %v2863 = vpop.f32.mrb[0].mxu0
    %2864 = vdwg.mxu0
    %2865 = vmatprep.subr.mxu0 0.0
    %v2866 = vand.u32 %v60, 4294901760
    %v2867 = vsub.f32 %v60, %v2866
    %2868 = vmatpush1.msra.mxu0 %v2867
    %2869 = vmatprep.subr.mxu0 0.0
    %v2870 = vand.u32 %v61, 4294901760
    %v2871 = vsub.f32 %v61, %v2870
    %2872 = vmatpush1.msra.mxu0 %v2871
    %2873 = vmatprep.subr.mxu0 0.0
    %v2874 = vand.u32 %v62, 4294901760
    %v2875 = vsub.f32 %v62, %v2874
    %2876 = vmatpush1.msra.mxu0 %v2875
    %2877 = vmatprep.subr.mxu0 0.0
    %v2878 = vand.u32 %v63, 4294901760
    %v2879 = vsub.f32 %v63, %v2878
    %2880 = vmatpush1.msra.mxu0 %v2879
    %2881 = vmatprep.subr.mxu0 0.0
    %v2882 = vand.u32 %v64, 4294901760
    %v2883 = vsub.f32 %v64, %v2882
    %2884 = vmatpush1.msra.mxu0 %v2883
    %2885 = vmatprep.subr.mxu0 0.0
    %v2886 = vand.u32 %v65, 4294901760
    %v2887 = vsub.f32 %v65, %v2886
    %2888 = vmatpush1.msra.mxu0 %v2887
    %2889 = vmatprep.subr.mxu0 0.0
    %v2890 = vand.u32 %v66, 4294901760
    %v2891 = vsub.f32 %v66, %v2890
    %2892 = vmatpush1.msra.mxu0 %v2891
    %2893 = vmatprep.subr.mxu0 0.0
    %v2894 = vand.u32 %v67, 4294901760
    %v2895 = vsub.f32 %v67, %v2894
    %2896 = vmatpush1.msra.mxu0 %v2895
    %2897 = vmatprep.subr.mxu0 0.0
    %v2898 = vand.u32 %v68, 4294901760
    %v2899 = vsub.f32 %v68, %v2898
    %2900 = vmatpush1.msra.mxu0 %v2899
    %2901 = vmatprep.subr.mxu0 0.0
    %v2902 = vand.u32 %v69, 4294901760
    %v2903 = vsub.f32 %v69, %v2902
    %2904 = vmatpush1.msra.mxu0 %v2903
    %2905 = vmatprep.subr.mxu0 0.0
    %v2906 = vand.u32 %v70, 4294901760
    %v2907 = vsub.f32 %v70, %v2906
    %2908 = vmatpush1.msra.mxu0 %v2907
    %2909 = vmatprep.subr.mxu0 0.0
    %v2910 = vand.u32 %v71, 4294901760
    %v2911 = vsub.f32 %v71, %v2910
    %2912 = vmatpush1.msra.mxu0 %v2911
    %2913 = vmatprep.subr.mxu0 0.0
    %v2914 = vand.u32 %v72, 4294901760
    %v2915 = vsub.f32 %v72, %v2914
    %2916 = vmatpush1.msra.mxu0 %v2915
    %2917 = vmatprep.subr.mxu0 0.0
    %v2918 = vand.u32 %v73, 4294901760
    %v2919 = vsub.f32 %v73, %v2918
    %2920 = vmatpush1.msra.mxu0 %v2919
    %2921 = vmatprep.subr.mxu0 0.0
    %v2922 = vand.u32 %v74, 4294901760
    %v2923 = vsub.f32 %v74, %v2922
    %2924 = vmatpush1.msra.mxu0 %v2923
    %2925 = vmatprep.subr.mxu0 0.0
    %v2926 = vand.u32 %v75, 4294901760
    %v2927 = vsub.f32 %v75, %v2926
    %2928 = vmatpush1.msra.mxu0 %v2927
    %2929 = vmatprep.subr.mxu0 0.0
    %2930 = vmatpush1.msra.mxu0 0.0
    %2931 = vmatprep.subr.mxu0 0.0
    %2932 = vmatpush1.msra.mxu0 0.0
    %2933 = vmatprep.subr.mxu0 0.0
    %2934 = vmatpush1.msra.mxu0 0.0
    %2935 = vmatprep.subr.mxu0 0.0
    %2936 = vmatpush1.msra.mxu0 0.0
    %2937 = vmatprep.subr.mxu0 0.0
    %2938 = vmatpush1.msra.mxu0 0.0
    %2939 = vmatprep.subr.mxu0 0.0
    %2940 = vmatpush1.msra.mxu0 0.0
    %2941 = vmatprep.subr.mxu0 0.0
    %2942 = vmatpush1.msra.mxu0 0.0
    %2943 = vmatprep.subr.mxu0 0.0
    %2944 = vmatpush1.msra.mxu0 0.0
    %2945 = vmatprep.subr.mxu0 0.0
    %2946 = vmatpush1.msra.mxu0 0.0
    %2947 = vmatprep.subr.mxu0 0.0
    %2948 = vmatpush1.msra.mxu0 0.0
    %2949 = vmatprep.subr.mxu0 0.0
    %2950 = vmatpush1.msra.mxu0 0.0
    %2951 = vmatprep.subr.mxu0 0.0
    %2952 = vmatpush1.msra.mxu0 0.0
    %2953 = vmatprep.subr.mxu0 0.0
    %2954 = vmatpush1.msra.mxu0 0.0
    %2955 = vmatprep.subr.mxu0 0.0
    %2956 = vmatpush1.msra.mxu0 0.0
    %2957 = vmatprep.subr.mxu0 0.0
    %2958 = vmatpush1.msra.mxu0 0.0
    %2959 = vmatprep.subr.mxu0 0.0
    %2960 = vmatpush1.msra.mxu0 0.0
    %2961 = vmatprep.mubr.f32.mxu0 0.0
    %v2962 = vand.u32 %v2605, 4294901760
    %v2963 = vsub.f32 %v2605, %v2962
    %2964 = vmatmul.mubr.f32.gmra.mrb[0].mxu0 %v2963
    %v2965 = vpop.f32.mrb[0].mxu0
    %v2966 = vadd.f32 %v2856, %v2965
    %v2967 = vpop.f32.mrb[0].mxu0
    %2968 = vmatprep.mubr.f32.mxu0 0.0
    %v2969 = vand.u32 %v2606, 4294901760
    %v2970 = vsub.f32 %v2606, %v2969
    %2971 = vmatmul.mubr.f32.gmra.mrb[0].mxu0 %v2970
    %v2972 = vpop.f32.mrb[0].mxu0
    %v2973 = vadd.f32 %v2862, %v2972
    %v2974 = vpop.f32.mrb[0].mxu0
    %2975 = vdwg.mxu0
    %2976 = vmatprep.subr.mxu0 0.0
    %v2977 = vand.u32 %v60, 4294901760
    %2978 = vmatpush1.msra.mxu0 %v2977
    %2979 = vmatprep.subr.mxu0 0.0
    %v2980 = vand.u32 %v61, 4294901760
    %2981 = vmatpush1.msra.mxu0 %v2980
    %2982 = vmatprep.subr.mxu0 0.0
    %v2983 = vand.u32 %v62, 4294901760
    %2984 = vmatpush1.msra.mxu0 %v2983
    %2985 = vmatprep.subr.mxu0 0.0
    %v2986 = vand.u32 %v63, 4294901760
    %2987 = vmatpush1.msra.mxu0 %v2986
    %2988 = vmatprep.subr.mxu0 0.0
    %v2989 = vand.u32 %v64, 4294901760
    %2990 = vmatpush1.msra.mxu0 %v2989
    %2991 = vmatprep.subr.mxu0 0.0
    %v2992 = vand.u32 %v65, 4294901760
    %2993 = vmatpush1.msra.mxu0 %v2992
    %2994 = vmatprep.subr.mxu0 0.0
    %v2995 = vand.u32 %v66, 4294901760
    %2996 = vmatpush1.msra.mxu0 %v2995
    %2997 = vmatprep.subr.mxu0 0.0
    %v2998 = vand.u32 %v67, 4294901760
    %2999 = vmatpush1.msra.mxu0 %v2998
    %3000 = vmatprep.subr.mxu0 0.0
    %v3001 = vand.u32 %v68, 4294901760
    %3002 = vmatpush1.msra.mxu0 %v3001
    %3003 = vmatprep.subr.mxu0 0.0
    %v3004 = vand.u32 %v69, 4294901760
    %3005 = vmatpush1.msra.mxu0 %v3004
    %3006 = vmatprep.subr.mxu0 0.0
    %v3007 = vand.u32 %v70, 4294901760
    %3008 = vmatpush1.msra.mxu0 %v3007
    %3009 = vmatprep.subr.mxu0 0.0
    %v3010 = vand.u32 %v71, 4294901760
    %3011 = vmatpush1.msra.mxu0 %v3010
    %3012 = vmatprep.subr.mxu0 0.0
    %v3013 = vand.u32 %v72, 4294901760
    %3014 = vmatpush1.msra.mxu0 %v3013
    %3015 = vmatprep.subr.mxu0 0.0
    %v3016 = vand.u32 %v73, 4294901760
    %3017 = vmatpush1.msra.mxu0 %v3016
    %3018 = vmatprep.subr.mxu0 0.0
    %v3019 = vand.u32 %v74, 4294901760
    %3020 = vmatpush1.msra.mxu0 %v3019
    %3021 = vmatprep.subr.mxu0 0.0
    %v3022 = vand.u32 %v75, 4294901760
    %3023 = vmatpush1.msra.mxu0 %v3022
    %3024 = vmatprep.subr.mxu0 0.0
    %3025 = vmatpush1.msra.mxu0 0.0
    %3026 = vmatprep.subr.mxu0 0.0
    %3027 = vmatpush1.msra.mxu0 0.0
    %3028 = vmatprep.subr.mxu0 0.0
    %3029 = vmatpush1.msra.mxu0 0.0
    %3030 = vmatprep.subr.mxu0 0.0
    %3031 = vmatpush1.msra.mxu0 0.0
    %3032 = vmatprep.subr.mxu0 0.0
    %3033 = vmatpush1.msra.mxu0 0.0
    %3034 = vmatprep.subr.mxu0 0.0
    %3035 = vmatpush1.msra.mxu0 0.0
    %3036 = vmatprep.subr.mxu0 0.0
    %3037 = vmatpush1.msra.mxu0 0.0
    %3038 = vmatprep.subr.mxu0 0.0
    %3039 = vmatpush1.msra.mxu0 0.0
    %3040 = vmatprep.subr.mxu0 0.0
    %3041 = vmatpush1.msra.mxu0 0.0
    %3042 = vmatprep.subr.mxu0 0.0
    %3043 = vmatpush1.msra.mxu0 0.0
    %3044 = vmatprep.subr.mxu0 0.0
    %3045 = vmatpush1.msra.mxu0 0.0
    %3046 = vmatprep.subr.mxu0 0.0
    %3047 = vmatpush1.msra.mxu0 0.0
    %3048 = vmatprep.subr.mxu0 0.0
    %3049 = vmatpush1.msra.mxu0 0.0
    %3050 = vmatprep.subr.mxu0 0.0
    %3051 = vmatpush1.msra.mxu0 0.0
    %3052 = vmatprep.subr.mxu0 0.0
    %3053 = vmatpush1.msra.mxu0 0.0
    %3054 = vmatprep.subr.mxu0 0.0
    %3055 = vmatpush1.msra.mxu0 0.0
    %3056 = vmatprep.mubr.f32.mxu0 0.0
    %v3057 = vand.u32 %v2605, 4294901760
    %v3058 = vsub.f32 %v2605, %v3057
    %v3059 = vand.u32 %v3058, 4294901760
    %3060 = vmatmul.mubr.f32.gmra.mrb[0].mxu0 %v3059
    %v3061 = vpop.f32.mrb[0].mxu0
    %v3062 = vadd.f32 %v2966, %v3061
    %v3063 = vpop.f32.mrb[0].mxu0
    %3064 = vmatprep.mubr.f32.mxu0 0.0
    %v3065 = vand.u32 %v2606, 4294901760
    %v3066 = vsub.f32 %v2606, %v3065
    %v3067 = vand.u32 %v3066, 4294901760
    %3068 = vmatmul.mubr.f32.gmra.mrb[0].mxu0 %v3067
    %v3069 = vpop.f32.mrb[0].mxu0
    %v3070 = vadd.f32 %v2973, %v3069
    %v3071 = vpop.f32.mrb[0].mxu0
    %3072 = vdwg.mxu0
    %3073 = vmatprep.subr.mxu0 0.0
    %v3074 = vand.u32 %v60, 4294901760
    %v3075 = vsub.f32 %v60, %v3074
    %v3076 = vand.u32 %v3075, 4294901760
    %3077 = vmatpush1.msra.mxu0 %v3076
    %3078 = vmatprep.subr.mxu0 0.0
    %v3079 = vand.u32 %v61, 4294901760
    %v3080 = vsub.f32 %v61, %v3079
    %v3081 = vand.u32 %v3080, 4294901760
    %3082 = vmatpush1.msra.mxu0 %v3081
    %3083 = vmatprep.subr.mxu0 0.0
    %v3084 = vand.u32 %v62, 4294901760
    %v3085 = vsub.f32 %v62, %v3084
    %v3086 = vand.u32 %v3085, 4294901760
    %3087 = vmatpush1.msra.mxu0 %v3086
    %3088 = vmatprep.subr.mxu0 0.0
    %v3089 = vand.u32 %v63, 4294901760
    %v3090 = vsub.f32 %v63, %v3089
    %v3091 = vand.u32 %v3090, 4294901760
    %3092 = vmatpush1.msra.mxu0 %v3091
    %3093 = vmatprep.subr.mxu0 0.0
    %v3094 = vand.u32 %v64, 4294901760
    %v3095 = vsub.f32 %v64, %v3094
    %v3096 = vand.u32 %v3095, 4294901760
    %3097 = vmatpush1.msra.mxu0 %v3096
    %3098 = vmatprep.subr.mxu0 0.0
    %v3099 = vand.u32 %v65, 4294901760
    %v3100 = vsub.f32 %v65, %v3099
    %v3101 = vand.u32 %v3100, 4294901760
    %3102 = vmatpush1.msra.mxu0 %v3101
    %3103 = vmatprep.subr.mxu0 0.0
    %v3104 = vand.u32 %v66, 4294901760
    %v3105 = vsub.f32 %v66, %v3104
    %v3106 = vand.u32 %v3105, 4294901760
    %3107 = vmatpush1.msra.mxu0 %v3106
    %3108 = vmatprep.subr.mxu0 0.0
    %v3109 = vand.u32 %v67, 4294901760
    %v3110 = vsub.f32 %v67, %v3109
    %v3111 = vand.u32 %v3110, 4294901760
    %3112 = vmatpush1.msra.mxu0 %v3111
    %3113 = vmatprep.subr.mxu0 0.0
    %v3114 = vand.u32 %v68, 4294901760
    %v3115 = vsub.f32 %v68, %v3114
    %v3116 = vand.u32 %v3115, 4294901760
    %3117 = vmatpush1.msra.mxu0 %v3116
    %3118 = vmatprep.subr.mxu0 0.0
    %v3119 = vand.u32 %v69, 4294901760
    %v3120 = vsub.f32 %v69, %v3119
    %v3121 = vand.u32 %v3120, 4294901760
    %3122 = vmatpush1.msra.mxu0 %v3121
    %3123 = vmatprep.subr.mxu0 0.0
    %v3124 = vand.u32 %v70, 4294901760
    %v3125 = vsub.f32 %v70, %v3124
    %v3126 = vand.u32 %v3125, 4294901760
    %3127 = vmatpush1.msra.mxu0 %v3126
    %3128 = vmatprep.subr.mxu0 0.0
    %v3129 = vand.u32 %v71, 4294901760
    %v3130 = vsub.f32 %v71, %v3129
    %v3131 = vand.u32 %v3130, 4294901760
    %3132 = vmatpush1.msra.mxu0 %v3131
    %3133 = vmatprep.subr.mxu0 0.0
    %v3134 = vand.u32 %v72, 4294901760
    %v3135 = vsub.f32 %v72, %v3134
    %v3136 = vand.u32 %v3135, 4294901760
    %3137 = vmatpush1.msra.mxu0 %v3136
    %3138 = vmatprep.subr.mxu0 0.0
    %v3139 = vand.u32 %v73, 4294901760
    %v3140 = vsub.f32 %v73, %v3139
    %v3141 = vand.u32 %v3140, 4294901760
    %3142 = vmatpush1.msra.mxu0 %v3141
    %3143 = vmatprep.subr.mxu0 0.0
    %v3144 = vand.u32 %v74, 4294901760
    %v3145 = vsub.f32 %v74, %v3144
    %v3146 = vand.u32 %v3145, 4294901760
    %3147 = vmatpush1.msra.mxu0 %v3146
    %3148 = vmatprep.subr.mxu0 0.0
    %v3149 = vand.u32 %v75, 4294901760
    %v3150 = vsub.f32 %v75, %v3149
    %v3151 = vand.u32 %v3150, 4294901760
    %3152 = vmatpush1.msra.mxu0 %v3151
    %3153 = vmatprep.subr.mxu0 0.0
    %3154 = vmatpush1.msra.mxu0 0.0
    %3155 = vmatprep.subr.mxu0 0.0
    %3156 = vmatpush1.msra.mxu0 0.0
    %3157 = vmatprep.subr.mxu0 0.0
    %3158 = vmatpush1.msra.mxu0 0.0
    %3159 = vmatprep.subr.mxu0 0.0
    %3160 = vmatpush1.msra.mxu0 0.0
    %3161 = vmatprep.subr.mxu0 0.0
    %3162 = vmatpush1.msra.mxu0 0.0
    %3163 = vmatprep.subr.mxu0 0.0
    %3164 = vmatpush1.msra.mxu0 0.0
    %3165 = vmatprep.subr.mxu0 0.0
    %3166 = vmatpush1.msra.mxu0 0.0
    %3167 = vmatprep.subr.mxu0 0.0
    %3168 = vmatpush1.msra.mxu0 0.0
    %3169 = vmatprep.subr.mxu0 0.0
    %3170 = vmatpush1.msra.mxu0 0.0
    %3171 = vmatprep.subr.mxu0 0.0
    %3172 = vmatpush1.msra.mxu0 0.0
    %3173 = vmatprep.subr.mxu0 0.0
    %3174 = vmatpush1.msra.mxu0 0.0
    %3175 = vmatprep.subr.mxu0 0.0
    %3176 = vmatpush1.msra.mxu0 0.0
    %3177 = vmatprep.subr.mxu0 0.0
    %3178 = vmatpush1.msra.mxu0 0.0
    %3179 = vmatprep.subr.mxu0 0.0
    %3180 = vmatpush1.msra.mxu0 0.0
    %3181 = vmatprep.subr.mxu0 0.0
    %3182 = vmatpush1.msra.mxu0 0.0
    %3183 = vmatprep.subr.mxu0 0.0
    %3184 = vmatpush1.msra.mxu0 0.0
    %3185 = vmatprep.mubr.f32.mxu0 0.0
    %v3186 = vand.u32 %v2605, 4294901760
    %3187 = vmatmul.mubr.f32.gmra.mrb[0].mxu0 %v3186
    %v3188 = vpop.f32.mrb[0].mxu0
    %v3189 = vadd.f32 %v3062, %v3188
    %v3190 = vpop.f32.mrb[0].mxu0
    %3191 = vmatprep.mubr.f32.mxu0 0.0
    %v3192 = vand.u32 %v2606, 4294901760
    %3193 = vmatmul.mubr.f32.gmra.mrb[0].mxu0 %v3192
    %v3194 = vpop.f32.mrb[0].mxu0
    %v3195 = vadd.f32 %v3070, %v3194
    %v3196 = vpop.f32.mrb[0].mxu0
    %3197 = vdwg.mxu0
    %3198 = vmatprep.subr.mxu0 0.0
    %v3199 = vand.u32 %v60, 4294901760
    %3200 = vmatpush1.msra.mxu0 %v3199
    %3201 = vmatprep.subr.mxu0 0.0
    %v3202 = vand.u32 %v61, 4294901760
    %3203 = vmatpush1.msra.mxu0 %v3202
    %3204 = vmatprep.subr.mxu0 0.0
    %v3205 = vand.u32 %v62, 4294901760
    %3206 = vmatpush1.msra.mxu0 %v3205
    %3207 = vmatprep.subr.mxu0 0.0
    %v3208 = vand.u32 %v63, 4294901760
    %3209 = vmatpush1.msra.mxu0 %v3208
    %3210 = vmatprep.subr.mxu0 0.0
    %v3211 = vand.u32 %v64, 4294901760
    %3212 = vmatpush1.msra.mxu0 %v3211
    %3213 = vmatprep.subr.mxu0 0.0
    %v3214 = vand.u32 %v65, 4294901760
    %3215 = vmatpush1.msra.mxu0 %v3214
    %3216 = vmatprep.subr.mxu0 0.0
    %v3217 = vand.u32 %v66, 4294901760
    %3218 = vmatpush1.msra.mxu0 %v3217
    %3219 = vmatprep.subr.mxu0 0.0
    %v3220 = vand.u32 %v67, 4294901760
    %3221 = vmatpush1.msra.mxu0 %v3220
    %3222 = vmatprep.subr.mxu0 0.0
    %v3223 = vand.u32 %v68, 4294901760
    %3224 = vmatpush1.msra.mxu0 %v3223
    %3225 = vmatprep.subr.mxu0 0.0
    %v3226 = vand.u32 %v69, 4294901760
    %3227 = vmatpush1.msra.mxu0 %v3226
    %3228 = vmatprep.subr.mxu0 0.0
    %v3229 = vand.u32 %v70, 4294901760
    %3230 = vmatpush1.msra.mxu0 %v3229
    %3231 = vmatprep.subr.mxu0 0.0
    %v3232 = vand.u32 %v71, 4294901760
    %3233 = vmatpush1.msra.mxu0 %v3232
    %3234 = vmatprep.subr.mxu0 0.0
    %v3235 = vand.u32 %v72, 4294901760
    %3236 = vmatpush1.msra.mxu0 %v3235
    %3237 = vmatprep.subr.mxu0 0.0
    %v3238 = vand.u32 %v73, 4294901760
    %3239 = vmatpush1.msra.mxu0 %v3238
    %3240 = vmatprep.subr.mxu0 0.0
    %v3241 = vand.u32 %v74, 4294901760
    %3242 = vmatpush1.msra.mxu0 %v3241
    %3243 = vmatprep.subr.mxu0 0.0
    %v3244 = vand.u32 %v75, 4294901760
    %3245 = vmatpush1.msra.mxu0 %v3244
    %3246 = vmatprep.subr.mxu0 0.0
    %3247 = vmatpush1.msra.mxu0 0.0
    %3248 = vmatprep.subr.mxu0 0.0
    %3249 = vmatpush1.msra.mxu0 0.0
    %3250 = vmatprep.subr.mxu0 0.0
    %3251 = vmatpush1.msra.mxu0 0.0
    %3252 = vmatprep.subr.mxu0 0.0
    %3253 = vmatpush1.msra.mxu0 0.0
    %3254 = vmatprep.subr.mxu0 0.0
    %3255 = vmatpush1.msra.mxu0 0.0
    %3256 = vmatprep.subr.mxu0 0.0
    %3257 = vmatpush1.msra.mxu0 0.0
    %3258 = vmatprep.subr.mxu0 0.0
    %3259 = vmatpush1.msra.mxu0 0.0
    %3260 = vmatprep.subr.mxu0 0.0
    %3261 = vmatpush1.msra.mxu0 0.0
    %3262 = vmatprep.subr.mxu0 0.0
    %3263 = vmatpush1.msra.mxu0 0.0
    %3264 = vmatprep.subr.mxu0 0.0
    %3265 = vmatpush1.msra.mxu0 0.0
    %3266 = vmatprep.subr.mxu0 0.0
    %3267 = vmatpush1.msra.mxu0 0.0
    %3268 = vmatprep.subr.mxu0 0.0
    %3269 = vmatpush1.msra.mxu0 0.0
    %3270 = vmatprep.subr.mxu0 0.0
    %3271 = vmatpush1.msra.mxu0 0.0
    %3272 = vmatprep.subr.mxu0 0.0
    %3273 = vmatpush1.msra.mxu0 0.0
    %3274 = vmatprep.subr.mxu0 0.0
    %3275 = vmatpush1.msra.mxu0 0.0
    %3276 = vmatprep.subr.mxu0 0.0
    %3277 = vmatpush1.msra.mxu0 0.0
    %3278 = vmatprep.mubr.f32.mxu0 0.0
    %v3279 = vand.u32 %v2605, 4294901760
    %3280 = vmatmul.mubr.f32.gmra.mrb[0].mxu0 %v3279
    %v3281 = vpop.f32.mrb[0].mxu0
    %v3282 = vadd.f32 %v3189, %v3281
    %v3283 = vpop.f32.mrb[0].mxu0
    %3284 = vmatprep.mubr.f32.mxu0 0.0
    %v3285 = vand.u32 %v2606, 4294901760
    %3286 = vmatmul.mubr.f32.gmra.mrb[0].mxu0 %v3285
    %v3287 = vpop.f32.mrb[0].mxu0
    %v3288 = vadd.f32 %v3195, %v3287
    %v3289 = vpop.f32.mrb[0].mxu0
    %3290 = vdwg.mxu0
    %v3291 = vadd.f32 %v3282, %v96
    %v3292 = vadd.f32 %v3288, %v96
    %3293 = vst [vmem:[#allocation7] sm:$0xff] %v3291
    %3294 = vst [vmem:[#allocation7 + $0x8] sm:$0xff] %v3292
    // Predicated region
    $region26: #{tpu_custom_call.1} parent=1 // pred_check
      _
    $region27: #{tpu_custom_call.1} parent=1 // pred_check_branch
      %3296 = sbr.rel (0) target = $region29
    $region28: #{tpu_custom_call.1} parent=1 // pred_region
      %s3298 = ssub.s32 256, 256
      %3299 = vsyncadd [#allocation4], %s3298
      %s3300 = sshll.u32 [#allocation7], 4
      %s3301 = int_to_ptr.vmem [resolvable:$true] %s3300
      %3306 = dma.vmem_to_hbm [thread:$0]  %s3301, 256, %s4, [#allocation4], 128, 128, 8
    $region29: #{tpu_custom_call.1} parent=1 // pred_fallthru
      _
    // Predicated region
    $region30: #{tpu_custom_call.1} parent=1 // pred_check
      _
    $region31: #{tpu_custom_call.1} parent=1 // pred_check_branch
      %3308 = sbr.rel (0) target = $region33
    $region32: #{tpu_custom_call.1} parent=1 // pred_region
      %3309 = dma.done [#allocation4], 256
    $region33: #{tpu_custom_call.1} parent=1 // pred_fallthru
      _
    %3310 = vsyncpa [#allocation3], 1
    %3311 = vsyncpa [#allocation6], 1
    %3312 = vsyncpa [#allocation4], 1

</llo_original>
